<compile_context>
chip_gen: v6e
topology: v6e:2x2x1
jax: 0.10.0
libtpu: 0.0.40
codegen_flags: <defaults>
</compile_context>

<pallas_src>
import jax
import jax.numpy as jnp
from jax import lax
from jax.experimental import pallas as pl
from jax.experimental.pallas import tpu as pltpu

# ------------------------- model hyper-parameters -------------------------
N_NODES = 8           # graph nodes
VF_EMB_DIM = 32       # encoder_vf_emb_dim (== D of x's last axis here)
N_EDGES = 16
SPATIAL_FEATURE_DIM = 64
SPATIAL_GW = 32       # spatial_grayscale_width  (power of 2)
SPATIAL_GH = 32       # spatial_grayscale_height
HIDDEN = 64
BN_EPS = 1e-5
COS_EPS = 1e-8

assert SPATIAL_GW & (SPATIAL_GW - 1) == 0
_W_SHIFT = SPATIAL_GW.bit_length() - 1


# ------------------------------ fused kernel ------------------------------
def _fused_forward_kernel(
    x_ref, vfa_ref, vfv_ref,
    boxb_ref, rate_ref,
    wsp0_ref, wsp1_ref, bsp_ref,
    gamma_ref, beta_ref,
    src_ref, dst_ref, dstrow_ref,
    half1_ref, smask_ref,
    edelta_ref, eself_ref,
    w1_ref, b1_ref,
    w2s_ref, w2d_ref, w2e_ref, w2dl_ref, w2sf_ref, b2_ref,
    wh_ref, bh_ref,
    out_ref,
):
    f32 = jnp.float32
    E, N = N_EDGES, N_NODES
    H, W = SPATIAL_GH, SPATIAL_GW
    HW = H * W

    # ---- spatial branch: rasterize boxes in-kernel, linear + ReLU ----
    vals = jnp.exp(-rate_ref[...] * 10.0) * 255.0            # (E, 1)   EUP exp
    fidx = lax.broadcasted_iota(jnp.int32, (E, HW), 1)       # flat pixel index
    yy = (fidx >> _W_SHIFT).astype(f32)                      # row  = f // W
    xx = (fidx & (W - 1)).astype(f32)                        # col  = f %  W
    bb = boxb_ref[...]                                       # (E, 8) per-ch [x1,y1,x2,y2]

    def raster(c):
        # TODO(synk): original batch_create_spatial_grayscale is unspecified;
        # approximated as a filled-rectangle rasterizer of the (x1,y1,x2,y2) box.
        x1 = bb[:, 4 * c + 0:4 * c + 1]
        y1 = bb[:, 4 * c + 1:4 * c + 2]
        x2 = bb[:, 4 * c + 2:4 * c + 3]
        y2 = bb[:, 4 * c + 3:4 * c + 4]
        inside = (xx >= x1) & (xx < x2) & (yy >= y1) & (yy < y2)
        return inside.astype(f32) * vals                     # (E, HW)

    spatial = (
        jnp.dot(raster(0), wsp0_ref[...], preferred_element_type=f32)
        + jnp.dot(raster(1), wsp1_ref[...], preferred_element_type=f32)
        + bsp_ref[...]
    )
    spatial = jnp.maximum(spatial, 0.0)                      # (E, F)

    # ---- one-hot select / scatter matrices from edge_index (MXU gathers) ----
    col_en = lax.broadcasted_iota(jnp.int32, (E, N), 1)
    onehot_src = (col_en == src_ref[...]).astype(f32)        # (E, N)
    onehot_dst = (col_en == dst_ref[...]).astype(f32)        # (E, N)
    col_ne = lax.broadcasted_iota(jnp.int32, (N, E), 1)
    scat_dst = (col_ne == dstrow_ref[...]).astype(f32)       # (N, E)

    half1 = half1_ref[...]                                   # (E, 1)
    sel_a = half1 * onehot_src + (1.0 - half1) * onehot_dst
    sel_v = half1 * onehot_dst + (1.0 - half1) * onehot_src

    # ---- cosine-similarity scaling of edge_attr ----
    a_g = jnp.dot(sel_a, vfa_ref[...], preferred_element_type=f32)   # (E, D)
    v_g = jnp.dot(sel_v, vfv_ref[...], preferred_element_type=f32)   # (E, D)
    dot_av = jnp.sum(a_g * v_g, axis=-1, keepdims=True)
    na = jnp.sqrt(jnp.sum(a_g * a_g, axis=-1, keepdims=True))
    nv = jnp.sqrt(jnp.sum(v_g * v_g, axis=-1, keepdims=True))
    # PyTorch cosine_similarity clamps each norm separately.
    sim = dot_av / (jnp.maximum(na, COS_EPS) * jnp.maximum(nv, COS_EPS))
    scale = jnp.where(smask_ref[...] > 0.5, sim, 1.0)
    edge_attr = spatial * scale                              # (E, F)

    # ---- BatchNorm1d (training-mode batch statistics, biased variance) ----
    # TODO(synk): eval-mode running_mean/var is not modeled.
    inv_e = 1.0 / E
    mean = jnp.sum(edge_attr, axis=0, keepdims=True) * inv_e
    diff = edge_attr - mean
    var = jnp.sum(diff * diff, axis=0, keepdims=True) * inv_e
    edge_attr = diff * lax.rsqrt(var + BN_EPS) * gamma_ref[...] + beta_ref[...]

    # ---- graph_net (synthetic message-passing net over data.x / edge_attr) ----
    h = jnp.dot(x_ref[...], w1_ref[...], preferred_element_type=f32) + b1_ref[...]
    h = jnp.maximum(h, 0.0)                                  # (N, HIDDEN)
    h_src = jnp.dot(onehot_src, h, preferred_element_type=f32)
    h_dst = jnp.dot(onehot_dst, h, preferred_element_type=f32)
    # split-weight accumulation instead of concat([h_src, h_dst, edge_attr, ...])
    m = (
        jnp.dot(h_src, w2s_ref[...], preferred_element_type=f32)
        + jnp.dot(h_dst, w2d_ref[...], preferred_element_type=f32)
        + jnp.dot(edge_attr, w2e_ref[...], preferred_element_type=f32)
        + edelta_ref[...] * w2dl_ref[...]
        + eself_ref[...] * w2sf_ref[...]
        + b2_ref[...]
    )
    m = jnp.maximum(m, 0.0)                                  # (E, HIDDEN)

    agg = jnp.dot(scat_dst, m, preferred_element_type=f32)   # scatter-add as matmul
    h2 = h + agg
    # merged heads: [graph_out | graph_audio_out | graph_video_out]
    out_ref[...] = jnp.dot(h2, wh_ref[...], preferred_element_type=f32) + bh_ref[...]


# ------------------------------ JAX wrapper ------------------------------
def init_params(key):
    ks = jax.random.split(key, 6)
    s = 0.05
    p = {}
    k_sp = SPATIAL_GH * SPATIAL_GW
    w_sp = jax.random.normal(ks[0], (2 * k_sp, SPATIAL_FEATURE_DIM), jnp.float32) * s
    p["w_sp0"] = w_sp[:k_sp]
    p["w_sp1"] = w_sp[k_sp:]
    p["b_sp"] = jnp.zeros((1, SPATIAL_FEATURE_DIM), jnp.float32)
    p["bn_gamma"] = jnp.ones((1, SPATIAL_FEATURE_DIM), jnp.float32)
    p["bn_beta"] = jnp.zeros((1, SPATIAL_FEATURE_DIM), jnp.float32)
    p["w1"] = jax.random.normal(ks[1], (4 * VF_EMB_DIM, HIDDEN), jnp.float32) * s
    p["b1"] = jnp.zeros((1, HIDDEN), jnp.float32)
    w2 = jax.random.normal(
        ks[2], (2 * HIDDEN + SPATIAL_FEATURE_DIM + 2, HIDDEN), jnp.float32) * s
    p["w2_src"] = w2[:HIDDEN]
    p["w2_dst"] = w2[HIDDEN:2 * HIDDEN]
    p["w2_edge"] = w2[2 * HIDDEN:2 * HIDDEN + SPATIAL_FEATURE_DIM]
    p["w2_delta"] = w2[2 * HIDDEN + SPATIAL_FEATURE_DIM:2 * HIDDEN + SPATIAL_FEATURE_DIM + 1]
    p["w2_self"] = w2[2 * HIDDEN + SPATIAL_FEATURE_DIM + 1:]
    p["b2"] = jnp.zeros((1, HIDDEN), jnp.float32)
    w3 = jax.random.normal(ks[3], (HIDDEN, 2), jnp.float32) * s
    wa = jax.random.normal(ks[4], (HIDDEN, 2), jnp.float32) * s
    wv = jax.random.normal(ks[5], (HIDDEN, 2), jnp.float32) * s
    p["w_heads"] = jnp.concatenate([w3, wa, wv], axis=1)      # (HIDDEN, 6)
    p["b_heads"] = jnp.zeros((1, 6), jnp.float32)
    return p


def my_model_forward(x, edge_index, edge_attr_info, params):
    """Mirrors MyModel.forward for the 3-D x path, encoder_enable_vf=True,
    graph_enable_spatial=True.  Single fused Pallas kernel; only tiny
    scalar/slice prep stays in XLA."""
    N = x.shape[0]
    E = edge_index.shape[1]

    vf_a_emb = x[:, 2, :VF_EMB_DIM]
    vf_v_emb = x[:, 3, :VF_EMB_DIM]

    # per-edge, per-channel pixel-space box bounds [x1, y1, x2, y2] -> (E, 8)
    boxes = edge_attr_info[:, :2, :]
    bx1 = jnp.floor(boxes[..., 0] * SPATIAL_GW)
    by1 = jnp.floor(boxes[..., 1] * SPATIAL_GH)
    bx2 = jnp.ceil(boxes[..., 2] * SPATIAL_GW)
    by2 = jnp.ceil(boxes[..., 3] * SPATIAL_GH)
    boxb = jnp.stack([bx1, by1, bx2, by2], axis=-1).reshape(E, 8).astype(jnp.float32)

    rate = edge_attr_info[:, 3, 0:1]
    edelta = edge_attr_info[:, 4, 0:1]
    eself = edge_attr_info[:, 5, 0:1]

    a0 = edge_attr_info[:, 2, 0]
    a1 = edge_attr_info[:, 2, 1]
    half1 = (a0 == 1.0) & (a1 == 0.0)
    half2 = (a0 == 0.0) & (a1 == 1.0)
    half1_f = half1.astype(jnp.float32)[:, None]
    smask = (half1 | half2).astype(jnp.float32)[:, None]

    src = edge_index[0].astype(jnp.int32)[:, None]       # (E, 1)
    dst = edge_index[1].astype(jnp.int32)[:, None]       # (E, 1)
    dst_row = edge_index[1].astype(jnp.int32)[None, :]   # (1, E)

    x_nodes = x.reshape(N, -1)                           # (N, 4*D)

    args = (
        x_nodes, vf_a_emb, vf_v_emb,
        boxb, rate,
        params["w_sp0"], params["w_sp1"], params["b_sp"],
        params["bn_gamma"], params["bn_beta"],
        src, dst, dst_row,
        half1_f, smask,
        edelta, eself,
        params["w1"], params["b1"],
        params["w2_src"], params["w2_dst"], params["w2_edge"],
        params["w2_delta"], params["w2_self"], params["b2"],
        params["w_heads"], params["b_heads"],
    )
    # whole-array single blocks (no padding, no slicing)
    in_specs = [pl.BlockSpec(a.shape, lambda i, nd=a.ndim: (0,) * nd) for a in args]

    out = pl.pallas_call(
        _fused_forward_kernel,
        out_shape=jax.ShapeDtypeStruct((N, 6), jnp.float32),
        grid=(1,),
        in_specs=in_specs,
        out_specs=pl.BlockSpec((N, 6), lambda i: (0, 0)),
        compiler_params=pltpu.CompilerParams(dimension_semantics=("arbitrary",)),
    )(*args)

    graph_out = out[:, 0:2]
    graph_audio_out = out[:, 2:4]
    graph_video_out = out[:, 4:6]
    return graph_out, graph_audio_out, graph_video_out, vf_a_emb, vf_v_emb


if __name__ == "__main__":
    key = jax.random.PRNGKey(0)
    k_x, k_e, k_box, k_rate, k_delta, k_p = jax.random.split(key, 6)

    # node features: (N, 4, D) = [audio_feats, video_feats, vf_a_emb, vf_v_emb]
    x = jax.random.normal(k_x, (N_NODES, 4, VF_EMB_DIM), jnp.float32)
    edge_index = jax.random.randint(k_e, (2, N_EDGES), 0, N_NODES).astype(jnp.int32)

    # edge_attr_info: (E, 6, 4)
    corners = jax.random.uniform(k_box, (N_EDGES, 2, 2, 2), jnp.float32)
    lo = jnp.min(corners, axis=2)
    hi = jnp.max(corners, axis=2)
    boxes = jnp.concatenate([lo, hi], axis=-1)               # (E, 2, 4) [x1,y1,x2,y2]
    audio_flags = jnp.array([[1, 0], [0, 1], [0, 0], [1, 1]], jnp.float32)[
        jnp.arange(N_EDGES) % 4
    ]
    time_delta_rate = jax.random.uniform(k_rate, (N_EDGES,), jnp.float32, 0.0, 0.3)
    edge_delta = jax.random.uniform(k_delta, (N_EDGES,), jnp.float32)
    edge_self = (jnp.arange(N_EDGES) % 5 == 0).astype(jnp.float32)

    edge_attr_info = jnp.zeros((N_EDGES, 6, 4), jnp.float32)
    edge_attr_info = edge_attr_info.at[:, 0, :].set(boxes[:, 0])
    edge_attr_info = edge_attr_info.at[:, 1, :].set(boxes[:, 1])
    edge_attr_info = edge_attr_info.at[:, 2, :2].set(audio_flags)
    edge_attr_info = edge_attr_info.at[:, 3, 0].set(time_delta_rate)
    edge_attr_info = edge_attr_info.at[:, 4, 0].set(edge_delta)
    edge_attr_info = edge_attr_info.at[:, 5, 0].set(edge_self)

    params = init_params(k_p)

    fwd = jax.jit(my_model_forward)
    outs = fwd(x, edge_index, edge_attr_info, params)
    outs = jax.block_until_ready(outs)
    g, ga, gv, va, vv = outs
    assert g.shape == (N_NODES, 2) and ga.shape == (N_NODES, 2) and gv.shape == (N_NODES, 2)
    assert va.shape == (N_NODES, VF_EMB_DIM) and vv.shape == (N_NODES, VF_EMB_DIM)
    assert bool(jnp.all(jnp.isfinite(g)))
    print("KERNEL_OK")
</pallas_src>

<mosaic_0001>
module attributes {stable_mosaic.version = 11 : i64} {
  func.func @_fused_forward_kernel(%arg0: i32, %arg1: memref<8x128xf32, #tpu.memory_space<vmem>>, %arg2: memref<8x32xf32, #tpu.memory_space<vmem>>, %arg3: memref<8x32xf32, #tpu.memory_space<vmem>>, %arg4: memref<16x8xf32, #tpu.memory_space<vmem>>, %arg5: memref<16x1xf32, #tpu.memory_space<vmem>>, %arg6: memref<1024x64xf32, #tpu.memory_space<vmem>>, %arg7: memref<1024x64xf32, #tpu.memory_space<vmem>>, %arg8: memref<1x64xf32, #tpu.memory_space<vmem>>, %arg9: memref<1x64xf32, #tpu.memory_space<vmem>>, %arg10: memref<1x64xf32, #tpu.memory_space<vmem>>, %arg11: memref<16x1xi32, #tpu.memory_space<vmem>>, %arg12: memref<16x1xi32, #tpu.memory_space<vmem>>, %arg13: memref<1x16xi32, #tpu.memory_space<vmem>>, %arg14: memref<16x1xf32, #tpu.memory_space<vmem>>, %arg15: memref<16x1xf32, #tpu.memory_space<vmem>>, %arg16: memref<16x1xf32, #tpu.memory_space<vmem>>, %arg17: memref<16x1xf32, #tpu.memory_space<vmem>>, %arg18: memref<128x64xf32, #tpu.memory_space<vmem>>, %arg19: memref<1x64xf32, #tpu.memory_space<vmem>>, %arg20: memref<64x64xf32, #tpu.memory_space<vmem>>, %arg21: memref<64x64xf32, #tpu.memory_space<vmem>>, %arg22: memref<64x64xf32, #tpu.memory_space<vmem>>, %arg23: memref<1x64xf32, #tpu.memory_space<vmem>>, %arg24: memref<1x64xf32, #tpu.memory_space<vmem>>, %arg25: memref<1x64xf32, #tpu.memory_space<vmem>>, %arg26: memref<64x6xf32, #tpu.memory_space<vmem>>, %arg27: memref<1x6xf32, #tpu.memory_space<vmem>>, %arg28: memref<8x6xf32, #tpu.memory_space<vmem>>) attributes {dimension_semantics = [#tpu.dimension_semantics<arbitrary>], iteration_bounds = array<i64: 1>, scalar_prefetch = 0 : i64, scratch_operands = 0 : i64, tpu.core_type = #tpu.core_type<tc>, window_params = [{pipeline_mode = #tpu.pipeline_mode<synchronous>, transform_indices = @transform_0, window_bounds = array<i64: 8, 128>}, {pipeline_mode = #tpu.pipeline_mode<synchronous>, transform_indices = @transform_1, window_bounds = array<i64: 8, 32>}, {pipeline_mode = #tpu.pipeline_mode<synchronous>, transform_indices = @transform_2, window_bounds = array<i64: 8, 32>}, {pipeline_mode = #tpu.pipeline_mode<synchronous>, transform_indices = @transform_3, window_bounds = array<i64: 16, 8>}, {pipeline_mode = #tpu.pipeline_mode<synchronous>, transform_indices = @transform_4, window_bounds = array<i64: 16, 1>}, {pipeline_mode = #tpu.pipeline_mode<synchronous>, transform_indices = @transform_5, window_bounds = array<i64: 1024, 64>}, {pipeline_mode = #tpu.pipeline_mode<synchronous>, transform_indices = @transform_6, window_bounds = array<i64: 1024, 64>}, {pipeline_mode = #tpu.pipeline_mode<synchronous>, transform_indices = @transform_7, window_bounds = array<i64: 1, 64>}, {pipeline_mode = #tpu.pipeline_mode<synchronous>, transform_indices = @transform_8, window_bounds = array<i64: 1, 64>}, {pipeline_mode = #tpu.pipeline_mode<synchronous>, transform_indices = @transform_9, window_bounds = array<i64: 1, 64>}, {pipeline_mode = #tpu.pipeline_mode<synchronous>, transform_indices = @transform_10, window_bounds = array<i64: 16, 1>}, {pipeline_mode = #tpu.pipeline_mode<synchronous>, transform_indices = @transform_11, window_bounds = array<i64: 16, 1>}, {pipeline_mode = #tpu.pipeline_mode<synchronous>, transform_indices = @transform_12, window_bounds = array<i64: 1, 16>}, {pipeline_mode = #tpu.pipeline_mode<synchronous>, transform_indices = @transform_13, window_bounds = array<i64: 16, 1>}, {pipeline_mode = #tpu.pipeline_mode<synchronous>, transform_indices = @transform_14, window_bounds = array<i64: 16, 1>}, {pipeline_mode = #tpu.pipeline_mode<synchronous>, transform_indices = @transform_15, window_bounds = array<i64: 16, 1>}, {pipeline_mode = #tpu.pipeline_mode<synchronous>, transform_indices = @transform_16, window_bounds = array<i64: 16, 1>}, {pipeline_mode = #tpu.pipeline_mode<synchronous>, transform_indices = @transform_17, window_bounds = array<i64: 128, 64>}, {pipeline_mode = #tpu.pipeline_mode<synchronous>, transform_indices = @transform_18, window_bounds = array<i64: 1, 64>}, {pipeline_mode = #tpu.pipeline_mode<synchronous>, transform_indices = @transform_19, window_bounds = array<i64: 64, 64>}, {pipeline_mode = #tpu.pipeline_mode<synchronous>, transform_indices = @transform_20, window_bounds = array<i64: 64, 64>}, {pipeline_mode = #tpu.pipeline_mode<synchronous>, transform_indices = @transform_21, window_bounds = array<i64: 64, 64>}, {pipeline_mode = #tpu.pipeline_mode<synchronous>, transform_indices = @transform_22, window_bounds = array<i64: 1, 64>}, {pipeline_mode = #tpu.pipeline_mode<synchronous>, transform_indices = @transform_23, window_bounds = array<i64: 1, 64>}, {pipeline_mode = #tpu.pipeline_mode<synchronous>, transform_indices = @transform_24, window_bounds = array<i64: 1, 64>}, {pipeline_mode = #tpu.pipeline_mode<synchronous>, transform_indices = @transform_25, window_bounds = array<i64: 64, 6>}, {pipeline_mode = #tpu.pipeline_mode<synchronous>, transform_indices = @transform_26, window_bounds = array<i64: 1, 6>}, {pipeline_mode = #tpu.pipeline_mode<synchronous>, transform_indices = @transform_27, window_bounds = array<i64: 8, 6>}]} {
    %c0 = arith.constant 0 : index
    %c0_0 = arith.constant 0 : index
    %0 = vector.load %arg5[%c0, %c0_0] : memref<16x1xf32, #tpu.memory_space<vmem>>, vector<16x1xf32>
    %cst = arith.constant 0.000000e+00 : f32
    %1 = vector.broadcast %cst : f32 to vector<16x1xf32>
    %2 = arith.subf %1, %0 : vector<16x1xf32>
    %cst_1 = arith.constant 1.000000e+01 : f32
    %3 = vector.broadcast %cst_1 : f32 to vector<16x1xf32>
    %4 = arith.mulf %2, %3 : vector<16x1xf32>
    %5 = math.exp %4 : vector<16x1xf32>
    %cst_2 = arith.constant 2.550000e+02 : f32
    %6 = vector.broadcast %cst_2 : f32 to vector<16x1xf32>
    %7 = arith.mulf %5, %6 : vector<16x1xf32>
    %8 = tpu.iota {dimensions = array<i32: 1>} : vector<16x1024xi32>
    %c5_i32 = arith.constant 5 : i32
    %9 = vector.broadcast %c5_i32 : i32 to vector<16x1024xi32>
    %10 = arith.shrsi %8, %9 : vector<16x1024xi32>
    %11 = arith.sitofp %10 : vector<16x1024xi32> to vector<16x1024xf32>
    %c31_i32 = arith.constant 31 : i32
    %12 = vector.broadcast %c31_i32 : i32 to vector<16x1024xi32>
    %13 = arith.andi %8, %12 : vector<16x1024xi32>
    %14 = arith.sitofp %13 : vector<16x1024xi32> to vector<16x1024xf32>
    %c0_3 = arith.constant 0 : index
    %c0_4 = arith.constant 0 : index
    %15 = vector.load %arg4[%c0_3, %c0_4] : memref<16x8xf32, #tpu.memory_space<vmem>>, vector<16x8xf32>
    %16 = vector.extract_strided_slice %15 {offsets = [0, 0], sizes = [16, 1], strides = [1, 1]} : vector<16x8xf32> to vector<16x1xf32>
    %17 = vector.extract_strided_slice %15 {offsets = [0, 1], sizes = [16, 1], strides = [1, 1]} : vector<16x8xf32> to vector<16x1xf32>
    %18 = vector.extract_strided_slice %15 {offsets = [0, 2], sizes = [16, 1], strides = [1, 1]} : vector<16x8xf32> to vector<16x1xf32>
    %19 = vector.extract_strided_slice %15 {offsets = [0, 3], sizes = [16, 1], strides = [1, 1]} : vector<16x8xf32> to vector<16x1xf32>
    %20 = vector.broadcast %16 : vector<16x1xf32> to vector<16x1024xf32>
    %21 = arith.cmpf oge, %14, %20 : vector<16x1024xf32>
    %22 = vector.broadcast %18 : vector<16x1xf32> to vector<16x1024xf32>
    %23 = arith.cmpf olt, %14, %22 : vector<16x1024xf32>
    %24 = arith.andi %21, %23 : vector<16x1024xi1>
    %25 = vector.broadcast %17 : vector<16x1xf32> to vector<16x1024xf32>
    %26 = arith.cmpf oge, %11, %25 : vector<16x1024xf32>
    %27 = arith.andi %24, %26 : vector<16x1024xi1>
    %28 = vector.broadcast %19 : vector<16x1xf32> to vector<16x1024xf32>
    %29 = arith.cmpf olt, %11, %28 : vector<16x1024xf32>
    %30 = arith.andi %27, %29 : vector<16x1024xi1>
    %31 = arith.extui %30 : vector<16x1024xi1> to vector<16x1024xi32>
    %32 = arith.sitofp %31 : vector<16x1024xi32> to vector<16x1024xf32>
    %33 = vector.broadcast %7 : vector<16x1xf32> to vector<16x1024xf32>
    %34 = arith.mulf %32, %33 : vector<16x1024xf32>
    %c0_5 = arith.constant 0 : index
    %c0_6 = arith.constant 0 : index
    %35 = vector.load %arg6[%c0_5, %c0_6] : memref<1024x64xf32, #tpu.memory_space<vmem>>, vector<1024x64xf32>
    %cst_7 = arith.constant dense<0.000000e+00> : vector<16x64xf32>
    %36 = tpu.matmul %34, %35, %cst_7 {dimension_numbers = #tpu.dot_dimension_numbers<[1], [0], [0], [1], [0, 0, 1, 1], [], []>} : vector<16x1024xf32>, vector<1024x64xf32>, vector<16x64xf32> -> vector<16x64xf32>
    %37 = vector.extract_strided_slice %15 {offsets = [0, 4], sizes = [16, 1], strides = [1, 1]} : vector<16x8xf32> to vector<16x1xf32>
    %38 = vector.extract_strided_slice %15 {offsets = [0, 5], sizes = [16, 1], strides = [1, 1]} : vector<16x8xf32> to vector<16x1xf32>
    %39 = vector.extract_strided_slice %15 {offsets = [0, 6], sizes = [16, 1], strides = [1, 1]} : vector<16x8xf32> to vector<16x1xf32>
    %40 = vector.extract_strided_slice %15 {offsets = [0, 7], sizes = [16, 1], strides = [1, 1]} : vector<16x8xf32> to vector<16x1xf32>
    %41 = vector.broadcast %37 : vector<16x1xf32> to vector<16x1024xf32>
    %42 = arith.cmpf oge, %14, %41 : vector<16x1024xf32>
    %43 = vector.broadcast %39 : vector<16x1xf32> to vector<16x1024xf32>
    %44 = arith.cmpf olt, %14, %43 : vector<16x1024xf32>
    %45 = arith.andi %42, %44 : vector<16x1024xi1>
    %46 = vector.broadcast %38 : vector<16x1xf32> to vector<16x1024xf32>
    %47 = arith.cmpf oge, %11, %46 : vector<16x1024xf32>
    %48 = arith.andi %45, %47 : vector<16x1024xi1>
    %49 = vector.broadcast %40 : vector<16x1xf32> to vector<16x1024xf32>
    %50 = arith.cmpf olt, %11, %49 : vector<16x1024xf32>
    %51 = arith.andi %48, %50 : vector<16x1024xi1>
    %52 = arith.extui %51 : vector<16x1024xi1> to vector<16x1024xi32>
    %53 = arith.sitofp %52 : vector<16x1024xi32> to vector<16x1024xf32>
    %54 = vector.broadcast %7 : vector<16x1xf32> to vector<16x1024xf32>
    %55 = arith.mulf %53, %54 : vector<16x1024xf32>
    %c0_8 = arith.constant 0 : index
    %c0_9 = arith.constant 0 : index
    %56 = vector.load %arg7[%c0_8, %c0_9] : memref<1024x64xf32, #tpu.memory_space<vmem>>, vector<1024x64xf32>
    %cst_10 = arith.constant dense<0.000000e+00> : vector<16x64xf32>
    %57 = tpu.matmul %55, %56, %cst_10 {dimension_numbers = #tpu.dot_dimension_numbers<[1], [0], [0], [1], [0, 0, 1, 1], [], []>} : vector<16x1024xf32>, vector<1024x64xf32>, vector<16x64xf32> -> vector<16x64xf32>
    %58 = arith.addf %36, %57 : vector<16x64xf32>
    %c0_11 = arith.constant 0 : index
    %c0_12 = arith.constant 0 : index
    %59 = vector.load %arg8[%c0_11, %c0_12] : memref<1x64xf32, #tpu.memory_space<vmem>>, vector<1x64xf32>
    %60 = vector.broadcast %59 : vector<1x64xf32> to vector<16x64xf32>
    %61 = arith.addf %58, %60 : vector<16x64xf32>
    %cst_13 = arith.constant 0.000000e+00 : f32
    %62 = vector.broadcast %cst_13 : f32 to vector<16x64xf32>
    %63 = arith.maximumf %61, %62 : vector<16x64xf32>
    %64 = tpu.iota {dimensions = array<i32: 1>} : vector<16x8xi32>
    %c0_14 = arith.constant 0 : index
    %c0_15 = arith.constant 0 : index
    %65 = vector.load %arg11[%c0_14, %c0_15] : memref<16x1xi32, #tpu.memory_space<vmem>>, vector<16x1xi32>
    %66 = vector.broadcast %65 : vector<16x1xi32> to vector<16x8xi32>
    %67 = arith.cmpi eq, %64, %66 : vector<16x8xi32>
    %68 = arith.extui %67 : vector<16x8xi1> to vector<16x8xi32>
    %69 = arith.sitofp %68 : vector<16x8xi32> to vector<16x8xf32>
    %c0_16 = arith.constant 0 : index
    %c0_17 = arith.constant 0 : index
    %70 = vector.load %arg12[%c0_16, %c0_17] : memref<16x1xi32, #tpu.memory_space<vmem>>, vector<16x1xi32>
    %71 = vector.broadcast %70 : vector<16x1xi32> to vector<16x8xi32>
    %72 = arith.cmpi eq, %64, %71 : vector<16x8xi32>
    %73 = arith.extui %72 : vector<16x8xi1> to vector<16x8xi32>
    %74 = arith.sitofp %73 : vector<16x8xi32> to vector<16x8xf32>
    %75 = tpu.iota {dimensions = array<i32: 1>} : vector<8x16xi32>
    %c0_18 = arith.constant 0 : index
    %c0_19 = arith.constant 0 : index
    %76 = vector.load %arg13[%c0_18, %c0_19] : memref<1x16xi32, #tpu.memory_space<vmem>>, vector<1x16xi32>
    %77 = vector.broadcast %76 : vector<1x16xi32> to vector<8x16xi32>
    %78 = arith.cmpi eq, %75, %77 : vector<8x16xi32>
    %79 = arith.extui %78 : vector<8x16xi1> to vector<8x16xi32>
    %80 = arith.sitofp %79 : vector<8x16xi32> to vector<8x16xf32>
    %c0_20 = arith.constant 0 : index
    %c0_21 = arith.constant 0 : index
    %81 = vector.load %arg14[%c0_20, %c0_21] : memref<16x1xf32, #tpu.memory_space<vmem>>, vector<16x1xf32>
    %82 = vector.broadcast %81 : vector<16x1xf32> to vector<16x8xf32>
    %83 = arith.mulf %82, %69 : vector<16x8xf32>
    %cst_22 = arith.constant 1.000000e+00 : f32
    %84 = vector.broadcast %cst_22 : f32 to vector<16x1xf32>
    %85 = arith.subf %84, %81 : vector<16x1xf32>
    %86 = vector.broadcast %85 : vector<16x1xf32> to vector<16x8xf32>
    %87 = arith.mulf %86, %74 : vector<16x8xf32>
    %88 = arith.addf %83, %87 : vector<16x8xf32>
    %89 = vector.broadcast %81 : vector<16x1xf32> to vector<16x8xf32>
    %90 = arith.mulf %89, %74 : vector<16x8xf32>
    %cst_23 = arith.constant 1.000000e+00 : f32
    %91 = vector.broadcast %cst_23 : f32 to vector<16x1xf32>
    %92 = arith.subf %91, %81 : vector<16x1xf32>
    %93 = vector.broadcast %92 : vector<16x1xf32> to vector<16x8xf32>
    %94 = arith.mulf %93, %69 : vector<16x8xf32>
    %95 = arith.addf %90, %94 : vector<16x8xf32>
    %c0_24 = arith.constant 0 : index
    %c0_25 = arith.constant 0 : index
    %96 = vector.load %arg2[%c0_24, %c0_25] : memref<8x32xf32, #tpu.memory_space<vmem>>, vector<8x32xf32>
    %cst_26 = arith.constant dense<0.000000e+00> : vector<16x32xf32>
    %97 = tpu.matmul %88, %96, %cst_26 {dimension_numbers = #tpu.dot_dimension_numbers<[1], [0], [0], [1], [0, 0, 1, 1], [], []>} : vector<16x8xf32>, vector<8x32xf32>, vector<16x32xf32> -> vector<16x32xf32>
    %c0_27 = arith.constant 0 : index
    %c0_28 = arith.constant 0 : index
    %98 = vector.load %arg3[%c0_27, %c0_28] : memref<8x32xf32, #tpu.memory_space<vmem>>, vector<8x32xf32>
    %cst_29 = arith.constant dense<0.000000e+00> : vector<16x32xf32>
    %99 = tpu.matmul %95, %98, %cst_29 {dimension_numbers = #tpu.dot_dimension_numbers<[1], [0], [0], [1], [0, 0, 1, 1], [], []>} : vector<16x8xf32>, vector<8x32xf32>, vector<16x32xf32> -> vector<16x32xf32>
    %100 = arith.mulf %97, %99 : vector<16x32xf32>
    %cst_30 = arith.constant dense<0.000000e+00> : vector<16xf32>
    %101 = vector.multi_reduction <add>, %100, %cst_30 [1] : vector<16x32xf32> to vector<16xf32>
    %102 = vector.shape_cast %101 : vector<16xf32> to vector<16x1xf32>
    %103 = arith.mulf %97, %97 : vector<16x32xf32>
    %cst_31 = arith.constant dense<0.000000e+00> : vector<16xf32>
    %104 = vector.multi_reduction <add>, %103, %cst_31 [1] : vector<16x32xf32> to vector<16xf32>
    %105 = vector.shape_cast %104 : vector<16xf32> to vector<16x1xf32>
    %106 = math.sqrt %105 : vector<16x1xf32>
    %107 = arith.mulf %99, %99 : vector<16x32xf32>
    %cst_32 = arith.constant dense<0.000000e+00> : vector<16xf32>
    %108 = vector.multi_reduction <add>, %107, %cst_32 [1] : vector<16x32xf32> to vector<16xf32>
    %109 = vector.shape_cast %108 : vector<16xf32> to vector<16x1xf32>
    %110 = math.sqrt %109 : vector<16x1xf32>
    %cst_33 = arith.constant 9.99999993E-9 : f32
    %111 = vector.broadcast %cst_33 : f32 to vector<16x1xf32>
    %112 = arith.maximumf %106, %111 : vector<16x1xf32>
    %cst_34 = arith.constant 9.99999993E-9 : f32
    %113 = vector.broadcast %cst_34 : f32 to vector<16x1xf32>
    %114 = arith.maximumf %110, %113 : vector<16x1xf32>
    %115 = arith.mulf %112, %114 : vector<16x1xf32>
    %116 = arith.divf %102, %115 : vector<16x1xf32>
    %c0_35 = arith.constant 0 : index
    %c0_36 = arith.constant 0 : index
    %117 = vector.load %arg15[%c0_35, %c0_36] : memref<16x1xf32, #tpu.memory_space<vmem>>, vector<16x1xf32>
    %cst_37 = arith.constant 5.000000e-01 : f32
    %118 = vector.broadcast %cst_37 : f32 to vector<16x1xf32>
    %119 = arith.cmpf ogt, %117, %118 : vector<16x1xf32>
    %cst_38 = arith.constant 1.000000e+00 : f32
    %120 = vector.broadcast %cst_38 : f32 to vector<16x1xf32>
    %121 = arith.select %119, %116, %120 : vector<16x1xi1>, vector<16x1xf32>
    %122 = vector.broadcast %121 : vector<16x1xf32> to vector<16x64xf32>
    %123 = arith.mulf %63, %122 : vector<16x64xf32>
    %cst_39 = arith.constant dense<0.000000e+00> : vector<64xf32>
    %124 = vector.multi_reduction <add>, %123, %cst_39 [0] : vector<16x64xf32> to vector<64xf32>
    %125 = vector.shape_cast %124 : vector<64xf32> to vector<1x64xf32>
    %cst_40 = arith.constant 6.250000e-02 : f32
    %126 = vector.broadcast %cst_40 : f32 to vector<1x64xf32>
    %127 = arith.mulf %125, %126 : vector<1x64xf32>
    %128 = vector.broadcast %127 : vector<1x64xf32> to vector<16x64xf32>
    %129 = arith.subf %123, %128 : vector<16x64xf32>
    %130 = arith.mulf %129, %129 : vector<16x64xf32>
    %cst_41 = arith.constant dense<0.000000e+00> : vector<64xf32>
    %131 = vector.multi_reduction <add>, %130, %cst_41 [0] : vector<16x64xf32> to vector<64xf32>
    %132 = vector.shape_cast %131 : vector<64xf32> to vector<1x64xf32>
    %cst_42 = arith.constant 6.250000e-02 : f32
    %133 = vector.broadcast %cst_42 : f32 to vector<1x64xf32>
    %134 = arith.mulf %132, %133 : vector<1x64xf32>
    %cst_43 = arith.constant 9.99999974E-6 : f32
    %135 = vector.broadcast %cst_43 : f32 to vector<1x64xf32>
    %136 = arith.addf %134, %135 : vector<1x64xf32>
    %137 = math.rsqrt %136 : vector<1x64xf32>
    %138 = vector.broadcast %137 : vector<1x64xf32> to vector<16x64xf32>
    %139 = arith.mulf %129, %138 : vector<16x64xf32>
    %c0_44 = arith.constant 0 : index
    %c0_45 = arith.constant 0 : index
    %140 = vector.load %arg9[%c0_44, %c0_45] : memref<1x64xf32, #tpu.memory_space<vmem>>, vector<1x64xf32>
    %141 = vector.broadcast %140 : vector<1x64xf32> to vector<16x64xf32>
    %142 = arith.mulf %139, %141 : vector<16x64xf32>
    %c0_46 = arith.constant 0 : index
    %c0_47 = arith.constant 0 : index
    %143 = vector.load %arg10[%c0_46, %c0_47] : memref<1x64xf32, #tpu.memory_space<vmem>>, vector<1x64xf32>
    %144 = vector.broadcast %143 : vector<1x64xf32> to vector<16x64xf32>
    %145 = arith.addf %142, %144 : vector<16x64xf32>
    %c0_48 = arith.constant 0 : index
    %c0_49 = arith.constant 0 : index
    %146 = vector.load %arg1[%c0_48, %c0_49] : memref<8x128xf32, #tpu.memory_space<vmem>>, vector<8x128xf32>
    %c0_50 = arith.constant 0 : index
    %c0_51 = arith.constant 0 : index
    %147 = vector.load %arg18[%c0_50, %c0_51] : memref<128x64xf32, #tpu.memory_space<vmem>>, vector<128x64xf32>
    %cst_52 = arith.constant dense<0.000000e+00> : vector<8x64xf32>
    %148 = tpu.matmul %146, %147, %cst_52 {dimension_numbers = #tpu.dot_dimension_numbers<[1], [0], [0], [1], [0, 0, 1, 1], [], []>} : vector<8x128xf32>, vector<128x64xf32>, vector<8x64xf32> -> vector<8x64xf32>
    %c0_53 = arith.constant 0 : index
    %c0_54 = arith.constant 0 : index
    %149 = vector.load %arg19[%c0_53, %c0_54] : memref<1x64xf32, #tpu.memory_space<vmem>>, vector<1x64xf32>
    %150 = vector.broadcast %149 : vector<1x64xf32> to vector<8x64xf32>
    %151 = arith.addf %148, %150 : vector<8x64xf32>
    %cst_55 = arith.constant 0.000000e+00 : f32
    %152 = vector.broadcast %cst_55 : f32 to vector<8x64xf32>
    %153 = arith.maximumf %151, %152 : vector<8x64xf32>
    %cst_56 = arith.constant dense<0.000000e+00> : vector<16x64xf32>
    %154 = tpu.matmul %69, %153, %cst_56 {dimension_numbers = #tpu.dot_dimension_numbers<[1], [0], [0], [1], [0, 0, 1, 1], [], []>} : vector<16x8xf32>, vector<8x64xf32>, vector<16x64xf32> -> vector<16x64xf32>
    %cst_57 = arith.constant dense<0.000000e+00> : vector<16x64xf32>
    %155 = tpu.matmul %74, %153, %cst_57 {dimension_numbers = #tpu.dot_dimension_numbers<[1], [0], [0], [1], [0, 0, 1, 1], [], []>} : vector<16x8xf32>, vector<8x64xf32>, vector<16x64xf32> -> vector<16x64xf32>
    %c0_58 = arith.constant 0 : index
    %c0_59 = arith.constant 0 : index
    %156 = vector.load %arg20[%c0_58, %c0_59] : memref<64x64xf32, #tpu.memory_space<vmem>>, vector<64x64xf32>
    %cst_60 = arith.constant dense<0.000000e+00> : vector<16x64xf32>
    %157 = tpu.matmul %154, %156, %cst_60 {dimension_numbers = #tpu.dot_dimension_numbers<[1], [0], [0], [1], [0, 0, 1, 1], [], []>} : vector<16x64xf32>, vector<64x64xf32>, vector<16x64xf32> -> vector<16x64xf32>
    %c0_61 = arith.constant 0 : index
    %c0_62 = arith.constant 0 : index
    %158 = vector.load %arg21[%c0_61, %c0_62] : memref<64x64xf32, #tpu.memory_space<vmem>>, vector<64x64xf32>
    %cst_63 = arith.constant dense<0.000000e+00> : vector<16x64xf32>
    %159 = tpu.matmul %155, %158, %cst_63 {dimension_numbers = #tpu.dot_dimension_numbers<[1], [0], [0], [1], [0, 0, 1, 1], [], []>} : vector<16x64xf32>, vector<64x64xf32>, vector<16x64xf32> -> vector<16x64xf32>
    %160 = arith.addf %157, %159 : vector<16x64xf32>
    %c0_64 = arith.constant 0 : index
    %c0_65 = arith.constant 0 : index
    %161 = vector.load %arg22[%c0_64, %c0_65] : memref<64x64xf32, #tpu.memory_space<vmem>>, vector<64x64xf32>
    %cst_66 = arith.constant dense<0.000000e+00> : vector<16x64xf32>
    %162 = tpu.matmul %145, %161, %cst_66 {dimension_numbers = #tpu.dot_dimension_numbers<[1], [0], [0], [1], [0, 0, 1, 1], [], []>} : vector<16x64xf32>, vector<64x64xf32>, vector<16x64xf32> -> vector<16x64xf32>
    %163 = arith.addf %160, %162 : vector<16x64xf32>
    %c0_67 = arith.constant 0 : index
    %c0_68 = arith.constant 0 : index
    %164 = vector.load %arg16[%c0_67, %c0_68] : memref<16x1xf32, #tpu.memory_space<vmem>>, vector<16x1xf32>
    %c0_69 = arith.constant 0 : index
    %c0_70 = arith.constant 0 : index
    %165 = vector.load %arg23[%c0_69, %c0_70] : memref<1x64xf32, #tpu.memory_space<vmem>>, vector<1x64xf32>
    %166 = vector.broadcast %164 : vector<16x1xf32> to vector<16x64xf32>
    %167 = vector.broadcast %165 : vector<1x64xf32> to vector<16x64xf32>
    %168 = arith.mulf %166, %167 : vector<16x64xf32>
    %169 = arith.addf %163, %168 : vector<16x64xf32>
    %c0_71 = arith.constant 0 : index
    %c0_72 = arith.constant 0 : index
    %170 = vector.load %arg17[%c0_71, %c0_72] : memref<16x1xf32, #tpu.memory_space<vmem>>, vector<16x1xf32>
    %c0_73 = arith.constant 0 : index
    %c0_74 = arith.constant 0 : index
    %171 = vector.load %arg24[%c0_73, %c0_74] : memref<1x64xf32, #tpu.memory_space<vmem>>, vector<1x64xf32>
    %172 = vector.broadcast %170 : vector<16x1xf32> to vector<16x64xf32>
    %173 = vector.broadcast %171 : vector<1x64xf32> to vector<16x64xf32>
    %174 = arith.mulf %172, %173 : vector<16x64xf32>
    %175 = arith.addf %169, %174 : vector<16x64xf32>
    %c0_75 = arith.constant 0 : index
    %c0_76 = arith.constant 0 : index
    %176 = vector.load %arg25[%c0_75, %c0_76] : memref<1x64xf32, #tpu.memory_space<vmem>>, vector<1x64xf32>
    %177 = vector.broadcast %176 : vector<1x64xf32> to vector<16x64xf32>
    %178 = arith.addf %175, %177 : vector<16x64xf32>
    %cst_77 = arith.constant 0.000000e+00 : f32
    %179 = vector.broadcast %cst_77 : f32 to vector<16x64xf32>
    %180 = arith.maximumf %178, %179 : vector<16x64xf32>
    %cst_78 = arith.constant dense<0.000000e+00> : vector<8x64xf32>
    %181 = tpu.matmul %80, %180, %cst_78 {dimension_numbers = #tpu.dot_dimension_numbers<[1], [0], [0], [1], [0, 0, 1, 1], [], []>} : vector<8x16xf32>, vector<16x64xf32>, vector<8x64xf32> -> vector<8x64xf32>
    %182 = arith.addf %153, %181 : vector<8x64xf32>
    %c0_79 = arith.constant 0 : index
    %c0_80 = arith.constant 0 : index
    %183 = vector.load %arg26[%c0_79, %c0_80] : memref<64x6xf32, #tpu.memory_space<vmem>>, vector<64x6xf32>
    %cst_81 = arith.constant dense<0.000000e+00> : vector<8x6xf32>
    %184 = tpu.matmul %182, %183, %cst_81 {dimension_numbers = #tpu.dot_dimension_numbers<[1], [0], [0], [1], [0, 0, 1, 1], [], []>} : vector<8x64xf32>, vector<64x6xf32>, vector<8x6xf32> -> vector<8x6xf32>
    %c0_82 = arith.constant 0 : index
    %c0_83 = arith.constant 0 : index
    %185 = vector.load %arg27[%c0_82, %c0_83] : memref<1x6xf32, #tpu.memory_space<vmem>>, vector<1x6xf32>
    %186 = vector.broadcast %185 : vector<1x6xf32> to vector<8x6xf32>
    %187 = arith.addf %184, %186 : vector<8x6xf32>
    %c0_84 = arith.constant 0 : index
    %c0_85 = arith.constant 0 : index
    %188 = vector.load %arg28[%c0_84, %c0_85] : memref<8x6xf32, #tpu.memory_space<vmem>>, vector<8x6xf32>
    tpu.vector_store %arg28[%c0_84, %c0_85], %187 {strides = array<i32>} : memref<8x6xf32, #tpu.memory_space<vmem>>, vector<8x6xf32>,
    return
  }
  func.func @transform_0(%arg0: i32) -> (i32, i32) {
    %c0_i32 = arith.constant 0 : i32
    %c0_i32_0 = arith.constant 0 : i32
    %c0_i32_1 = arith.constant 0 : i32
    return %c0_i32, %c0_i32_0 : i32, i32
  }
  func.func @transform_1(%arg0: i32) -> (i32, i32) {
    %c0_i32 = arith.constant 0 : i32
    %c0_i32_0 = arith.constant 0 : i32
    %c0_i32_1 = arith.constant 0 : i32
    return %c0_i32, %c0_i32_0 : i32, i32
  }
  func.func @transform_2(%arg0: i32) -> (i32, i32) {
    %c0_i32 = arith.constant 0 : i32
    %c0_i32_0 = arith.constant 0 : i32
    %c0_i32_1 = arith.constant 0 : i32
    return %c0_i32, %c0_i32_0 : i32, i32
  }
  func.func @transform_3(%arg0: i32) -> (i32, i32) {
    %c0_i32 = arith.constant 0 : i32
    %c0_i32_0 = arith.constant 0 : i32
    %c0_i32_1 = arith.constant 0 : i32
    return %c0_i32, %c0_i32_0 : i32, i32
  }
  func.func @transform_4(%arg0: i32) -> (i32, i32) {
    %c0_i32 = arith.constant 0 : i32
    %c0_i32_0 = arith.constant 0 : i32
    %c0_i32_1 = arith.constant 0 : i32
    return %c0_i32, %c0_i32_0 : i32, i32
  }
  func.func @transform_5(%arg0: i32) -> (i32, i32) {
    %c0_i32 = arith.constant 0 : i32
    %c0_i32_0 = arith.constant 0 : i32
    %c0_i32_1 = arith.constant 0 : i32
    return %c0_i32, %c0_i32_0 : i32, i32
  }
  func.func @transform_6(%arg0: i32) -> (i32, i32) {
    %c0_i32 = arith.constant 0 : i32
    %c0_i32_0 = arith.constant 0 : i32
    %c0_i32_1 = arith.constant 0 : i32
    return %c0_i32, %c0_i32_0 : i32, i32
  }
  func.func @transform_7(%arg0: i32) -> (i32, i32) {
    %c0_i32 = arith.constant 0 : i32
    %c0_i32_0 = arith.constant 0 : i32
    %c0_i32_1 = arith.constant 0 : i32
    return %c0_i32, %c0_i32_0 : i32, i32
  }
  func.func @transform_8(%arg0: i32) -> (i32, i32) {
    %c0_i32 = arith.constant 0 : i32
    %c0_i32_0 = arith.constant 0 : i32
    %c0_i32_1 = arith.constant 0 : i32
    return %c0_i32, %c0_i32_0 : i32, i32
  }
  func.func @transform_9(%arg0: i32) -> (i32, i32) {
    %c0_i32 = arith.constant 0 : i32
    %c0_i32_0 = arith.constant 0 : i32
    %c0_i32_1 = arith.constant 0 : i32
    return %c0_i32, %c0_i32_0 : i32, i32
  }
  func.func @transform_10(%arg0: i32) -> (i32, i32) {
    %c0_i32 = arith.constant 0 : i32
    %c0_i32_0 = arith.constant 0 : i32
    %c0_i32_1 = arith.constant 0 : i32
    return %c0_i32, %c0_i32_0 : i32, i32
  }
  func.func @transform_11(%arg0: i32) -> (i32, i32) {
    %c0_i32 = arith.constant 0 : i32
    %c0_i32_0 = arith.constant 0 : i32
    %c0_i32_1 = arith.constant 0 : i32
    return %c0_i32, %c0_i32_0 : i32, i32
  }
  func.func @transform_12(%arg0: i32) -> (i32, i32) {
    %c0_i32 = arith.constant 0 : i32
    %c0_i32_0 = arith.constant 0 : i32
    %c0_i32_1 = arith.constant 0 : i32
    return %c0_i32, %c0_i32_0 : i32, i32
  }
  func.func @transform_13(%arg0: i32) -> (i32, i32) {
    %c0_i32 = arith.constant 0 : i32
    %c0_i32_0 = arith.constant 0 : i32
    %c0_i32_1 = arith.constant 0 : i32
    return %c0_i32, %c0_i32_0 : i32, i32
  }
  func.func @transform_14(%arg0: i32) -> (i32, i32) {
    %c0_i32 = arith.constant 0 : i32
    %c0_i32_0 = arith.constant 0 : i32
    %c0_i32_1 = arith.constant 0 : i32
    return %c0_i32, %c0_i32_0 : i32, i32
  }
  func.func @transform_15(%arg0: i32) -> (i32, i32) {
    %c0_i32 = arith.constant 0 : i32
    %c0_i32_0 = arith.constant 0 : i32
    %c0_i32_1 = arith.constant 0 : i32
    return %c0_i32, %c0_i32_0 : i32, i32
  }
  func.func @transform_16(%arg0: i32) -> (i32, i32) {
    %c0_i32 = arith.constant 0 : i32
    %c0_i32_0 = arith.constant 0 : i32
    %c0_i32_1 = arith.constant 0 : i32
    return %c0_i32, %c0_i32_0 : i32, i32
  }
  func.func @transform_17(%arg0: i32) -> (i32, i32) {
    %c0_i32 = arith.constant 0 : i32
    %c0_i32_0 = arith.constant 0 : i32
    %c0_i32_1 = arith.constant 0 : i32
    return %c0_i32, %c0_i32_0 : i32, i32
  }
  func.func @transform_18(%arg0: i32) -> (i32, i32) {
    %c0_i32 = arith.constant 0 : i32
    %c0_i32_0 = arith.constant 0 : i32
    %c0_i32_1 = arith.constant 0 : i32
    return %c0_i32, %c0_i32_0 : i32, i32
  }
  func.func @transform_19(%arg0: i32) -> (i32, i32) {
    %c0_i32 = arith.constant 0 : i32
    %c0_i32_0 = arith.constant 0 : i32
    %c0_i32_1 = arith.constant 0 : i32
    return %c0_i32, %c0_i32_0 : i32, i32
  }
  func.func @transform_20(%arg0: i32) -> (i32, i32) {
    %c0_i32 = arith.constant 0 : i32
    %c0_i32_0 = arith.constant 0 : i32
    %c0_i32_1 = arith.constant 0 : i32
    return %c0_i32, %c0_i32_0 : i32, i32
  }
  func.func @transform_21(%arg0: i32) -> (i32, i32) {
    %c0_i32 = arith.constant 0 : i32
    %c0_i32_0 = arith.constant 0 : i32
    %c0_i32_1 = arith.constant 0 : i32
    return %c0_i32, %c0_i32_0 : i32, i32
  }
  func.func @transform_22(%arg0: i32) -> (i32, i32) {
    %c0_i32 = arith.constant 0 : i32
    %c0_i32_0 = arith.constant 0 : i32
    %c0_i32_1 = arith.constant 0 : i32
    return %c0_i32, %c0_i32_0 : i32, i32
  }
  func.func @transform_23(%arg0: i32) -> (i32, i32) {
    %c0_i32 = arith.constant 0 : i32
    %c0_i32_0 = arith.constant 0 : i32
    %c0_i32_1 = arith.constant 0 : i32
    return %c0_i32, %c0_i32_0 : i32, i32
  }
  func.func @transform_24(%arg0: i32) -> (i32, i32) {
    %c0_i32 = arith.constant 0 : i32
    %c0_i32_0 = arith.constant 0 : i32
    %c0_i32_1 = arith.constant 0 : i32
    return %c0_i32, %c0_i32_0 : i32, i32
  }
  func.func @transform_25(%arg0: i32) -> (i32, i32) {
    %c0_i32 = arith.constant 0 : i32
    %c0_i32_0 = arith.constant 0 : i32
    %c0_i32_1 = arith.constant 0 : i32
    return %c0_i32, %c0_i32_0 : i32, i32
  }
  func.func @transform_26(%arg0: i32) -> (i32, i32) {
    %c0_i32 = arith.constant 0 : i32
    %c0_i32_0 = arith.constant 0 : i32
    %c0_i32_1 = arith.constant 0 : i32
    return %c0_i32, %c0_i32_0 : i32, i32
  }
  func.func @transform_27(%arg0: i32) -> (i32, i32) {
    %c0_i32 = arith.constant 0 : i32
    %c0_i32_0 = arith.constant 0 : i32
    %c0_i32_1 = arith.constant 0 : i32
    return %c0_i32, %c0_i32_0 : i32, i32
  }
}

</mosaic_0001>

<llo_original>
// kernel: my_model_forward.1
$region0: #{my_model_forward.1}
  #allocation0 [shape = 'u32[]', space=smem, size = 0x4, offset = 0x4, fixed_abs, tag = 'smem constant byte address 0x4 - core index']
  #allocation1 [shape = 'u32[144,128]{1,0:T(1,128)}', space=vmem, size = 0x12000, scoped, tag = 'internal scratch']
  %s0 = inlined_call_operand.vmem [shape: f32[8,128], index: 0, kind: input, shape index: {}]
  %s1 = inlined_call_operand.vmem [shape: f32[8,32], index: 1, kind: input, shape index: {}]
  %s2 = inlined_call_operand.vmem [shape: f32[8,32], index: 2, kind: input, shape index: {}]
  %s3 = inlined_call_operand.vmem [shape: f32[16,8], index: 3, kind: input, shape index: {}]
  %s4 = inlined_call_operand.vmem [shape: f32[16,1], index: 4, kind: input, shape index: {}]
  %s5 = inlined_call_operand.vmem [shape: f32[1024,64], index: 5, kind: input, shape index: {}]
  %s6 = inlined_call_operand.vmem [shape: f32[1024,64], index: 6, kind: input, shape index: {}]
  %s7 = inlined_call_operand.vmem [shape: f32[1,64], index: 7, kind: input, shape index: {}]
  %s8 = inlined_call_operand.vmem [shape: f32[1,64], index: 8, kind: input, shape index: {}]
  %s9 = inlined_call_operand.vmem [shape: f32[1,64], index: 9, kind: input, shape index: {}]
  %s10 = inlined_call_operand.vmem [shape: s32[16,1], index: 10, kind: input, shape index: {}]
  %s11 = inlined_call_operand.vmem [shape: s32[16,1], index: 11, kind: input, shape index: {}]
  %s12 = inlined_call_operand.vmem [shape: s32[1,16], index: 12, kind: input, shape index: {}]
  %s13 = inlined_call_operand.vmem [shape: f32[16,1], index: 13, kind: input, shape index: {}]
  %s14 = inlined_call_operand.vmem [shape: f32[16,1], index: 14, kind: input, shape index: {}]
  %s15 = inlined_call_operand.vmem [shape: f32[16,1], index: 15, kind: input, shape index: {}]
  %s16 = inlined_call_operand.vmem [shape: f32[16,1], index: 16, kind: input, shape index: {}]
  %s17 = inlined_call_operand.vmem [shape: f32[128,64], index: 17, kind: input, shape index: {}]
  %s18 = inlined_call_operand.vmem [shape: f32[1,64], index: 18, kind: input, shape index: {}]
  %s19 = inlined_call_operand.vmem [shape: f32[64,64], index: 19, kind: input, shape index: {}]
  %s20 = inlined_call_operand.vmem [shape: f32[64,64], index: 20, kind: input, shape index: {}]
  %s21 = inlined_call_operand.vmem [shape: f32[64,64], index: 21, kind: input, shape index: {}]
  %s22 = inlined_call_operand.vmem [shape: f32[1,64], index: 22, kind: input, shape index: {}]
  %s23 = inlined_call_operand.vmem [shape: f32[1,64], index: 23, kind: input, shape index: {}]
  %s24 = inlined_call_operand.vmem [shape: f32[1,64], index: 24, kind: input, shape index: {}]
  %s25 = inlined_call_operand.vmem [shape: f32[64,6], index: 25, kind: input, shape index: {}]
  %s26 = inlined_call_operand.vmem [shape: f32[1,6], index: 26, kind: input, shape index: {}]
  %s27 = inlined_call_operand.vmem [shape: f32[8,6], index: 27, kind: output, shape index: {}]
  %s28 = sld [smem:[#allocation0]]
  $region118: #{my_model_forward.1} parent=0
    _
  %s30 = ssub.s32 1, %s28
  %s31 = scalar_select 0, %s30, %s28
  // Predicated region
  $region2: #{my_model_forward.1} parent=0 // pred_check
    _
  $region3: #{my_model_forward.1} parent=0 // pred_check_branch
    %33 = sbr.rel (0) target = $region5
  $region4: #{my_model_forward.1} parent=0 // pred_region
    _
  $region5: #{my_model_forward.1} parent=0 // pred_fallthru
    _
  // Predicated region
  $region6: #{my_model_forward.1} parent=0 // pred_check
    _
  $region7: #{my_model_forward.1} parent=0 // pred_check_branch
    %35 = sbr.rel (0) target = $region9
  $region8: #{my_model_forward.1} parent=0 // pred_region
    _
  $region9: #{my_model_forward.1} parent=0 // pred_fallthru
    _
  // Predicated region
  $region10: #{my_model_forward.1} parent=0 // pred_check
    _
  $region11: #{my_model_forward.1} parent=0 // pred_check_branch
    %37 = sbr.rel (0) target = $region13
  $region12: #{my_model_forward.1} parent=0 // pred_region
    _
  $region13: #{my_model_forward.1} parent=0 // pred_fallthru
    _
  // Predicated region
  $region14: #{my_model_forward.1} parent=0 // pred_check
    _
  $region15: #{my_model_forward.1} parent=0 // pred_check_branch
    %39 = sbr.rel (0) target = $region17
  $region16: #{my_model_forward.1} parent=0 // pred_region
    _
  $region17: #{my_model_forward.1} parent=0 // pred_fallthru
    _
  // Predicated region
  $region18: #{my_model_forward.1} parent=0 // pred_check
    _
  $region19: #{my_model_forward.1} parent=0 // pred_check_branch
    %41 = sbr.rel (0) target = $region21
  $region20: #{my_model_forward.1} parent=0 // pred_region
    _
  $region21: #{my_model_forward.1} parent=0 // pred_fallthru
    _
  // Predicated region
  $region22: #{my_model_forward.1} parent=0 // pred_check
    _
  $region23: #{my_model_forward.1} parent=0 // pred_check_branch
    %43 = sbr.rel (0) target = $region25
  $region24: #{my_model_forward.1} parent=0 // pred_region
    _
  $region25: #{my_model_forward.1} parent=0 // pred_fallthru
    _
  // Predicated region
  $region26: #{my_model_forward.1} parent=0 // pred_check
    _
  $region27: #{my_model_forward.1} parent=0 // pred_check_branch
    %45 = sbr.rel (0) target = $region29
  $region28: #{my_model_forward.1} parent=0 // pred_region
    _
  $region29: #{my_model_forward.1} parent=0 // pred_fallthru
    _
  // Predicated region
  $region30: #{my_model_forward.1} parent=0 // pred_check
    _
  $region31: #{my_model_forward.1} parent=0 // pred_check_branch
    %47 = sbr.rel (0) target = $region33
  $region32: #{my_model_forward.1} parent=0 // pred_region
    _
  $region33: #{my_model_forward.1} parent=0 // pred_fallthru
    _
  // Predicated region
  $region34: #{my_model_forward.1} parent=0 // pred_check
    _
  $region35: #{my_model_forward.1} parent=0 // pred_check_branch
    %49 = sbr.rel (0) target = $region37
  $region36: #{my_model_forward.1} parent=0 // pred_region
    _
  $region37: #{my_model_forward.1} parent=0 // pred_fallthru
    _
  // Predicated region
  $region38: #{my_model_forward.1} parent=0 // pred_check
    _
  $region39: #{my_model_forward.1} parent=0 // pred_check_branch
    %51 = sbr.rel (0) target = $region41
  $region40: #{my_model_forward.1} parent=0 // pred_region
    _
  $region41: #{my_model_forward.1} parent=0 // pred_fallthru
    _
  // Predicated region
  $region42: #{my_model_forward.1} parent=0 // pred_check
    _
  $region43: #{my_model_forward.1} parent=0 // pred_check_branch
    %53 = sbr.rel (0) target = $region45
  $region44: #{my_model_forward.1} parent=0 // pred_region
    _
  $region45: #{my_model_forward.1} parent=0 // pred_fallthru
    _
  // Predicated region
  $region46: #{my_model_forward.1} parent=0 // pred_check
    _
  $region47: #{my_model_forward.1} parent=0 // pred_check_branch
    %55 = sbr.rel (0) target = $region49
  $region48: #{my_model_forward.1} parent=0 // pred_region
    _
  $region49: #{my_model_forward.1} parent=0 // pred_fallthru
    _
  // Predicated region
  $region50: #{my_model_forward.1} parent=0 // pred_check
    _
  $region51: #{my_model_forward.1} parent=0 // pred_check_branch
    %57 = sbr.rel (0) target = $region53
  $region52: #{my_model_forward.1} parent=0 // pred_region
    _
  $region53: #{my_model_forward.1} parent=0 // pred_fallthru
    _
  // Predicated region
  $region54: #{my_model_forward.1} parent=0 // pred_check
    _
  $region55: #{my_model_forward.1} parent=0 // pred_check_branch
    %59 = sbr.rel (0) target = $region57
  $region56: #{my_model_forward.1} parent=0 // pred_region
    _
  $region57: #{my_model_forward.1} parent=0 // pred_fallthru
    _
  // Predicated region
  $region58: #{my_model_forward.1} parent=0 // pred_check
    _
  $region59: #{my_model_forward.1} parent=0 // pred_check_branch
    %61 = sbr.rel (0) target = $region61
  $region60: #{my_model_forward.1} parent=0 // pred_region
    _
  $region61: #{my_model_forward.1} parent=0 // pred_fallthru
    _
  // Predicated region
  $region62: #{my_model_forward.1} parent=0 // pred_check
    _
  $region63: #{my_model_forward.1} parent=0 // pred_check_branch
    %63 = sbr.rel (0) target = $region65
  $region64: #{my_model_forward.1} parent=0 // pred_region
    _
  $region65: #{my_model_forward.1} parent=0 // pred_fallthru
    _
  // Predicated region
  $region66: #{my_model_forward.1} parent=0 // pred_check
    _
  $region67: #{my_model_forward.1} parent=0 // pred_check_branch
    %65 = sbr.rel (0) target = $region69
  $region68: #{my_model_forward.1} parent=0 // pred_region
    _
  $region69: #{my_model_forward.1} parent=0 // pred_fallthru
    _
  // Predicated region
  $region70: #{my_model_forward.1} parent=0 // pred_check
    _
  $region71: #{my_model_forward.1} parent=0 // pred_check_branch
    %67 = sbr.rel (0) target = $region73
  $region72: #{my_model_forward.1} parent=0 // pred_region
    _
  $region73: #{my_model_forward.1} parent=0 // pred_fallthru
    _
  // Predicated region
  $region74: #{my_model_forward.1} parent=0 // pred_check
    _
  $region75: #{my_model_forward.1} parent=0 // pred_check_branch
    %69 = sbr.rel (0) target = $region77
  $region76: #{my_model_forward.1} parent=0 // pred_region
    _
  $region77: #{my_model_forward.1} parent=0 // pred_fallthru
    _
  // Predicated region
  $region78: #{my_model_forward.1} parent=0 // pred_check
    _
  $region79: #{my_model_forward.1} parent=0 // pred_check_branch
    %71 = sbr.rel (0) target = $region81
  $region80: #{my_model_forward.1} parent=0 // pred_region
    _
  $region81: #{my_model_forward.1} parent=0 // pred_fallthru
    _
  // Predicated region
  $region82: #{my_model_forward.1} parent=0 // pred_check
    _
  $region83: #{my_model_forward.1} parent=0 // pred_check_branch
    %73 = sbr.rel (0) target = $region85
  $region84: #{my_model_forward.1} parent=0 // pred_region
    _
  $region85: #{my_model_forward.1} parent=0 // pred_fallthru
    _
  // Predicated region
  $region86: #{my_model_forward.1} parent=0 // pred_check
    _
  $region87: #{my_model_forward.1} parent=0 // pred_check_branch
    %75 = sbr.rel (0) target = $region89
  $region88: #{my_model_forward.1} parent=0 // pred_region
    _
  $region89: #{my_model_forward.1} parent=0 // pred_fallthru
    _
  // Predicated region
  $region90: #{my_model_forward.1} parent=0 // pred_check
    _
  $region91: #{my_model_forward.1} parent=0 // pred_check_branch
    %77 = sbr.rel (0) target = $region93
  $region92: #{my_model_forward.1} parent=0 // pred_region
    _
  $region93: #{my_model_forward.1} parent=0 // pred_fallthru
    _
  // Predicated region
  $region94: #{my_model_forward.1} parent=0 // pred_check
    _
  $region95: #{my_model_forward.1} parent=0 // pred_check_branch
    %79 = sbr.rel (0) target = $region97
  $region96: #{my_model_forward.1} parent=0 // pred_region
    _
  $region97: #{my_model_forward.1} parent=0 // pred_fallthru
    _
  // Predicated region
  $region98: #{my_model_forward.1} parent=0 // pred_check
    _
  $region99: #{my_model_forward.1} parent=0 // pred_check_branch
    %81 = sbr.rel (0) target = $region101
  $region100: #{my_model_forward.1} parent=0 // pred_region
    _
  $region101: #{my_model_forward.1} parent=0 // pred_fallthru
    _
  // Predicated region
  $region102: #{my_model_forward.1} parent=0 // pred_check
    _
  $region103: #{my_model_forward.1} parent=0 // pred_check_branch
    %83 = sbr.rel (0) target = $region105
  $region104: #{my_model_forward.1} parent=0 // pred_region
    _
  $region105: #{my_model_forward.1} parent=0 // pred_fallthru
    _
  // Predicated region
  $region106: #{my_model_forward.1} parent=0 // pred_check
    _
  $region107: #{my_model_forward.1} parent=0 // pred_check_branch
    %85 = sbr.rel (0) target = $region109
  $region108: #{my_model_forward.1} parent=0 // pred_region
    _
  $region109: #{my_model_forward.1} parent=0 // pred_fallthru
    _
  %v86 = vld [vmem:[%s4] sm:$0xff]
  %v87 = vld [vmem:[%s4 + $0x8] sm:$0xff]
  %v88 = vsub.f32 0.0, %v86
  %v89 = vsub.f32 0.0, %v87
  %v90 = vmul.f32 %v88, 10.0
  %v91 = vmul.f32 %v89, 10.0
  %v92 = vmul.f32 %v90, 1.442695
  %v93 = vpow.pop %v92
  %v94 = vmul.f32 %v91, 1.442695
  %v95 = vpow.pop %v94
  %v96 = vmul.f32 %v93, 255.0
  %v97 = vmul.f32 %v95, 255.0
  %v98 = vlaneseq
  %v99 = vand.u32 %v98, 127
  %v100 = vadd.s32 %v99, 128
  %v101 = vadd.s32 %v99, 256
  %v102 = vadd.s32 %v99, 384
  %v103 = vadd.s32 %v99, 512
  %v104 = vadd.s32 %v99, 640
  %v105 = vadd.s32 %v99, 768
  %v106 = vadd.s32 %v99, 896
  %v107 = vshra.s32 %v99, 5
  %v108 = vshra.s32 %v100, 5
  %v109 = vshra.s32 %v101, 5
  %v110 = vshra.s32 %v102, 5
  %v111 = vshra.s32 %v103, 5
  %v112 = vshra.s32 %v104, 5
  %v113 = vshra.s32 %v105, 5
  %v114 = vshra.s32 %v106, 5
  %v115 = vcvt.s32.f32 %v107
  %v116 = vcvt.s32.f32 %v108
  %v117 = vcvt.s32.f32 %v109
  %v118 = vcvt.s32.f32 %v110
  %v119 = vcvt.s32.f32 %v111
  %v120 = vcvt.s32.f32 %v112
  %v121 = vcvt.s32.f32 %v113
  %v122 = vcvt.s32.f32 %v114
  %v123 = vand.u32 %v99, 31
  %v124 = vand.u32 %v100, 31
  %v125 = vand.u32 %v101, 31
  %v126 = vand.u32 %v102, 31
  %v127 = vand.u32 %v103, 31
  %v128 = vand.u32 %v104, 31
  %v129 = vand.u32 %v105, 31
  %v130 = vand.u32 %v106, 31
  %v131 = vcvt.s32.f32 %v123
  %v132 = vcvt.s32.f32 %v124
  %v133 = vcvt.s32.f32 %v125
  %v134 = vcvt.s32.f32 %v126
  %v135 = vcvt.s32.f32 %v127
  %v136 = vcvt.s32.f32 %v128
  %v137 = vcvt.s32.f32 %v129
  %v138 = vcvt.s32.f32 %v130
  %v139 = vld [vmem:[%s3] sm:$0xff]
  %v140 = vld [vmem:[%s3 + $0x8] sm:$0xff]
  %142 = vset.pattern.permute.xlu0 0
  %143 = vperm.xlu0 %142, %v139
  %v144 = vpop.permute.xlu0 %143
  %147 = vset.pattern.permute.xlu0 0
  %148 = vperm.xlu0 %147, %v140
  %v149 = vpop.permute.xlu0 %148
  %vm151 = vcmp.ge.f32.partialorder %v131, %v144
  %vm152 = vcmp.ge.f32.partialorder %v132, %v144
  %vm153 = vcmp.ge.f32.partialorder %v133, %v144
  %vm154 = vcmp.ge.f32.partialorder %v134, %v144
  %vm155 = vcmp.ge.f32.partialorder %v135, %v144
  %vm156 = vcmp.ge.f32.partialorder %v136, %v144
  %vm157 = vcmp.ge.f32.partialorder %v137, %v144
  %vm158 = vcmp.ge.f32.partialorder %v138, %v144
  %vm159 = vcmp.ge.f32.partialorder %v131, %v149
  %vm160 = vcmp.ge.f32.partialorder %v132, %v149
  %vm161 = vcmp.ge.f32.partialorder %v133, %v149
  %vm162 = vcmp.ge.f32.partialorder %v134, %v149
  %vm163 = vcmp.ge.f32.partialorder %v135, %v149
  %vm164 = vcmp.ge.f32.partialorder %v136, %v149
  %vm165 = vcmp.ge.f32.partialorder %v137, %v149
  %vm166 = vcmp.ge.f32.partialorder %v138, %v149
  %167 = vset.pattern.permute.xlu0 2
  %168 = vperm.xlu0 %167, %v139
  %v169 = vpop.permute.xlu0 %168
  %171 = vset.pattern.permute.xlu0 2
  %172 = vperm.xlu0 %171, %v140
  %v173 = vpop.permute.xlu0 %172
  %vm175 = vcmp.lt.f32.partialorder %v131, %v169
  %vm176 = vcmp.lt.f32.partialorder %v132, %v169
  %vm177 = vcmp.lt.f32.partialorder %v133, %v169
  %vm178 = vcmp.lt.f32.partialorder %v134, %v169
  %vm179 = vcmp.lt.f32.partialorder %v135, %v169
  %vm180 = vcmp.lt.f32.partialorder %v136, %v169
  %vm181 = vcmp.lt.f32.partialorder %v137, %v169
  %vm182 = vcmp.lt.f32.partialorder %v138, %v169
  %vm183 = vcmp.lt.f32.partialorder %v131, %v173
  %vm184 = vcmp.lt.f32.partialorder %v132, %v173
  %vm185 = vcmp.lt.f32.partialorder %v133, %v173
  %vm186 = vcmp.lt.f32.partialorder %v134, %v173
  %vm187 = vcmp.lt.f32.partialorder %v135, %v173
  %vm188 = vcmp.lt.f32.partialorder %v136, %v173
  %vm189 = vcmp.lt.f32.partialorder %v137, %v173
  %vm190 = vcmp.lt.f32.partialorder %v138, %v173
  %vm191 = vmand %vm151, %vm175
  %vm192 = vmand %vm152, %vm176
  %vm193 = vmand %vm153, %vm177
  %vm194 = vmand %vm154, %vm178
  %vm195 = vmand %vm155, %vm179
  %vm196 = vmand %vm156, %vm180
  %vm197 = vmand %vm157, %vm181
  %vm198 = vmand %vm158, %vm182
  %vm199 = vmand %vm159, %vm183
  %vm200 = vmand %vm160, %vm184
  %vm201 = vmand %vm161, %vm185
  %vm202 = vmand %vm162, %vm186
  %vm203 = vmand %vm163, %vm187
  %vm204 = vmand %vm164, %vm188
  %vm205 = vmand %vm165, %vm189
  %vm206 = vmand %vm166, %vm190
  %207 = vset.pattern.permute.xlu0 1
  %208 = vperm.xlu0 %207, %v139
  %v209 = vpop.permute.xlu0 %208
  %211 = vset.pattern.permute.xlu0 1
  %212 = vperm.xlu0 %211, %v140
  %v213 = vpop.permute.xlu0 %212
  %vm215 = vcmp.ge.f32.partialorder %v115, %v209
  %vm216 = vcmp.ge.f32.partialorder %v116, %v209
  %vm217 = vcmp.ge.f32.partialorder %v117, %v209
  %vm218 = vcmp.ge.f32.partialorder %v118, %v209
  %vm219 = vcmp.ge.f32.partialorder %v119, %v209
  %vm220 = vcmp.ge.f32.partialorder %v120, %v209
  %vm221 = vcmp.ge.f32.partialorder %v121, %v209
  %vm222 = vcmp.ge.f32.partialorder %v122, %v209
  %vm223 = vcmp.ge.f32.partialorder %v115, %v213
  %vm224 = vcmp.ge.f32.partialorder %v116, %v213
  %vm225 = vcmp.ge.f32.partialorder %v117, %v213
  %vm226 = vcmp.ge.f32.partialorder %v118, %v213
  %vm227 = vcmp.ge.f32.partialorder %v119, %v213
  %vm228 = vcmp.ge.f32.partialorder %v120, %v213
  %vm229 = vcmp.ge.f32.partialorder %v121, %v213
  %vm230 = vcmp.ge.f32.partialorder %v122, %v213
  %vm231 = vmand %vm191, %vm215
  %vm232 = vmand %vm192, %vm216
  %vm233 = vmand %vm193, %vm217
  %vm234 = vmand %vm194, %vm218
  %vm235 = vmand %vm195, %vm219
  %vm236 = vmand %vm196, %vm220
  %vm237 = vmand %vm197, %vm221
  %vm238 = vmand %vm198, %vm222
  %vm239 = vmand %vm199, %vm223
  %vm240 = vmand %vm200, %vm224
  %vm241 = vmand %vm201, %vm225
  %vm242 = vmand %vm202, %vm226
  %vm243 = vmand %vm203, %vm227
  %vm244 = vmand %vm204, %vm228
  %vm245 = vmand %vm205, %vm229
  %vm246 = vmand %vm206, %vm230
  %247 = vset.pattern.permute.xlu0 3
  %248 = vperm.xlu0 %247, %v139
  %v249 = vpop.permute.xlu0 %248
  %251 = vset.pattern.permute.xlu0 3
  %252 = vperm.xlu0 %251, %v140
  %v253 = vpop.permute.xlu0 %252
  %vm255 = vcmp.lt.f32.partialorder %v115, %v249
  %vm256 = vcmp.lt.f32.partialorder %v116, %v249
  %vm257 = vcmp.lt.f32.partialorder %v117, %v249
  %vm258 = vcmp.lt.f32.partialorder %v118, %v249
  %vm259 = vcmp.lt.f32.partialorder %v119, %v249
  %vm260 = vcmp.lt.f32.partialorder %v120, %v249
  %vm261 = vcmp.lt.f32.partialorder %v121, %v249
  %vm262 = vcmp.lt.f32.partialorder %v122, %v249
  %vm263 = vcmp.lt.f32.partialorder %v115, %v253
  %vm264 = vcmp.lt.f32.partialorder %v116, %v253
  %vm265 = vcmp.lt.f32.partialorder %v117, %v253
  %vm266 = vcmp.lt.f32.partialorder %v118, %v253
  %vm267 = vcmp.lt.f32.partialorder %v119, %v253
  %vm268 = vcmp.lt.f32.partialorder %v120, %v253
  %vm269 = vcmp.lt.f32.partialorder %v121, %v253
  %vm270 = vcmp.lt.f32.partialorder %v122, %v253
  %vm271 = vmand %vm231, %vm255
  %vm272 = vmand %vm232, %vm256
  %vm273 = vmand %vm233, %vm257
  %vm274 = vmand %vm234, %vm258
  %vm275 = vmand %vm235, %vm259
  %vm276 = vmand %vm236, %vm260
  %vm277 = vmand %vm237, %vm261
  %vm278 = vmand %vm238, %vm262
  %vm279 = vmand %vm239, %vm263
  %vm280 = vmand %vm240, %vm264
  %vm281 = vmand %vm241, %vm265
  %vm282 = vmand %vm242, %vm266
  %vm283 = vmand %vm243, %vm267
  %vm284 = vmand %vm244, %vm268
  %vm285 = vmand %vm245, %vm269
  %vm286 = vmand %vm246, %vm270
  %v287 = vsel %vm271, 1, 0
  %v288 = vsel %vm272, 1, 0
  %v289 = vsel %vm273, 1, 0
  %v290 = vsel %vm274, 1, 0
  %v291 = vsel %vm275, 1, 0
  %v292 = vsel %vm276, 1, 0
  %v293 = vsel %vm277, 1, 0
  %v294 = vsel %vm278, 1, 0
  %v295 = vsel %vm279, 1, 0
  %v296 = vsel %vm280, 1, 0
  %v297 = vsel %vm281, 1, 0
  %v298 = vsel %vm282, 1, 0
  %v299 = vsel %vm283, 1, 0
  %v300 = vsel %vm284, 1, 0
  %v301 = vsel %vm285, 1, 0
  %v302 = vsel %vm286, 1, 0
  %v303 = vcvt.s32.f32 %v287
  %v304 = vcvt.s32.f32 %v288
  %v305 = vcvt.s32.f32 %v289
  %v306 = vcvt.s32.f32 %v290
  %v307 = vcvt.s32.f32 %v291
  %v308 = vcvt.s32.f32 %v292
  %v309 = vcvt.s32.f32 %v293
  %v310 = vcvt.s32.f32 %v294
  %v311 = vcvt.s32.f32 %v295
  %v312 = vcvt.s32.f32 %v296
  %v313 = vcvt.s32.f32 %v297
  %v314 = vcvt.s32.f32 %v298
  %v315 = vcvt.s32.f32 %v299
  %v316 = vcvt.s32.f32 %v300
  %v317 = vcvt.s32.f32 %v301
  %v318 = vcvt.s32.f32 %v302
  %320 = vset.pattern.permute.xlu0 0
  %321 = vperm.xlu0 %320, %v96
  %v322 = vpop.permute.xlu0 %321
  %325 = vset.pattern.permute.xlu0 0
  %326 = vperm.xlu0 %325, %v97
  %v327 = vpop.permute.xlu0 %326
  %v329 = vmul.f32 %v303, %v322
  %v330 = vmul.f32 %v304, %v322
  %v331 = vmul.f32 %v305, %v322
  %v332 = vmul.f32 %v306, %v322
  %v333 = vmul.f32 %v307, %v322
  %v334 = vmul.f32 %v308, %v322
  %v335 = vmul.f32 %v309, %v322
  %v336 = vmul.f32 %v310, %v322
  %v337 = vmul.f32 %v311, %v327
  %v338 = vmul.f32 %v312, %v327
  %v339 = vmul.f32 %v313, %v327
  %v340 = vmul.f32 %v314, %v327
  %v341 = vmul.f32 %v315, %v327
  %v342 = vmul.f32 %v316, %v327
  %v343 = vmul.f32 %v317, %v327
  %v344 = vmul.f32 %v318, %v327
  %v345 = vld [vmem:[%s5] sm:$0xff]
  %v346 = vld [vmem:[%s5 + $0x8] sm:$0xff]
  %v347 = vld [vmem:[%s5 + $0x10] sm:$0xff]
  %v348 = vld [vmem:[%s5 + $0x18] sm:$0xff]
  %v349 = vld [vmem:[%s5 + $0x20] sm:$0xff]
  %v350 = vld [vmem:[%s5 + $0x28] sm:$0xff]
  %v351 = vld [vmem:[%s5 + $0x30] sm:$0xff]
  %v352 = vld [vmem:[%s5 + $0x38] sm:$0xff]
  %v353 = vld [vmem:[%s5 + $0x40] sm:$0xff]
  %v354 = vld [vmem:[%s5 + $0x48] sm:$0xff]
  %v355 = vld [vmem:[%s5 + $0x50] sm:$0xff]
  %v356 = vld [vmem:[%s5 + $0x58] sm:$0xff]
  %v357 = vld [vmem:[%s5 + $0x60] sm:$0xff]
  %v358 = vld [vmem:[%s5 + $0x68] sm:$0xff]
  %v359 = vld [vmem:[%s5 + $0x70] sm:$0xff]
  %v360 = vld [vmem:[%s5 + $0x78] sm:$0xff]
  %v361 = vld [vmem:[%s5 + $0x80] sm:$0xff]
  %v362 = vld [vmem:[%s5 + $0x88] sm:$0xff]
  %v363 = vld [vmem:[%s5 + $0x90] sm:$0xff]
  %v364 = vld [vmem:[%s5 + $0x98] sm:$0xff]
  %v365 = vld [vmem:[%s5 + $0xa0] sm:$0xff]
  %v366 = vld [vmem:[%s5 + $0xa8] sm:$0xff]
  %v367 = vld [vmem:[%s5 + $0xb0] sm:$0xff]
  %v368 = vld [vmem:[%s5 + $0xb8] sm:$0xff]
  %v369 = vld [vmem:[%s5 + $0xc0] sm:$0xff]
  %v370 = vld [vmem:[%s5 + $0xc8] sm:$0xff]
  %v371 = vld [vmem:[%s5 + $0xd0] sm:$0xff]
  %v372 = vld [vmem:[%s5 + $0xd8] sm:$0xff]
  %v373 = vld [vmem:[%s5 + $0xe0] sm:$0xff]
  %v374 = vld [vmem:[%s5 + $0xe8] sm:$0xff]
  %v375 = vld [vmem:[%s5 + $0xf0] sm:$0xff]
  %v376 = vld [vmem:[%s5 + $0xf8] sm:$0xff]
  %v377 = vld [vmem:[%s5 + $0x100] sm:$0xff]
  %v378 = vld [vmem:[%s5 + $0x108] sm:$0xff]
  %v379 = vld [vmem:[%s5 + $0x110] sm:$0xff]
  %v380 = vld [vmem:[%s5 + $0x118] sm:$0xff]
  %v381 = vld [vmem:[%s5 + $0x120] sm:$0xff]
  %v382 = vld [vmem:[%s5 + $0x128] sm:$0xff]
  %v383 = vld [vmem:[%s5 + $0x130] sm:$0xff]
  %v384 = vld [vmem:[%s5 + $0x138] sm:$0xff]
  %v385 = vld [vmem:[%s5 + $0x140] sm:$0xff]
  %v386 = vld [vmem:[%s5 + $0x148] sm:$0xff]
  %v387 = vld [vmem:[%s5 + $0x150] sm:$0xff]
  %v388 = vld [vmem:[%s5 + $0x158] sm:$0xff]
  %v389 = vld [vmem:[%s5 + $0x160] sm:$0xff]
  %v390 = vld [vmem:[%s5 + $0x168] sm:$0xff]
  %v391 = vld [vmem:[%s5 + $0x170] sm:$0xff]
  %v392 = vld [vmem:[%s5 + $0x178] sm:$0xff]
  %v393 = vld [vmem:[%s5 + $0x180] sm:$0xff]
  %v394 = vld [vmem:[%s5 + $0x188] sm:$0xff]
  %v395 = vld [vmem:[%s5 + $0x190] sm:$0xff]
  %v396 = vld [vmem:[%s5 + $0x198] sm:$0xff]
  %v397 = vld [vmem:[%s5 + $0x1a0] sm:$0xff]
  %v398 = vld [vmem:[%s5 + $0x1a8] sm:$0xff]
  %v399 = vld [vmem:[%s5 + $0x1b0] sm:$0xff]
  %v400 = vld [vmem:[%s5 + $0x1b8] sm:$0xff]
  %v401 = vld [vmem:[%s5 + $0x1c0] sm:$0xff]
  %v402 = vld [vmem:[%s5 + $0x1c8] sm:$0xff]
  %v403 = vld [vmem:[%s5 + $0x1d0] sm:$0xff]
  %v404 = vld [vmem:[%s5 + $0x1d8] sm:$0xff]
  %v405 = vld [vmem:[%s5 + $0x1e0] sm:$0xff]
  %v406 = vld [vmem:[%s5 + $0x1e8] sm:$0xff]
  %v407 = vld [vmem:[%s5 + $0x1f0] sm:$0xff]
  %v408 = vld [vmem:[%s5 + $0x1f8] sm:$0xff]
  %v409 = vld [vmem:[%s5 + $0x200] sm:$0xff]
  %v410 = vld [vmem:[%s5 + $0x208] sm:$0xff]
  %v411 = vld [vmem:[%s5 + $0x210] sm:$0xff]
  %v412 = vld [vmem:[%s5 + $0x218] sm:$0xff]
  %v413 = vld [vmem:[%s5 + $0x220] sm:$0xff]
  %v414 = vld [vmem:[%s5 + $0x228] sm:$0xff]
  %v415 = vld [vmem:[%s5 + $0x230] sm:$0xff]
  %v416 = vld [vmem:[%s5 + $0x238] sm:$0xff]
  %v417 = vld [vmem:[%s5 + $0x240] sm:$0xff]
  %v418 = vld [vmem:[%s5 + $0x248] sm:$0xff]
  %v419 = vld [vmem:[%s5 + $0x250] sm:$0xff]
  %v420 = vld [vmem:[%s5 + $0x258] sm:$0xff]
  %v421 = vld [vmem:[%s5 + $0x260] sm:$0xff]
  %v422 = vld [vmem:[%s5 + $0x268] sm:$0xff]
  %v423 = vld [vmem:[%s5 + $0x270] sm:$0xff]
  %v424 = vld [vmem:[%s5 + $0x278] sm:$0xff]
  %v425 = vld [vmem:[%s5 + $0x280] sm:$0xff]
  %v426 = vld [vmem:[%s5 + $0x288] sm:$0xff]
  %v427 = vld [vmem:[%s5 + $0x290] sm:$0xff]
  %v428 = vld [vmem:[%s5 + $0x298] sm:$0xff]
  %v429 = vld [vmem:[%s5 + $0x2a0] sm:$0xff]
  %v430 = vld [vmem:[%s5 + $0x2a8] sm:$0xff]
  %v431 = vld [vmem:[%s5 + $0x2b0] sm:$0xff]
  %v432 = vld [vmem:[%s5 + $0x2b8] sm:$0xff]
  %v433 = vld [vmem:[%s5 + $0x2c0] sm:$0xff]
  %v434 = vld [vmem:[%s5 + $0x2c8] sm:$0xff]
  %v435 = vld [vmem:[%s5 + $0x2d0] sm:$0xff]
  %v436 = vld [vmem:[%s5 + $0x2d8] sm:$0xff]
  %v437 = vld [vmem:[%s5 + $0x2e0] sm:$0xff]
  %v438 = vld [vmem:[%s5 + $0x2e8] sm:$0xff]
  %v439 = vld [vmem:[%s5 + $0x2f0] sm:$0xff]
  %v440 = vld [vmem:[%s5 + $0x2f8] sm:$0xff]
  %v441 = vld [vmem:[%s5 + $0x300] sm:$0xff]
  %v442 = vld [vmem:[%s5 + $0x308] sm:$0xff]
  %v443 = vld [vmem:[%s5 + $0x310] sm:$0xff]
  %v444 = vld [vmem:[%s5 + $0x318] sm:$0xff]
  %v445 = vld [vmem:[%s5 + $0x320] sm:$0xff]
  %v446 = vld [vmem:[%s5 + $0x328] sm:$0xff]
  %v447 = vld [vmem:[%s5 + $0x330] sm:$0xff]
  %v448 = vld [vmem:[%s5 + $0x338] sm:$0xff]
  %v449 = vld [vmem:[%s5 + $0x340] sm:$0xff]
  %v450 = vld [vmem:[%s5 + $0x348] sm:$0xff]
  %v451 = vld [vmem:[%s5 + $0x350] sm:$0xff]
  %v452 = vld [vmem:[%s5 + $0x358] sm:$0xff]
  %v453 = vld [vmem:[%s5 + $0x360] sm:$0xff]
  %v454 = vld [vmem:[%s5 + $0x368] sm:$0xff]
  %v455 = vld [vmem:[%s5 + $0x370] sm:$0xff]
  %v456 = vld [vmem:[%s5 + $0x378] sm:$0xff]
  %v457 = vld [vmem:[%s5 + $0x380] sm:$0xff]
  %v458 = vld [vmem:[%s5 + $0x388] sm:$0xff]
  %v459 = vld [vmem:[%s5 + $0x390] sm:$0xff]
  %v460 = vld [vmem:[%s5 + $0x398] sm:$0xff]
  %v461 = vld [vmem:[%s5 + $0x3a0] sm:$0xff]
  %v462 = vld [vmem:[%s5 + $0x3a8] sm:$0xff]
  %v463 = vld [vmem:[%s5 + $0x3b0] sm:$0xff]
  %v464 = vld [vmem:[%s5 + $0x3b8] sm:$0xff]
  %v465 = vld [vmem:[%s5 + $0x3c0] sm:$0xff]
  %v466 = vld [vmem:[%s5 + $0x3c8] sm:$0xff]
  %v467 = vld [vmem:[%s5 + $0x3d0] sm:$0xff]
  %v468 = vld [vmem:[%s5 + $0x3d8] sm:$0xff]
  %v469 = vld [vmem:[%s5 + $0x3e0] sm:$0xff]
  %v470 = vld [vmem:[%s5 + $0x3e8] sm:$0xff]
  %v471 = vld [vmem:[%s5 + $0x3f0] sm:$0xff]
  %v472 = vld [vmem:[%s5 + $0x3f8] sm:$0xff]
  %473 = vset.pattern.permute.xlu0 4
  %474 = vperm.xlu0 %473, %v139
  %v475 = vpop.permute.xlu0 %474
  %477 = vset.pattern.permute.xlu0 4
  %478 = vperm.xlu0 %477, %v140
  %v479 = vpop.permute.xlu0 %478
  %vm481 = vcmp.ge.f32.partialorder %v131, %v475
  %vm482 = vcmp.ge.f32.partialorder %v132, %v475
  %vm483 = vcmp.ge.f32.partialorder %v133, %v475
  %vm484 = vcmp.ge.f32.partialorder %v134, %v475
  %vm485 = vcmp.ge.f32.partialorder %v135, %v475
  %vm486 = vcmp.ge.f32.partialorder %v136, %v475
  %vm487 = vcmp.ge.f32.partialorder %v137, %v475
  %vm488 = vcmp.ge.f32.partialorder %v138, %v475
  %vm489 = vcmp.ge.f32.partialorder %v131, %v479
  %vm490 = vcmp.ge.f32.partialorder %v132, %v479
  %vm491 = vcmp.ge.f32.partialorder %v133, %v479
  %vm492 = vcmp.ge.f32.partialorder %v134, %v479
  %vm493 = vcmp.ge.f32.partialorder %v135, %v479
  %vm494 = vcmp.ge.f32.partialorder %v136, %v479
  %vm495 = vcmp.ge.f32.partialorder %v137, %v479
  %vm496 = vcmp.ge.f32.partialorder %v138, %v479
  %497 = vset.pattern.permute.xlu0 6
  %498 = vperm.xlu0 %497, %v139
  %v499 = vpop.permute.xlu0 %498
  %501 = vset.pattern.permute.xlu0 6
  %502 = vperm.xlu0 %501, %v140
  %v503 = vpop.permute.xlu0 %502
  %vm505 = vcmp.lt.f32.partialorder %v131, %v499
  %vm506 = vcmp.lt.f32.partialorder %v132, %v499
  %vm507 = vcmp.lt.f32.partialorder %v133, %v499
  %vm508 = vcmp.lt.f32.partialorder %v134, %v499
  %vm509 = vcmp.lt.f32.partialorder %v135, %v499
  %vm510 = vcmp.lt.f32.partialorder %v136, %v499
  %vm511 = vcmp.lt.f32.partialorder %v137, %v499
  %vm512 = vcmp.lt.f32.partialorder %v138, %v499
  %vm513 = vcmp.lt.f32.partialorder %v131, %v503
  %vm514 = vcmp.lt.f32.partialorder %v132, %v503
  %vm515 = vcmp.lt.f32.partialorder %v133, %v503
  %vm516 = vcmp.lt.f32.partialorder %v134, %v503
  %vm517 = vcmp.lt.f32.partialorder %v135, %v503
  %vm518 = vcmp.lt.f32.partialorder %v136, %v503
  %vm519 = vcmp.lt.f32.partialorder %v137, %v503
  %vm520 = vcmp.lt.f32.partialorder %v138, %v503
  %vm521 = vmand %vm481, %vm505
  %vm522 = vmand %vm482, %vm506
  %vm523 = vmand %vm483, %vm507
  %vm524 = vmand %vm484, %vm508
  %vm525 = vmand %vm485, %vm509
  %vm526 = vmand %vm486, %vm510
  %vm527 = vmand %vm487, %vm511
  %vm528 = vmand %vm488, %vm512
  %vm529 = vmand %vm489, %vm513
  %vm530 = vmand %vm490, %vm514
  %vm531 = vmand %vm491, %vm515
  %vm532 = vmand %vm492, %vm516
  %vm533 = vmand %vm493, %vm517
  %vm534 = vmand %vm494, %vm518
  %vm535 = vmand %vm495, %vm519
  %vm536 = vmand %vm496, %vm520
  %537 = vset.pattern.permute.xlu0 5
  %538 = vperm.xlu0 %537, %v139
  %v539 = vpop.permute.xlu0 %538
  %541 = vset.pattern.permute.xlu0 5
  %542 = vperm.xlu0 %541, %v140
  %v543 = vpop.permute.xlu0 %542
  %vm545 = vcmp.ge.f32.partialorder %v115, %v539
  %vm546 = vcmp.ge.f32.partialorder %v116, %v539
  %vm547 = vcmp.ge.f32.partialorder %v117, %v539
  %vm548 = vcmp.ge.f32.partialorder %v118, %v539
  %vm549 = vcmp.ge.f32.partialorder %v119, %v539
  %vm550 = vcmp.ge.f32.partialorder %v120, %v539
  %vm551 = vcmp.ge.f32.partialorder %v121, %v539
  %vm552 = vcmp.ge.f32.partialorder %v122, %v539
  %vm553 = vcmp.ge.f32.partialorder %v115, %v543
  %vm554 = vcmp.ge.f32.partialorder %v116, %v543
  %vm555 = vcmp.ge.f32.partialorder %v117, %v543
  %vm556 = vcmp.ge.f32.partialorder %v118, %v543
  %vm557 = vcmp.ge.f32.partialorder %v119, %v543
  %vm558 = vcmp.ge.f32.partialorder %v120, %v543
  %vm559 = vcmp.ge.f32.partialorder %v121, %v543
  %vm560 = vcmp.ge.f32.partialorder %v122, %v543
  %vm561 = vmand %vm521, %vm545
  %vm562 = vmand %vm522, %vm546
  %vm563 = vmand %vm523, %vm547
  %vm564 = vmand %vm524, %vm548
  %vm565 = vmand %vm525, %vm549
  %vm566 = vmand %vm526, %vm550
  %vm567 = vmand %vm527, %vm551
  %vm568 = vmand %vm528, %vm552
  %vm569 = vmand %vm529, %vm553
  %vm570 = vmand %vm530, %vm554
  %vm571 = vmand %vm531, %vm555
  %vm572 = vmand %vm532, %vm556
  %vm573 = vmand %vm533, %vm557
  %vm574 = vmand %vm534, %vm558
  %vm575 = vmand %vm535, %vm559
  %vm576 = vmand %vm536, %vm560
  %577 = vset.pattern.permute.xlu0 7
  %578 = vperm.xlu0 %577, %v139
  %v579 = vpop.permute.xlu0 %578
  %581 = vset.pattern.permute.xlu0 7
  %582 = vperm.xlu0 %581, %v140
  %v583 = vpop.permute.xlu0 %582
  %vm585 = vcmp.lt.f32.partialorder %v115, %v579
  %vm586 = vcmp.lt.f32.partialorder %v116, %v579
  %vm587 = vcmp.lt.f32.partialorder %v117, %v579
  %vm588 = vcmp.lt.f32.partialorder %v118, %v579
  %vm589 = vcmp.lt.f32.partialorder %v119, %v579
  %vm590 = vcmp.lt.f32.partialorder %v120, %v579
  %vm591 = vcmp.lt.f32.partialorder %v121, %v579
  %vm592 = vcmp.lt.f32.partialorder %v122, %v579
  %vm593 = vcmp.lt.f32.partialorder %v115, %v583
  %vm594 = vcmp.lt.f32.partialorder %v116, %v583
  %vm595 = vcmp.lt.f32.partialorder %v117, %v583
  %vm596 = vcmp.lt.f32.partialorder %v118, %v583
  %vm597 = vcmp.lt.f32.partialorder %v119, %v583
  %vm598 = vcmp.lt.f32.partialorder %v120, %v583
  %vm599 = vcmp.lt.f32.partialorder %v121, %v583
  %vm600 = vcmp.lt.f32.partialorder %v122, %v583
  %vm601 = vmand %vm561, %vm585
  %vm602 = vmand %vm562, %vm586
  %vm603 = vmand %vm563, %vm587
  %vm604 = vmand %vm564, %vm588
  %vm605 = vmand %vm565, %vm589
  %vm606 = vmand %vm566, %vm590
  %vm607 = vmand %vm567, %vm591
  %vm608 = vmand %vm568, %vm592
  %vm609 = vmand %vm569, %vm593
  %vm610 = vmand %vm570, %vm594
  %vm611 = vmand %vm571, %vm595
  %vm612 = vmand %vm572, %vm596
  %vm613 = vmand %vm573, %vm597
  %vm614 = vmand %vm574, %vm598
  %vm615 = vmand %vm575, %vm599
  %vm616 = vmand %vm576, %vm600
  %v617 = vsel %vm601, 1, 0
  %v618 = vsel %vm602, 1, 0
  %v619 = vsel %vm603, 1, 0
  %v620 = vsel %vm604, 1, 0
  %v621 = vsel %vm605, 1, 0
  %v622 = vsel %vm606, 1, 0
  %v623 = vsel %vm607, 1, 0
  %v624 = vsel %vm608, 1, 0
  %v625 = vsel %vm609, 1, 0
  %v626 = vsel %vm610, 1, 0
  %v627 = vsel %vm611, 1, 0
  %v628 = vsel %vm612, 1, 0
  %v629 = vsel %vm613, 1, 0
  %v630 = vsel %vm614, 1, 0
  %v631 = vsel %vm615, 1, 0
  %v632 = vsel %vm616, 1, 0
  %v633 = vcvt.s32.f32 %v617
  %v634 = vcvt.s32.f32 %v618
  %v635 = vcvt.s32.f32 %v619
  %v636 = vcvt.s32.f32 %v620
  %v637 = vcvt.s32.f32 %v621
  %v638 = vcvt.s32.f32 %v622
  %v639 = vcvt.s32.f32 %v623
  %v640 = vcvt.s32.f32 %v624
  %v641 = vcvt.s32.f32 %v625
  %v642 = vcvt.s32.f32 %v626
  %v643 = vcvt.s32.f32 %v627
  %v644 = vcvt.s32.f32 %v628
  %v645 = vcvt.s32.f32 %v629
  %v646 = vcvt.s32.f32 %v630
  %v647 = vcvt.s32.f32 %v631
  %v648 = vcvt.s32.f32 %v632
  %v649 = vmul.f32 %v633, %v322
  %v650 = vmul.f32 %v634, %v322
  %v651 = vmul.f32 %v635, %v322
  %v652 = vmul.f32 %v636, %v322
  %v653 = vmul.f32 %v637, %v322
  %v654 = vmul.f32 %v638, %v322
  %v655 = vmul.f32 %v639, %v322
  %v656 = vmul.f32 %v640, %v322
  %v657 = vmul.f32 %v641, %v327
  %v658 = vmul.f32 %v642, %v327
  %v659 = vmul.f32 %v643, %v327
  %v660 = vmul.f32 %v644, %v327
  %v661 = vmul.f32 %v645, %v327
  %v662 = vmul.f32 %v646, %v327
  %v663 = vmul.f32 %v647, %v327
  %v664 = vmul.f32 %v648, %v327
  %v665 = vld [vmem:[%s6] sm:$0xff]
  %v666 = vld [vmem:[%s6 + $0x8] sm:$0xff]
  %v667 = vld [vmem:[%s6 + $0x10] sm:$0xff]
  %v668 = vld [vmem:[%s6 + $0x18] sm:$0xff]
  %v669 = vld [vmem:[%s6 + $0x20] sm:$0xff]
  %v670 = vld [vmem:[%s6 + $0x28] sm:$0xff]
  %v671 = vld [vmem:[%s6 + $0x30] sm:$0xff]
  %v672 = vld [vmem:[%s6 + $0x38] sm:$0xff]
  %v673 = vld [vmem:[%s6 + $0x40] sm:$0xff]
  %v674 = vld [vmem:[%s6 + $0x48] sm:$0xff]
  %v675 = vld [vmem:[%s6 + $0x50] sm:$0xff]
  %v676 = vld [vmem:[%s6 + $0x58] sm:$0xff]
  %v677 = vld [vmem:[%s6 + $0x60] sm:$0xff]
  %v678 = vld [vmem:[%s6 + $0x68] sm:$0xff]
  %v679 = vld [vmem:[%s6 + $0x70] sm:$0xff]
  %v680 = vld [vmem:[%s6 + $0x78] sm:$0xff]
  %v681 = vld [vmem:[%s6 + $0x80] sm:$0xff]
  %v682 = vld [vmem:[%s6 + $0x88] sm:$0xff]
  %v683 = vld [vmem:[%s6 + $0x90] sm:$0xff]
  %v684 = vld [vmem:[%s6 + $0x98] sm:$0xff]
  %v685 = vld [vmem:[%s6 + $0xa0] sm:$0xff]
  %v686 = vld [vmem:[%s6 + $0xa8] sm:$0xff]
  %v687 = vld [vmem:[%s6 + $0xb0] sm:$0xff]
  %v688 = vld [vmem:[%s6 + $0xb8] sm:$0xff]
  %v689 = vld [vmem:[%s6 + $0xc0] sm:$0xff]
  %v690 = vld [vmem:[%s6 + $0xc8] sm:$0xff]
  %v691 = vld [vmem:[%s6 + $0xd0] sm:$0xff]
  %v692 = vld [vmem:[%s6 + $0xd8] sm:$0xff]
  %v693 = vld [vmem:[%s6 + $0xe0] sm:$0xff]
  %v694 = vld [vmem:[%s6 + $0xe8] sm:$0xff]
  %v695 = vld [vmem:[%s6 + $0xf0] sm:$0xff]
  %v696 = vld [vmem:[%s6 + $0xf8] sm:$0xff]
  %v697 = vld [vmem:[%s6 + $0x100] sm:$0xff]
  %v698 = vld [vmem:[%s6 + $0x108] sm:$0xff]
  %v699 = vld [vmem:[%s6 + $0x110] sm:$0xff]
  %v700 = vld [vmem:[%s6 + $0x118] sm:$0xff]
  %v701 = vld [vmem:[%s6 + $0x120] sm:$0xff]
  %v702 = vld [vmem:[%s6 + $0x128] sm:$0xff]
  %v703 = vld [vmem:[%s6 + $0x130] sm:$0xff]
  %v704 = vld [vmem:[%s6 + $0x138] sm:$0xff]
  %v705 = vld [vmem:[%s6 + $0x140] sm:$0xff]
  %v706 = vld [vmem:[%s6 + $0x148] sm:$0xff]
  %v707 = vld [vmem:[%s6 + $0x150] sm:$0xff]
  %v708 = vld [vmem:[%s6 + $0x158] sm:$0xff]
  %v709 = vld [vmem:[%s6 + $0x160] sm:$0xff]
  %v710 = vld [vmem:[%s6 + $0x168] sm:$0xff]
  %v711 = vld [vmem:[%s6 + $0x170] sm:$0xff]
  %v712 = vld [vmem:[%s6 + $0x178] sm:$0xff]
  %v713 = vld [vmem:[%s6 + $0x180] sm:$0xff]
  %v714 = vld [vmem:[%s6 + $0x188] sm:$0xff]
  %v715 = vld [vmem:[%s6 + $0x190] sm:$0xff]
  %v716 = vld [vmem:[%s6 + $0x198] sm:$0xff]
  %v717 = vld [vmem:[%s6 + $0x1a0] sm:$0xff]
  %v718 = vld [vmem:[%s6 + $0x1a8] sm:$0xff]
  %v719 = vld [vmem:[%s6 + $0x1b0] sm:$0xff]
  %v720 = vld [vmem:[%s6 + $0x1b8] sm:$0xff]
  %v721 = vld [vmem:[%s6 + $0x1c0] sm:$0xff]
  %v722 = vld [vmem:[%s6 + $0x1c8] sm:$0xff]
  %v723 = vld [vmem:[%s6 + $0x1d0] sm:$0xff]
  %v724 = vld [vmem:[%s6 + $0x1d8] sm:$0xff]
  %v725 = vld [vmem:[%s6 + $0x1e0] sm:$0xff]
  %v726 = vld [vmem:[%s6 + $0x1e8] sm:$0xff]
  %v727 = vld [vmem:[%s6 + $0x1f0] sm:$0xff]
  %v728 = vld [vmem:[%s6 + $0x1f8] sm:$0xff]
  %v729 = vld [vmem:[%s6 + $0x200] sm:$0xff]
  %v730 = vld [vmem:[%s6 + $0x208] sm:$0xff]
  %v731 = vld [vmem:[%s6 + $0x210] sm:$0xff]
  %v732 = vld [vmem:[%s6 + $0x218] sm:$0xff]
  %v733 = vld [vmem:[%s6 + $0x220] sm:$0xff]
  %v734 = vld [vmem:[%s6 + $0x228] sm:$0xff]
  %v735 = vld [vmem:[%s6 + $0x230] sm:$0xff]
  %v736 = vld [vmem:[%s6 + $0x238] sm:$0xff]
  %v737 = vld [vmem:[%s6 + $0x240] sm:$0xff]
  %v738 = vld [vmem:[%s6 + $0x248] sm:$0xff]
  %v739 = vld [vmem:[%s6 + $0x250] sm:$0xff]
  %v740 = vld [vmem:[%s6 + $0x258] sm:$0xff]
  %v741 = vld [vmem:[%s6 + $0x260] sm:$0xff]
  %v742 = vld [vmem:[%s6 + $0x268] sm:$0xff]
  %v743 = vld [vmem:[%s6 + $0x270] sm:$0xff]
  %v744 = vld [vmem:[%s6 + $0x278] sm:$0xff]
  %v745 = vld [vmem:[%s6 + $0x280] sm:$0xff]
  %v746 = vld [vmem:[%s6 + $0x288] sm:$0xff]
  %v747 = vld [vmem:[%s6 + $0x290] sm:$0xff]
  %v748 = vld [vmem:[%s6 + $0x298] sm:$0xff]
  %v749 = vld [vmem:[%s6 + $0x2a0] sm:$0xff]
  %v750 = vld [vmem:[%s6 + $0x2a8] sm:$0xff]
  %v751 = vld [vmem:[%s6 + $0x2b0] sm:$0xff]
  %v752 = vld [vmem:[%s6 + $0x2b8] sm:$0xff]
  %v753 = vld [vmem:[%s6 + $0x2c0] sm:$0xff]
  %v754 = vld [vmem:[%s6 + $0x2c8] sm:$0xff]
  %v755 = vld [vmem:[%s6 + $0x2d0] sm:$0xff]
  %v756 = vld [vmem:[%s6 + $0x2d8] sm:$0xff]
  %v757 = vld [vmem:[%s6 + $0x2e0] sm:$0xff]
  %v758 = vld [vmem:[%s6 + $0x2e8] sm:$0xff]
  %v759 = vld [vmem:[%s6 + $0x2f0] sm:$0xff]
  %v760 = vld [vmem:[%s6 + $0x2f8] sm:$0xff]
  %v761 = vld [vmem:[%s6 + $0x300] sm:$0xff]
  %v762 = vld [vmem:[%s6 + $0x308] sm:$0xff]
  %v763 = vld [vmem:[%s6 + $0x310] sm:$0xff]
  %v764 = vld [vmem:[%s6 + $0x318] sm:$0xff]
  %v765 = vld [vmem:[%s6 + $0x320] sm:$0xff]
  %v766 = vld [vmem:[%s6 + $0x328] sm:$0xff]
  %v767 = vld [vmem:[%s6 + $0x330] sm:$0xff]
  %v768 = vld [vmem:[%s6 + $0x338] sm:$0xff]
  %v769 = vld [vmem:[%s6 + $0x340] sm:$0xff]
  %v770 = vld [vmem:[%s6 + $0x348] sm:$0xff]
  %v771 = vld [vmem:[%s6 + $0x350] sm:$0xff]
  %v772 = vld [vmem:[%s6 + $0x358] sm:$0xff]
  %v773 = vld [vmem:[%s6 + $0x360] sm:$0xff]
  %v774 = vld [vmem:[%s6 + $0x368] sm:$0xff]
  %v775 = vld [vmem:[%s6 + $0x370] sm:$0xff]
  %v776 = vld [vmem:[%s6 + $0x378] sm:$0xff]
  %v777 = vld [vmem:[%s6 + $0x380] sm:$0xff]
  %v778 = vld [vmem:[%s6 + $0x388] sm:$0xff]
  %v779 = vld [vmem:[%s6 + $0x390] sm:$0xff]
  %v780 = vld [vmem:[%s6 + $0x398] sm:$0xff]
  %v781 = vld [vmem:[%s6 + $0x3a0] sm:$0xff]
  %v782 = vld [vmem:[%s6 + $0x3a8] sm:$0xff]
  %v783 = vld [vmem:[%s6 + $0x3b0] sm:$0xff]
  %v784 = vld [vmem:[%s6 + $0x3b8] sm:$0xff]
  %v785 = vld [vmem:[%s6 + $0x3c0] sm:$0xff]
  %v786 = vld [vmem:[%s6 + $0x3c8] sm:$0xff]
  %v787 = vld [vmem:[%s6 + $0x3d0] sm:$0xff]
  %v788 = vld [vmem:[%s6 + $0x3d8] sm:$0xff]
  %v789 = vld [vmem:[%s6 + $0x3e0] sm:$0xff]
  %v790 = vld [vmem:[%s6 + $0x3e8] sm:$0xff]
  %v791 = vld [vmem:[%s6 + $0x3f0] sm:$0xff]
  %v792 = vld [vmem:[%s6 + $0x3f8] sm:$0xff]
  %793 = vmatprep.subr.mxu0 0.0
  %794 = vmatpush1.msra.mxu0 %v680
  %795 = vmatprep.subr.mxu0 0.0
  %796 = vmatpush1.msra.mxu0 %v679
  %797 = vmatprep.subr.mxu0 0.0
  %798 = vmatpush1.msra.mxu0 %v678
  %799 = vmatprep.subr.mxu0 0.0
  %800 = vmatpush1.msra.mxu0 %v677
  %801 = vmatprep.subr.mxu0 0.0
  %802 = vmatpush1.msra.mxu0 %v676
  %803 = vmatprep.subr.mxu0 0.0
  %804 = vmatpush1.msra.mxu0 %v675
  %805 = vmatprep.subr.mxu0 0.0
  %806 = vmatpush1.msra.mxu0 %v674
  %807 = vmatprep.subr.mxu0 0.0
  %808 = vmatpush1.msra.mxu0 %v673
  %809 = vmatprep.subr.mxu0 0.0
  %810 = vmatpush1.msra.mxu0 %v672
  %811 = vmatprep.subr.mxu0 0.0
  %812 = vmatpush1.msra.mxu0 %v671
  %813 = vmatprep.subr.mxu0 0.0
  %814 = vmatpush1.msra.mxu0 %v670
  %815 = vmatprep.subr.mxu0 0.0
  %816 = vmatpush1.msra.mxu0 %v669
  %817 = vmatprep.subr.mxu0 0.0
  %818 = vmatpush1.msra.mxu0 %v668
  %819 = vmatprep.subr.mxu0 0.0
  %820 = vmatpush1.msra.mxu0 %v667
  %821 = vmatprep.subr.mxu0 0.0
  %822 = vmatpush1.msra.mxu0 %v666
  %823 = vmatprep.subr.mxu0 0.0
  %824 = vmatpush1.msra.mxu0 %v665
  %825 = vmatprep.subr.mxu0 0.0
  %826 = vmatpush2.msra.mxu0 %v696
  %827 = vmatprep.subr.mxu0 0.0
  %828 = vmatpush2.msra.mxu0 %v695
  %829 = vmatprep.subr.mxu0 0.0
  %830 = vmatpush2.msra.mxu0 %v694
  %831 = vmatprep.subr.mxu0 0.0
  %832 = vmatpush2.msra.mxu0 %v693
  %833 = vmatprep.subr.mxu0 0.0
  %834 = vmatpush2.msra.mxu0 %v692
  %835 = vmatprep.subr.mxu0 0.0
  %836 = vmatpush2.msra.mxu0 %v691
  %837 = vmatprep.subr.mxu0 0.0
  %838 = vmatpush2.msra.mxu0 %v690
  %839 = vmatprep.subr.mxu0 0.0
  %840 = vmatpush2.msra.mxu0 %v689
  %841 = vmatprep.subr.mxu0 0.0
  %842 = vmatpush2.msra.mxu0 %v688
  %843 = vmatprep.subr.mxu0 0.0
  %844 = vmatpush2.msra.mxu0 %v687
  %845 = vmatprep.subr.mxu0 0.0
  %846 = vmatpush2.msra.mxu0 %v686
  %847 = vmatprep.subr.mxu0 0.0
  %848 = vmatpush2.msra.mxu0 %v685
  %849 = vmatprep.subr.mxu0 0.0
  %850 = vmatpush2.msra.mxu0 %v684
  %851 = vmatprep.subr.mxu0 0.0
  %852 = vmatpush2.msra.mxu0 %v683
  %853 = vmatprep.subr.mxu0 0.0
  %854 = vmatpush2.msra.mxu0 %v682
  %855 = vmatprep.subr.mxu0 0.0
  %856 = vmatpush2.msra.mxu0 %v681
  %857 = vmatprep.mubr.f32.mxu0 %v650
  %858 = vmatmul.mubr.f32.gmra.mxu0 %v649
  %v859 = vpop.f32.mrf.mxu0
  %v860 = vadd.f32 0.0, %v859
  %v861 = vpop.f32.mrf.mxu0
  %862 = vmatprep.mubr.f32.mxu0 %v658
  %863 = vmatmul.mubr.f32.gmra.mxu0 %v657
  %v864 = vpop.f32.mrf.mxu0
  %v865 = vadd.f32 0.0, %v864
  %v866 = vpop.f32.mrf.mxu0
  %867 = vdwg.mxu0
  %868 = vmatprep.subr.mxu0 0.0
  %869 = vmatpush1.msra.mxu0 %v712
  %870 = vmatprep.subr.mxu0 0.0
  %871 = vmatpush1.msra.mxu0 %v711
  %872 = vmatprep.subr.mxu0 0.0
  %873 = vmatpush1.msra.mxu0 %v710
  %874 = vmatprep.subr.mxu0 0.0
  %875 = vmatpush1.msra.mxu0 %v709
  %876 = vmatprep.subr.mxu0 0.0
  %877 = vmatpush1.msra.mxu0 %v708
  %878 = vmatprep.subr.mxu0 0.0
  %879 = vmatpush1.msra.mxu0 %v707
  %880 = vmatprep.subr.mxu0 0.0
  %881 = vmatpush1.msra.mxu0 %v706
  %882 = vmatprep.subr.mxu0 0.0
  %883 = vmatpush1.msra.mxu0 %v705
  %884 = vmatprep.subr.mxu0 0.0
  %885 = vmatpush1.msra.mxu0 %v704
  %886 = vmatprep.subr.mxu0 0.0
  %887 = vmatpush1.msra.mxu0 %v703
  %888 = vmatprep.subr.mxu0 0.0
  %889 = vmatpush1.msra.mxu0 %v702
  %890 = vmatprep.subr.mxu0 0.0
  %891 = vmatpush1.msra.mxu0 %v701
  %892 = vmatprep.subr.mxu0 0.0
  %893 = vmatpush1.msra.mxu0 %v700
  %894 = vmatprep.subr.mxu0 0.0
  %895 = vmatpush1.msra.mxu0 %v699
  %896 = vmatprep.subr.mxu0 0.0
  %897 = vmatpush1.msra.mxu0 %v698
  %898 = vmatprep.subr.mxu0 0.0
  %899 = vmatpush1.msra.mxu0 %v697
  %900 = vmatprep.subr.mxu0 0.0
  %901 = vmatpush2.msra.mxu0 %v728
  %902 = vmatprep.subr.mxu0 0.0
  %903 = vmatpush2.msra.mxu0 %v727
  %904 = vmatprep.subr.mxu0 0.0
  %905 = vmatpush2.msra.mxu0 %v726
  %906 = vmatprep.subr.mxu0 0.0
  %907 = vmatpush2.msra.mxu0 %v725
  %908 = vmatprep.subr.mxu0 0.0
  %909 = vmatpush2.msra.mxu0 %v724
  %910 = vmatprep.subr.mxu0 0.0
  %911 = vmatpush2.msra.mxu0 %v723
  %912 = vmatprep.subr.mxu0 0.0
  %913 = vmatpush2.msra.mxu0 %v722
  %914 = vmatprep.subr.mxu0 0.0
  %915 = vmatpush2.msra.mxu0 %v721
  %916 = vmatprep.subr.mxu0 0.0
  %917 = vmatpush2.msra.mxu0 %v720
  %918 = vmatprep.subr.mxu0 0.0
  %919 = vmatpush2.msra.mxu0 %v719
  %920 = vmatprep.subr.mxu0 0.0
  %921 = vmatpush2.msra.mxu0 %v718
  %922 = vmatprep.subr.mxu0 0.0
  %923 = vmatpush2.msra.mxu0 %v717
  %924 = vmatprep.subr.mxu0 0.0
  %925 = vmatpush2.msra.mxu0 %v716
  %926 = vmatprep.subr.mxu0 0.0
  %927 = vmatpush2.msra.mxu0 %v715
  %928 = vmatprep.subr.mxu0 0.0
  %929 = vmatpush2.msra.mxu0 %v714
  %930 = vmatprep.subr.mxu0 0.0
  %931 = vmatpush2.msra.mxu0 %v713
  %932 = vmatprep.mubr.f32.mxu0 %v652
  %933 = vmatmul.mubr.f32.gmra.mxu0 %v651
  %v934 = vpop.f32.mrf.mxu0
  %v935 = vadd.f32 %v860, %v934
  %v936 = vpop.f32.mrf.mxu0
  %937 = vmatprep.mubr.f32.mxu0 %v660
  %938 = vmatmul.mubr.f32.gmra.mxu0 %v659
  %v939 = vpop.f32.mrf.mxu0
  %v940 = vadd.f32 %v865, %v939
  %v941 = vpop.f32.mrf.mxu0
  %942 = vdwg.mxu0
  %943 = vmatprep.subr.mxu0 0.0
  %944 = vmatpush1.msra.mxu0 %v744
  %945 = vmatprep.subr.mxu0 0.0
  %946 = vmatpush1.msra.mxu0 %v743
  %947 = vmatprep.subr.mxu0 0.0
  %948 = vmatpush1.msra.mxu0 %v742
  %949 = vmatprep.subr.mxu0 0.0
  %950 = vmatpush1.msra.mxu0 %v741
  %951 = vmatprep.subr.mxu0 0.0
  %952 = vmatpush1.msra.mxu0 %v740
  %953 = vmatprep.subr.mxu0 0.0
  %954 = vmatpush1.msra.mxu0 %v739
  %955 = vmatprep.subr.mxu0 0.0
  %956 = vmatpush1.msra.mxu0 %v738
  %957 = vmatprep.subr.mxu0 0.0
  %958 = vmatpush1.msra.mxu0 %v737
  %959 = vmatprep.subr.mxu0 0.0
  %960 = vmatpush1.msra.mxu0 %v736
  %961 = vmatprep.subr.mxu0 0.0
  %962 = vmatpush1.msra.mxu0 %v735
  %963 = vmatprep.subr.mxu0 0.0
  %964 = vmatpush1.msra.mxu0 %v734
  %965 = vmatprep.subr.mxu0 0.0
  %966 = vmatpush1.msra.mxu0 %v733
  %967 = vmatprep.subr.mxu0 0.0
  %968 = vmatpush1.msra.mxu0 %v732
  %969 = vmatprep.subr.mxu0 0.0
  %970 = vmatpush1.msra.mxu0 %v731
  %971 = vmatprep.subr.mxu0 0.0
  %972 = vmatpush1.msra.mxu0 %v730
  %973 = vmatprep.subr.mxu0 0.0
  %974 = vmatpush1.msra.mxu0 %v729
  %975 = vmatprep.subr.mxu0 0.0
  %976 = vmatpush2.msra.mxu0 %v760
  %977 = vmatprep.subr.mxu0 0.0
  %978 = vmatpush2.msra.mxu0 %v759
  %979 = vmatprep.subr.mxu0 0.0
  %980 = vmatpush2.msra.mxu0 %v758
  %981 = vmatprep.subr.mxu0 0.0
  %982 = vmatpush2.msra.mxu0 %v757
  %983 = vmatprep.subr.mxu0 0.0
  %984 = vmatpush2.msra.mxu0 %v756
  %985 = vmatprep.subr.mxu0 0.0
  %986 = vmatpush2.msra.mxu0 %v755
  %987 = vmatprep.subr.mxu0 0.0
  %988 = vmatpush2.msra.mxu0 %v754
  %989 = vmatprep.subr.mxu0 0.0
  %990 = vmatpush2.msra.mxu0 %v753
  %991 = vmatprep.subr.mxu0 0.0
  %992 = vmatpush2.msra.mxu0 %v752
  %993 = vmatprep.subr.mxu0 0.0
  %994 = vmatpush2.msra.mxu0 %v751
  %995 = vmatprep.subr.mxu0 0.0
  %996 = vmatpush2.msra.mxu0 %v750
  %997 = vmatprep.subr.mxu0 0.0
  %998 = vmatpush2.msra.mxu0 %v749
  %999 = vmatprep.subr.mxu0 0.0
  %1000 = vmatpush2.msra.mxu0 %v748
  %1001 = vmatprep.subr.mxu0 0.0
  %1002 = vmatpush2.msra.mxu0 %v747
  %1003 = vmatprep.subr.mxu0 0.0
  %1004 = vmatpush2.msra.mxu0 %v746
  %1005 = vmatprep.subr.mxu0 0.0
  %1006 = vmatpush2.msra.mxu0 %v745
  %1007 = vmatprep.mubr.f32.mxu0 %v654
  %1008 = vmatmul.mubr.f32.gmra.mxu0 %v653
  %v1009 = vpop.f32.mrf.mxu0
  %v1010 = vadd.f32 %v935, %v1009
  %v1011 = vpop.f32.mrf.mxu0
  %1012 = vmatprep.mubr.f32.mxu0 %v662
  %1013 = vmatmul.mubr.f32.gmra.mxu0 %v661
  %v1014 = vpop.f32.mrf.mxu0
  %v1015 = vadd.f32 %v940, %v1014
  %v1016 = vpop.f32.mrf.mxu0
  %1017 = vdwg.mxu0
  %1018 = vmatprep.subr.mxu0 0.0
  %1019 = vmatpush1.msra.mxu0 %v776
  %1020 = vmatprep.subr.mxu0 0.0
  %1021 = vmatpush1.msra.mxu0 %v775
  %1022 = vmatprep.subr.mxu0 0.0
  %1023 = vmatpush1.msra.mxu0 %v774
  %1024 = vmatprep.subr.mxu0 0.0
  %1025 = vmatpush1.msra.mxu0 %v773
  %1026 = vmatprep.subr.mxu0 0.0
  %1027 = vmatpush1.msra.mxu0 %v772
  %1028 = vmatprep.subr.mxu0 0.0
  %1029 = vmatpush1.msra.mxu0 %v771
  %1030 = vmatprep.subr.mxu0 0.0
  %1031 = vmatpush1.msra.mxu0 %v770
  %1032 = vmatprep.subr.mxu0 0.0
  %1033 = vmatpush1.msra.mxu0 %v769
  %1034 = vmatprep.subr.mxu0 0.0
  %1035 = vmatpush1.msra.mxu0 %v768
  %1036 = vmatprep.subr.mxu0 0.0
  %1037 = vmatpush1.msra.mxu0 %v767
  %1038 = vmatprep.subr.mxu0 0.0
  %1039 = vmatpush1.msra.mxu0 %v766
  %1040 = vmatprep.subr.mxu0 0.0
  %1041 = vmatpush1.msra.mxu0 %v765
  %1042 = vmatprep.subr.mxu0 0.0
  %1043 = vmatpush1.msra.mxu0 %v764
  %1044 = vmatprep.subr.mxu0 0.0
  %1045 = vmatpush1.msra.mxu0 %v763
  %1046 = vmatprep.subr.mxu0 0.0
  %1047 = vmatpush1.msra.mxu0 %v762
  %1048 = vmatprep.subr.mxu0 0.0
  %1049 = vmatpush1.msra.mxu0 %v761
  %1050 = vmatprep.subr.mxu0 0.0
  %1051 = vmatpush2.msra.mxu0 %v792
  %1052 = vmatprep.subr.mxu0 0.0
  %1053 = vmatpush2.msra.mxu0 %v791
  %1054 = vmatprep.subr.mxu0 0.0
  %1055 = vmatpush2.msra.mxu0 %v790
  %1056 = vmatprep.subr.mxu0 0.0
  %1057 = vmatpush2.msra.mxu0 %v789
  %1058 = vmatprep.subr.mxu0 0.0
  %1059 = vmatpush2.msra.mxu0 %v788
  %1060 = vmatprep.subr.mxu0 0.0
  %1061 = vmatpush2.msra.mxu0 %v787
  %1062 = vmatprep.subr.mxu0 0.0
  %1063 = vmatpush2.msra.mxu0 %v786
  %1064 = vmatprep.subr.mxu0 0.0
  %1065 = vmatpush2.msra.mxu0 %v785
  %1066 = vmatprep.subr.mxu0 0.0
  %1067 = vmatpush2.msra.mxu0 %v784
  %1068 = vmatprep.subr.mxu0 0.0
  %1069 = vmatpush2.msra.mxu0 %v783
  %1070 = vmatprep.subr.mxu0 0.0
  %1071 = vmatpush2.msra.mxu0 %v782
  %1072 = vmatprep.subr.mxu0 0.0
  %1073 = vmatpush2.msra.mxu0 %v781
  %1074 = vmatprep.subr.mxu0 0.0
  %1075 = vmatpush2.msra.mxu0 %v780
  %1076 = vmatprep.subr.mxu0 0.0
  %1077 = vmatpush2.msra.mxu0 %v779
  %1078 = vmatprep.subr.mxu0 0.0
  %1079 = vmatpush2.msra.mxu0 %v778
  %1080 = vmatprep.subr.mxu0 0.0
  %1081 = vmatpush2.msra.mxu0 %v777
  %1082 = vmatprep.mubr.f32.mxu0 %v656
  %1083 = vmatmul.mubr.f32.gmra.mxu0 %v655
  %v1084 = vpop.f32.mrf.mxu0
  %v1085 = vadd.f32 %v1010, %v1084
  %v1086 = vpop.f32.mrf.mxu0
  %1087 = vmatprep.mubr.f32.mxu0 %v664
  %1088 = vmatmul.mubr.f32.gmra.mxu0 %v663
  %v1089 = vpop.f32.mrf.mxu0
  %v1090 = vadd.f32 %v1015, %v1089
  %v1091 = vpop.f32.mrf.mxu0
  %1092 = vdwg.mxu0
  %1093 = vmatprep.subr.mxu0 0.0
  %1094 = vmatpush1.msra.mxu0 %v360
  %1095 = vmatprep.subr.mxu0 0.0
  %1096 = vmatpush1.msra.mxu0 %v359
  %1097 = vmatprep.subr.mxu0 0.0
  %1098 = vmatpush1.msra.mxu0 %v358
  %1099 = vmatprep.subr.mxu0 0.0
  %1100 = vmatpush1.msra.mxu0 %v357
  %1101 = vmatprep.subr.mxu0 0.0
  %1102 = vmatpush1.msra.mxu0 %v356
  %1103 = vmatprep.subr.mxu0 0.0
  %1104 = vmatpush1.msra.mxu0 %v355
  %1105 = vmatprep.subr.mxu0 0.0
  %1106 = vmatpush1.msra.mxu0 %v354
  %1107 = vmatprep.subr.mxu0 0.0
  %1108 = vmatpush1.msra.mxu0 %v353
  %1109 = vmatprep.subr.mxu0 0.0
  %1110 = vmatpush1.msra.mxu0 %v352
  %1111 = vmatprep.subr.mxu0 0.0
  %1112 = vmatpush1.msra.mxu0 %v351
  %1113 = vmatprep.subr.mxu0 0.0
  %1114 = vmatpush1.msra.mxu0 %v350
  %1115 = vmatprep.subr.mxu0 0.0
  %1116 = vmatpush1.msra.mxu0 %v349
  %1117 = vmatprep.subr.mxu0 0.0
  %1118 = vmatpush1.msra.mxu0 %v348
  %1119 = vmatprep.subr.mxu0 0.0
  %1120 = vmatpush1.msra.mxu0 %v347
  %1121 = vmatprep.subr.mxu0 0.0
  %1122 = vmatpush1.msra.mxu0 %v346
  %1123 = vmatprep.subr.mxu0 0.0
  %1124 = vmatpush1.msra.mxu0 %v345
  %1125 = vmatprep.subr.mxu0 0.0
  %1126 = vmatpush2.msra.mxu0 %v376
  %1127 = vmatprep.subr.mxu0 0.0
  %1128 = vmatpush2.msra.mxu0 %v375
  %1129 = vmatprep.subr.mxu0 0.0
  %1130 = vmatpush2.msra.mxu0 %v374
  %1131 = vmatprep.subr.mxu0 0.0
  %1132 = vmatpush2.msra.mxu0 %v373
  %1133 = vmatprep.subr.mxu0 0.0
  %1134 = vmatpush2.msra.mxu0 %v372
  %1135 = vmatprep.subr.mxu0 0.0
  %1136 = vmatpush2.msra.mxu0 %v371
  %1137 = vmatprep.subr.mxu0 0.0
  %1138 = vmatpush2.msra.mxu0 %v370
  %1139 = vmatprep.subr.mxu0 0.0
  %1140 = vmatpush2.msra.mxu0 %v369
  %1141 = vmatprep.subr.mxu0 0.0
  %1142 = vmatpush2.msra.mxu0 %v368
  %1143 = vmatprep.subr.mxu0 0.0
  %1144 = vmatpush2.msra.mxu0 %v367
  %1145 = vmatprep.subr.mxu0 0.0
  %1146 = vmatpush2.msra.mxu0 %v366
  %1147 = vmatprep.subr.mxu0 0.0
  %1148 = vmatpush2.msra.mxu0 %v365
  %1149 = vmatprep.subr.mxu0 0.0
  %1150 = vmatpush2.msra.mxu0 %v364
  %1151 = vmatprep.subr.mxu0 0.0
  %1152 = vmatpush2.msra.mxu0 %v363
  %1153 = vmatprep.subr.mxu0 0.0
  %1154 = vmatpush2.msra.mxu0 %v362
  %1155 = vmatprep.subr.mxu0 0.0
  %1156 = vmatpush2.msra.mxu0 %v361
  %1157 = vmatprep.mubr.f32.mxu0 %v330
  %1158 = vmatmul.mubr.f32.gmra.mxu0 %v329
  %v1159 = vpop.f32.mrf.mxu0
  %v1160 = vadd.f32 %v1085, %v1159
  %v1161 = vpop.f32.mrf.mxu0
  %1162 = vmatprep.mubr.f32.mxu0 %v338
  %1163 = vmatmul.mubr.f32.gmra.mxu0 %v337
  %v1164 = vpop.f32.mrf.mxu0
  %v1165 = vadd.f32 %v1090, %v1164
  %v1166 = vpop.f32.mrf.mxu0
  %1167 = vdwg.mxu0
  %1168 = vmatprep.subr.mxu0 0.0
  %1169 = vmatpush1.msra.mxu0 %v392
  %1170 = vmatprep.subr.mxu0 0.0
  %1171 = vmatpush1.msra.mxu0 %v391
  %1172 = vmatprep.subr.mxu0 0.0
  %1173 = vmatpush1.msra.mxu0 %v390
  %1174 = vmatprep.subr.mxu0 0.0
  %1175 = vmatpush1.msra.mxu0 %v389
  %1176 = vmatprep.subr.mxu0 0.0
  %1177 = vmatpush1.msra.mxu0 %v388
  %1178 = vmatprep.subr.mxu0 0.0
  %1179 = vmatpush1.msra.mxu0 %v387
  %1180 = vmatprep.subr.mxu0 0.0
  %1181 = vmatpush1.msra.mxu0 %v386
  %1182 = vmatprep.subr.mxu0 0.0
  %1183 = vmatpush1.msra.mxu0 %v385
  %1184 = vmatprep.subr.mxu0 0.0
  %1185 = vmatpush1.msra.mxu0 %v384
  %1186 = vmatprep.subr.mxu0 0.0
  %1187 = vmatpush1.msra.mxu0 %v383
  %1188 = vmatprep.subr.mxu0 0.0
  %1189 = vmatpush1.msra.mxu0 %v382
  %1190 = vmatprep.subr.mxu0 0.0
  %1191 = vmatpush1.msra.mxu0 %v381
  %1192 = vmatprep.subr.mxu0 0.0
  %1193 = vmatpush1.msra.mxu0 %v380
  %1194 = vmatprep.subr.mxu0 0.0
  %1195 = vmatpush1.msra.mxu0 %v379
  %1196 = vmatprep.subr.mxu0 0.0
  %1197 = vmatpush1.msra.mxu0 %v378
  %1198 = vmatprep.subr.mxu0 0.0
  %1199 = vmatpush1.msra.mxu0 %v377
  %1200 = vmatprep.subr.mxu0 0.0
  %1201 = vmatpush2.msra.mxu0 %v408
  %1202 = vmatprep.subr.mxu0 0.0
  %1203 = vmatpush2.msra.mxu0 %v407
  %1204 = vmatprep.subr.mxu0 0.0
  %1205 = vmatpush2.msra.mxu0 %v406
  %1206 = vmatprep.subr.mxu0 0.0
  %1207 = vmatpush2.msra.mxu0 %v405
  %1208 = vmatprep.subr.mxu0 0.0
  %1209 = vmatpush2.msra.mxu0 %v404
  %1210 = vmatprep.subr.mxu0 0.0
  %1211 = vmatpush2.msra.mxu0 %v403
  %1212 = vmatprep.subr.mxu0 0.0
  %1213 = vmatpush2.msra.mxu0 %v402
  %1214 = vmatprep.subr.mxu0 0.0
  %1215 = vmatpush2.msra.mxu0 %v401
  %1216 = vmatprep.subr.mxu0 0.0
  %1217 = vmatpush2.msra.mxu0 %v400
  %1218 = vmatprep.subr.mxu0 0.0
  %1219 = vmatpush2.msra.mxu0 %v399
  %1220 = vmatprep.subr.mxu0 0.0
  %1221 = vmatpush2.msra.mxu0 %v398
  %1222 = vmatprep.subr.mxu0 0.0
  %1223 = vmatpush2.msra.mxu0 %v397
  %1224 = vmatprep.subr.mxu0 0.0
  %1225 = vmatpush2.msra.mxu0 %v396
  %1226 = vmatprep.subr.mxu0 0.0
  %1227 = vmatpush2.msra.mxu0 %v395
  %1228 = vmatprep.subr.mxu0 0.0
  %1229 = vmatpush2.msra.mxu0 %v394
  %1230 = vmatprep.subr.mxu0 0.0
  %1231 = vmatpush2.msra.mxu0 %v393
  %1232 = vmatprep.mubr.f32.mxu0 %v332
  %1233 = vmatmul.mubr.f32.gmra.mxu0 %v331
  %v1234 = vpop.f32.mrf.mxu0
  %v1235 = vadd.f32 %v1160, %v1234
  %v1236 = vpop.f32.mrf.mxu0
  %1237 = vmatprep.mubr.f32.mxu0 %v340
  %1238 = vmatmul.mubr.f32.gmra.mxu0 %v339
  %v1239 = vpop.f32.mrf.mxu0
  %v1240 = vadd.f32 %v1165, %v1239
  %v1241 = vpop.f32.mrf.mxu0
  %1242 = vdwg.mxu0
  %1243 = vmatprep.subr.mxu0 0.0
  %1244 = vmatpush1.msra.mxu0 %v424
  %1245 = vmatprep.subr.mxu0 0.0
  %1246 = vmatpush1.msra.mxu0 %v423
  %1247 = vmatprep.subr.mxu0 0.0
  %1248 = vmatpush1.msra.mxu0 %v422
  %1249 = vmatprep.subr.mxu0 0.0
  %1250 = vmatpush1.msra.mxu0 %v421
  %1251 = vmatprep.subr.mxu0 0.0
  %1252 = vmatpush1.msra.mxu0 %v420
  %1253 = vmatprep.subr.mxu0 0.0
  %1254 = vmatpush1.msra.mxu0 %v419
  %1255 = vmatprep.subr.mxu0 0.0
  %1256 = vmatpush1.msra.mxu0 %v418
  %1257 = vmatprep.subr.mxu0 0.0
  %1258 = vmatpush1.msra.mxu0 %v417
  %1259 = vmatprep.subr.mxu0 0.0
  %1260 = vmatpush1.msra.mxu0 %v416
  %1261 = vmatprep.subr.mxu0 0.0
  %1262 = vmatpush1.msra.mxu0 %v415
  %1263 = vmatprep.subr.mxu0 0.0
  %1264 = vmatpush1.msra.mxu0 %v414
  %1265 = vmatprep.subr.mxu0 0.0
  %1266 = vmatpush1.msra.mxu0 %v413
  %1267 = vmatprep.subr.mxu0 0.0
  %1268 = vmatpush1.msra.mxu0 %v412
  %1269 = vmatprep.subr.mxu0 0.0
  %1270 = vmatpush1.msra.mxu0 %v411
  %1271 = vmatprep.subr.mxu0 0.0
  %1272 = vmatpush1.msra.mxu0 %v410
  %1273 = vmatprep.subr.mxu0 0.0
  %1274 = vmatpush1.msra.mxu0 %v409
  %1275 = vmatprep.subr.mxu0 0.0
  %1276 = vmatpush2.msra.mxu0 %v440
  %1277 = vmatprep.subr.mxu0 0.0
  %1278 = vmatpush2.msra.mxu0 %v439
  %1279 = vmatprep.subr.mxu0 0.0
  %1280 = vmatpush2.msra.mxu0 %v438
  %1281 = vmatprep.subr.mxu0 0.0
  %1282 = vmatpush2.msra.mxu0 %v437
  %1283 = vmatprep.subr.mxu0 0.0
  %1284 = vmatpush2.msra.mxu0 %v436
  %1285 = vmatprep.subr.mxu0 0.0
  %1286 = vmatpush2.msra.mxu0 %v435
  %1287 = vmatprep.subr.mxu0 0.0
  %1288 = vmatpush2.msra.mxu0 %v434
  %1289 = vmatprep.subr.mxu0 0.0
  %1290 = vmatpush2.msra.mxu0 %v433
  %1291 = vmatprep.subr.mxu0 0.0
  %1292 = vmatpush2.msra.mxu0 %v432
  %1293 = vmatprep.subr.mxu0 0.0
  %1294 = vmatpush2.msra.mxu0 %v431
  %1295 = vmatprep.subr.mxu0 0.0
  %1296 = vmatpush2.msra.mxu0 %v430
  %1297 = vmatprep.subr.mxu0 0.0
  %1298 = vmatpush2.msra.mxu0 %v429
  %1299 = vmatprep.subr.mxu0 0.0
  %1300 = vmatpush2.msra.mxu0 %v428
  %1301 = vmatprep.subr.mxu0 0.0
  %1302 = vmatpush2.msra.mxu0 %v427
  %1303 = vmatprep.subr.mxu0 0.0
  %1304 = vmatpush2.msra.mxu0 %v426
  %1305 = vmatprep.subr.mxu0 0.0
  %1306 = vmatpush2.msra.mxu0 %v425
  %1307 = vmatprep.mubr.f32.mxu0 %v334
  %1308 = vmatmul.mubr.f32.gmra.mxu0 %v333
  %v1309 = vpop.f32.mrf.mxu0
  %v1310 = vadd.f32 %v1235, %v1309
  %v1311 = vpop.f32.mrf.mxu0
  %1312 = vmatprep.mubr.f32.mxu0 %v342
  %1313 = vmatmul.mubr.f32.gmra.mxu0 %v341
  %v1314 = vpop.f32.mrf.mxu0
  %v1315 = vadd.f32 %v1240, %v1314
  %v1316 = vpop.f32.mrf.mxu0
  %1317 = vdwg.mxu0
  %1318 = vmatprep.subr.mxu0 0.0
  %1319 = vmatpush1.msra.mxu0 %v456
  %1320 = vmatprep.subr.mxu0 0.0
  %1321 = vmatpush1.msra.mxu0 %v455
  %1322 = vmatprep.subr.mxu0 0.0
  %1323 = vmatpush1.msra.mxu0 %v454
  %1324 = vmatprep.subr.mxu0 0.0
  %1325 = vmatpush1.msra.mxu0 %v453
  %1326 = vmatprep.subr.mxu0 0.0
  %1327 = vmatpush1.msra.mxu0 %v452
  %1328 = vmatprep.subr.mxu0 0.0
  %1329 = vmatpush1.msra.mxu0 %v451
  %1330 = vmatprep.subr.mxu0 0.0
  %1331 = vmatpush1.msra.mxu0 %v450
  %1332 = vmatprep.subr.mxu0 0.0
  %1333 = vmatpush1.msra.mxu0 %v449
  %1334 = vmatprep.subr.mxu0 0.0
  %1335 = vmatpush1.msra.mxu0 %v448
  %1336 = vmatprep.subr.mxu0 0.0
  %1337 = vmatpush1.msra.mxu0 %v447
  %1338 = vmatprep.subr.mxu0 0.0
  %1339 = vmatpush1.msra.mxu0 %v446
  %1340 = vmatprep.subr.mxu0 0.0
  %1341 = vmatpush1.msra.mxu0 %v445
  %1342 = vmatprep.subr.mxu0 0.0
  %1343 = vmatpush1.msra.mxu0 %v444
  %1344 = vmatprep.subr.mxu0 0.0
  %1345 = vmatpush1.msra.mxu0 %v443
  %1346 = vmatprep.subr.mxu0 0.0
  %1347 = vmatpush1.msra.mxu0 %v442
  %1348 = vmatprep.subr.mxu0 0.0
  %1349 = vmatpush1.msra.mxu0 %v441
  %1350 = vmatprep.subr.mxu0 0.0
  %1351 = vmatpush2.msra.mxu0 %v472
  %1352 = vmatprep.subr.mxu0 0.0
  %1353 = vmatpush2.msra.mxu0 %v471
  %1354 = vmatprep.subr.mxu0 0.0
  %1355 = vmatpush2.msra.mxu0 %v470
  %1356 = vmatprep.subr.mxu0 0.0
  %1357 = vmatpush2.msra.mxu0 %v469
  %1358 = vmatprep.subr.mxu0 0.0
  %1359 = vmatpush2.msra.mxu0 %v468
  %1360 = vmatprep.subr.mxu0 0.0
  %1361 = vmatpush2.msra.mxu0 %v467
  %1362 = vmatprep.subr.mxu0 0.0
  %1363 = vmatpush2.msra.mxu0 %v466
  %1364 = vmatprep.subr.mxu0 0.0
  %1365 = vmatpush2.msra.mxu0 %v465
  %1366 = vmatprep.subr.mxu0 0.0
  %1367 = vmatpush2.msra.mxu0 %v464
  %1368 = vmatprep.subr.mxu0 0.0
  %1369 = vmatpush2.msra.mxu0 %v463
  %1370 = vmatprep.subr.mxu0 0.0
  %1371 = vmatpush2.msra.mxu0 %v462
  %1372 = vmatprep.subr.mxu0 0.0
  %1373 = vmatpush2.msra.mxu0 %v461
  %1374 = vmatprep.subr.mxu0 0.0
  %1375 = vmatpush2.msra.mxu0 %v460
  %1376 = vmatprep.subr.mxu0 0.0
  %1377 = vmatpush2.msra.mxu0 %v459
  %1378 = vmatprep.subr.mxu0 0.0
  %1379 = vmatpush2.msra.mxu0 %v458
  %1380 = vmatprep.subr.mxu0 0.0
  %1381 = vmatpush2.msra.mxu0 %v457
  %1382 = vmatprep.mubr.f32.mxu0 %v336
  %1383 = vmatmul.mubr.f32.gmra.mxu0 %v335
  %v1384 = vpop.f32.mrf.mxu0
  %v1385 = vadd.f32 %v1310, %v1384
  %v1386 = vpop.f32.mrf.mxu0
  %1387 = vmatprep.mubr.f32.mxu0 %v344
  %1388 = vmatmul.mubr.f32.gmra.mxu0 %v343
  %v1389 = vpop.f32.mrf.mxu0
  %v1390 = vadd.f32 %v1315, %v1389
  %v1391 = vpop.f32.mrf.mxu0
  %1392 = vdwg.mxu0
  %v1393 = vld [vmem:[%s7] sm:$0x1]
  %v1395 = vlaneseq
  %v1396 = vshrl.u32 %v1395, 7
  %v1397 = vsub.s32 0, %v1396
  %v1398 = vrot.slane %v1393, %v1397
  %v1400 = vadd.f32 %v1385, %v1398
  %v1401 = vadd.f32 %v1390, %v1398
  %v1402 = vmax.f32 %v1400, 0.0
  %v1403 = vmax.f32 %v1401, 0.0
  %v1404 = vld [vmem:[%s10] sm:$0xff]
  %v1405 = vld [vmem:[%s10 + $0x8] sm:$0xff]
  %1406 = vset.pattern.permute.xlu0 0
  %1407 = vperm.xlu0 %1406, %v1404
  %v1408 = vpop.permute.xlu0 %1407
  %1409 = vset.pattern.permute.xlu0 0
  %1410 = vperm.xlu0 %1409, %v1405
  %v1411 = vpop.permute.xlu0 %1410
  %vm1412 = vcmp.eq.s32.totalorder %v99, %v1408
  %vm1413 = vcmp.eq.s32.totalorder %v99, %v1411
  %v1414 = vsel %vm1412, 1, 0
  %v1415 = vsel %vm1413, 1, 0
  %v1416 = vcvt.s32.f32 %v1414
  %v1417 = vcvt.s32.f32 %v1415
  %v1418 = vld [vmem:[%s11] sm:$0xff]
  %v1419 = vld [vmem:[%s11 + $0x8] sm:$0xff]
  %1420 = vset.pattern.permute.xlu0 0
  %1421 = vperm.xlu0 %1420, %v1418
  %v1422 = vpop.permute.xlu0 %1421
  %1423 = vset.pattern.permute.xlu0 0
  %1424 = vperm.xlu0 %1423, %v1419
  %v1425 = vpop.permute.xlu0 %1424
  %vm1426 = vcmp.eq.s32.totalorder %v99, %v1422
  %vm1427 = vcmp.eq.s32.totalorder %v99, %v1425
  %v1428 = vsel %vm1426, 1, 0
  %v1429 = vsel %vm1427, 1, 0
  %v1430 = vcvt.s32.f32 %v1428
  %v1431 = vcvt.s32.f32 %v1429
  %v1432 = vld [vmem:[%s12] sm:$0x1]
  %v1433 = vlaneseq
  %v1434 = vshrl.u32 %v1433, 7
  %v1435 = vsub.s32 0, %v1434
  %v1436 = vrot.slane %v1432, %v1435
  %vm1437 = vcmp.eq.s32.totalorder %v99, %v1436
  %v1438 = vsel %vm1437, 1, 0
  %v1439 = vcvt.s32.f32 %v1438
  %v1440 = vld [vmem:[%s13] sm:$0xff]
  %v1441 = vld [vmem:[%s13 + $0x8] sm:$0xff]
  %1443 = vset.pattern.permute.xlu0 0
  %1444 = vperm.xlu0 %1443, %v1440
  %v1445 = vpop.permute.xlu0 %1444
  %1448 = vset.pattern.permute.xlu0 0
  %1449 = vperm.xlu0 %1448, %v1441
  %v1450 = vpop.permute.xlu0 %1449
  %v1452 = vmul.f32 %v1445, %v1416
  %v1453 = vmul.f32 %v1450, %v1417
  %v1454 = vsub.f32 1.0, %v1440
  %v1455 = vsub.f32 1.0, %v1441
  %1457 = vset.pattern.permute.xlu0 0
  %1458 = vperm.xlu0 %1457, %v1454
  %v1459 = vpop.permute.xlu0 %1458
  %1462 = vset.pattern.permute.xlu0 0
  %1463 = vperm.xlu0 %1462, %v1455
  %v1464 = vpop.permute.xlu0 %1463
  %v1466 = vmul.f32 %v1459, %v1430
  %v1467 = vmul.f32 %v1464, %v1431
  %v1468 = vadd.f32 %v1452, %v1466
  %v1469 = vadd.f32 %v1453, %v1467
  %v1470 = vmul.f32 %v1445, %v1430
  %v1471 = vmul.f32 %v1450, %v1431
  %v1472 = vmul.f32 %v1459, %v1416
  %v1473 = vmul.f32 %v1464, %v1417
  %v1474 = vadd.f32 %v1470, %v1472
  %v1475 = vadd.f32 %v1471, %v1473
  %v1476 = vld [vmem:[%s1] sm:$0xff]
  %vm1477 = vcmask 64512
  %v1479 = vsel %vm1477, %v1468, 0
  %v1482 = vsel %vm1477, %v1469, 0
  %1484 = vmatprep.subr.mxu0 0.0
  %1485 = vmatpush1.msra.mxu0 0.0
  %1486 = vmatprep.subr.mxu0 0.0
  %1487 = vmatpush1.msra.mxu0 0.0
  %1488 = vmatprep.subr.mxu0 0.0
  %1489 = vmatpush1.msra.mxu0 0.0
  %1490 = vmatprep.subr.mxu0 0.0
  %1491 = vmatpush1.msra.mxu0 0.0
  %1492 = vmatprep.subr.mxu0 0.0
  %1493 = vmatpush1.msra.mxu0 0.0
  %1494 = vmatprep.subr.mxu0 0.0
  %1495 = vmatpush1.msra.mxu0 0.0
  %1496 = vmatprep.subr.mxu0 0.0
  %1497 = vmatpush1.msra.mxu0 0.0
  %1498 = vmatprep.subr.mxu0 0.0
  %1499 = vmatpush1.msra.mxu0 0.0
  %1500 = vmatprep.subr.mxu0 0.0
  %1501 = vmatpush1.msra.mxu0 0.0
  %1502 = vmatprep.subr.mxu0 0.0
  %1503 = vmatpush1.msra.mxu0 0.0
  %1504 = vmatprep.subr.mxu0 0.0
  %1505 = vmatpush1.msra.mxu0 0.0
  %1506 = vmatprep.subr.mxu0 0.0
  %1507 = vmatpush1.msra.mxu0 0.0
  %1508 = vmatprep.subr.mxu0 0.0
  %1509 = vmatpush1.msra.mxu0 0.0
  %1510 = vmatprep.subr.mxu0 0.0
  %1511 = vmatpush1.msra.mxu0 0.0
  %1512 = vmatprep.subr.mxu0 0.0
  %1513 = vmatpush1.msra.mxu0 0.0
  %1514 = vmatprep.subr.mxu0 0.0
  %1515 = vmatpush1.msra.mxu0 %v1476
  %1516 = vmatprep.subr.mxu0 0.0
  %1517 = vmatpush2.msra.mxu0 0.0
  %1518 = vmatprep.subr.mxu0 0.0
  %1519 = vmatpush2.msra.mxu0 0.0
  %1520 = vmatprep.subr.mxu0 0.0
  %1521 = vmatpush2.msra.mxu0 0.0
  %1522 = vmatprep.subr.mxu0 0.0
  %1523 = vmatpush2.msra.mxu0 0.0
  %1524 = vmatprep.subr.mxu0 0.0
  %1525 = vmatpush2.msra.mxu0 0.0
  %1526 = vmatprep.subr.mxu0 0.0
  %1527 = vmatpush2.msra.mxu0 0.0
  %1528 = vmatprep.subr.mxu0 0.0
  %1529 = vmatpush2.msra.mxu0 0.0
  %1530 = vmatprep.subr.mxu0 0.0
  %1531 = vmatpush2.msra.mxu0 0.0
  %1532 = vmatprep.subr.mxu0 0.0
  %1533 = vmatpush2.msra.mxu0 0.0
  %1534 = vmatprep.subr.mxu0 0.0
  %1535 = vmatpush2.msra.mxu0 0.0
  %1536 = vmatprep.subr.mxu0 0.0
  %1537 = vmatpush2.msra.mxu0 0.0
  %1538 = vmatprep.subr.mxu0 0.0
  %1539 = vmatpush2.msra.mxu0 0.0
  %1540 = vmatprep.subr.mxu0 0.0
  %1541 = vmatpush2.msra.mxu0 0.0
  %1542 = vmatprep.subr.mxu0 0.0
  %1543 = vmatpush2.msra.mxu0 0.0
  %1544 = vmatprep.subr.mxu0 0.0
  %1545 = vmatpush2.msra.mxu0 0.0
  %1546 = vmatprep.subr.mxu0 0.0
  %1547 = vmatpush2.msra.mxu0 0.0
  %1548 = vmatprep.mubr.f32.mxu0 0.0
  %1549 = vmatmul.mubr.f32.gmra.mxu0 %v1479
  %v1550 = vpop.f32.mrf.mxu0
  %v1551 = vadd.f32 0.0, %v1550
  %v1552 = vpop.f32.mrf.mxu0
  %1553 = vmatprep.mubr.f32.mxu0 0.0
  %1554 = vmatmul.mubr.f32.gmra.mxu0 %v1482
  %v1555 = vpop.f32.mrf.mxu0
  %v1556 = vadd.f32 0.0, %v1555
  %v1557 = vpop.f32.mrf.mxu0
  %1558 = vdwg.mxu0
  %v1559 = vld [vmem:[%s2] sm:$0xff]
  %v1561 = vsel %vm1477, %v1474, 0
  %v1564 = vsel %vm1477, %v1475, 0
  %1566 = vmatprep.subr.mxu0 0.0
  %1567 = vmatpush1.msra.mxu0 0.0
  %1568 = vmatprep.subr.mxu0 0.0
  %1569 = vmatpush1.msra.mxu0 0.0
  %1570 = vmatprep.subr.mxu0 0.0
  %1571 = vmatpush1.msra.mxu0 0.0
  %1572 = vmatprep.subr.mxu0 0.0
  %1573 = vmatpush1.msra.mxu0 0.0
  %1574 = vmatprep.subr.mxu0 0.0
  %1575 = vmatpush1.msra.mxu0 0.0
  %1576 = vmatprep.subr.mxu0 0.0
  %1577 = vmatpush1.msra.mxu0 0.0
  %1578 = vmatprep.subr.mxu0 0.0
  %1579 = vmatpush1.msra.mxu0 0.0
  %1580 = vmatprep.subr.mxu0 0.0
  %1581 = vmatpush1.msra.mxu0 0.0
  %1582 = vmatprep.subr.mxu0 0.0
  %1583 = vmatpush1.msra.mxu0 0.0
  %1584 = vmatprep.subr.mxu0 0.0
  %1585 = vmatpush1.msra.mxu0 0.0
  %1586 = vmatprep.subr.mxu0 0.0
  %1587 = vmatpush1.msra.mxu0 0.0
  %1588 = vmatprep.subr.mxu0 0.0
  %1589 = vmatpush1.msra.mxu0 0.0
  %1590 = vmatprep.subr.mxu0 0.0
  %1591 = vmatpush1.msra.mxu0 0.0
  %1592 = vmatprep.subr.mxu0 0.0
  %1593 = vmatpush1.msra.mxu0 0.0
  %1594 = vmatprep.subr.mxu0 0.0
  %1595 = vmatpush1.msra.mxu0 0.0
  %1596 = vmatprep.subr.mxu0 0.0
  %1597 = vmatpush1.msra.mxu0 %v1559
  %1598 = vmatprep.subr.mxu0 0.0
  %1599 = vmatpush2.msra.mxu0 0.0
  %1600 = vmatprep.subr.mxu0 0.0
  %1601 = vmatpush2.msra.mxu0 0.0
  %1602 = vmatprep.subr.mxu0 0.0
  %1603 = vmatpush2.msra.mxu0 0.0
  %1604 = vmatprep.subr.mxu0 0.0
  %1605 = vmatpush2.msra.mxu0 0.0
  %1606 = vmatprep.subr.mxu0 0.0
  %1607 = vmatpush2.msra.mxu0 0.0
  %1608 = vmatprep.subr.mxu0 0.0
  %1609 = vmatpush2.msra.mxu0 0.0
  %1610 = vmatprep.subr.mxu0 0.0
  %1611 = vmatpush2.msra.mxu0 0.0
  %1612 = vmatprep.subr.mxu0 0.0
  %1613 = vmatpush2.msra.mxu0 0.0
  %1614 = vmatprep.subr.mxu0 0.0
  %1615 = vmatpush2.msra.mxu0 0.0
  %1616 = vmatprep.subr.mxu0 0.0
  %1617 = vmatpush2.msra.mxu0 0.0
  %1618 = vmatprep.subr.mxu0 0.0
  %1619 = vmatpush2.msra.mxu0 0.0
  %1620 = vmatprep.subr.mxu0 0.0
  %1621 = vmatpush2.msra.mxu0 0.0
  %1622 = vmatprep.subr.mxu0 0.0
  %1623 = vmatpush2.msra.mxu0 0.0
  %1624 = vmatprep.subr.mxu0 0.0
  %1625 = vmatpush2.msra.mxu0 0.0
  %1626 = vmatprep.subr.mxu0 0.0
  %1627 = vmatpush2.msra.mxu0 0.0
  %1628 = vmatprep.subr.mxu0 0.0
  %1629 = vmatpush2.msra.mxu0 0.0
  %1630 = vmatprep.mubr.f32.mxu0 0.0
  %1631 = vmatmul.mubr.f32.gmra.mxu0 %v1561
  %v1632 = vpop.f32.mrf.mxu0
  %v1633 = vadd.f32 0.0, %v1632
  %v1634 = vpop.f32.mrf.mxu0
  %1635 = vmatprep.mubr.f32.mxu0 0.0
  %1636 = vmatmul.mubr.f32.gmra.mxu0 %v1564
  %v1637 = vpop.f32.mrf.mxu0
  %v1638 = vadd.f32 0.0, %v1637
  %v1639 = vpop.f32.mrf.mxu0
  %1640 = vdwg.mxu0
  %v1641 = vmul.f32 %v1551, %v1633
  %v1642 = vmul.f32 %v1556, %v1638
  %vm1643 = vcmask 261120
  %v1644 = vsel %vm1643, %v1641, 0.0
  %1645 = vadd.xlane.f32.xlu0 %v1644
  %v1646 = vpop.xlane.xlu0 %1645
  %v1647 = vsel %vm1643, %v1642, 0.0
  %1648 = vadd.xlane.f32.xlu0 %v1647
  %v1649 = vpop.xlane.xlu0 %1648
  %v1650 = vmul.f32 %v1551, %v1551
  %v1651 = vmul.f32 %v1556, %v1556
  %v1652 = vsel %vm1643, %v1650, 0.0
  %1653 = vadd.xlane.f32.xlu0 %v1652
  %v1654 = vpop.xlane.xlu0 %1653
  %v1655 = vsel %vm1643, %v1651, 0.0
  %1656 = vadd.xlane.f32.xlu0 %v1655
  %v1657 = vpop.xlane.xlu0 %1656
  %v1658 = vrsqrt.pop %v1654
  %v1659 = vmul.f32 %v1654, %v1658
  %vm1660 = vcmp.eq.f32.partialorder %v1654, inf
  %v1661 = vsel %vm1660, %v1654, %v1659
  %vm1662 = vcmp.eq.f32.partialorder %v1654, 0.0
  %v1663 = vand.u32 %v1654, 2147483648
  %v1664 = vsel %vm1662, %v1663, %v1661
  %v1665 = vrsqrt.pop %v1657
  %v1666 = vmul.f32 %v1657, %v1665
  %vm1667 = vcmp.eq.f32.partialorder %v1657, inf
  %v1668 = vsel %vm1667, %v1657, %v1666
  %vm1669 = vcmp.eq.f32.partialorder %v1657, 0.0
  %v1670 = vand.u32 %v1657, 2147483648
  %v1671 = vsel %vm1669, %v1670, %v1668
  %v1672 = vmul.f32 %v1633, %v1633
  %v1673 = vmul.f32 %v1638, %v1638
  %v1674 = vsel %vm1643, %v1672, 0.0
  %1675 = vadd.xlane.f32.xlu0 %v1674
  %v1676 = vpop.xlane.xlu0 %1675
  %v1677 = vsel %vm1643, %v1673, 0.0
  %1678 = vadd.xlane.f32.xlu0 %v1677
  %v1679 = vpop.xlane.xlu0 %1678
  %v1680 = vrsqrt.pop %v1676
  %v1681 = vmul.f32 %v1676, %v1680
  %vm1682 = vcmp.eq.f32.partialorder %v1676, inf
  %v1683 = vsel %vm1682, %v1676, %v1681
  %vm1684 = vcmp.eq.f32.partialorder %v1676, 0.0
  %v1685 = vand.u32 %v1676, 2147483648
  %v1686 = vsel %vm1684, %v1685, %v1683
  %v1687 = vrsqrt.pop %v1679
  %v1688 = vmul.f32 %v1679, %v1687
  %vm1689 = vcmp.eq.f32.partialorder %v1679, inf
  %v1690 = vsel %vm1689, %v1679, %v1688
  %vm1691 = vcmp.eq.f32.partialorder %v1679, 0.0
  %v1692 = vand.u32 %v1679, 2147483648
  %v1693 = vsel %vm1691, %v1692, %v1690
  %v1694 = vmax.f32 %v1664, 1e-08
  %v1695 = vmax.f32 %v1671, 1e-08
  %v1696 = vmax.f32 %v1686, 1e-08
  %v1697 = vmax.f32 %v1693, 1e-08
  %v1698 = vmul.f32 %v1694, %v1696
  %v1699 = vmul.f32 %v1695, %v1697
  %v1700 = vrcp.pop %v1698
  %v1701 = vmul.f32 %v1646, %v1700
  %v1702 = vrcp.pop %v1699
  %v1703 = vmul.f32 %v1649, %v1702
  %v1704 = vld [vmem:[%s14] sm:$0xff]
  %v1705 = vld [vmem:[%s14 + $0x8] sm:$0xff]
  %vm1706 = vcmp.gt.f32.partialorder %v1704, 0.5
  %vm1707 = vcmp.gt.f32.partialorder %v1705, 0.5
  %v1708 = vsel %vm1706, %v1701, 1.0
  %v1709 = vsel %vm1707, %v1703, 1.0
  %1711 = vset.pattern.permute.xlu0 0
  %1712 = vperm.xlu0 %1711, %v1708
  %v1713 = vpop.permute.xlu0 %1712
  %1716 = vset.pattern.permute.xlu0 0
  %1717 = vperm.xlu0 %1716, %v1709
  %v1718 = vpop.permute.xlu0 %1717
  %v1720 = vmul.f32 %v1402, %v1713
  %v1721 = vmul.f32 %v1403, %v1718
  %vm1722 = vcmask 523264
  %v1723 = vsel %vm1722, %v1720, 0.0
  %v1724 = vsel %vm1722, %v1721, 0.0
  %v1725 = vadd.f32 %v1723, %v1724
  %v1726 = vrot.slane %v1725, 4
  %v1727 = vadd.f32 %v1725, %v1726
  %v1728 = vrot.slane %v1727, 2
  %v1729 = vadd.f32 %v1727, %v1728
  %v1730 = vrot.slane %v1729, 1
  %v1731 = vadd.f32 %v1729, %v1730
  %v1732 = vmul.f32 %v1731, 0.0625
  %v1733 = vsub.f32 %v1720, %v1732
  %v1734 = vsub.f32 %v1721, %v1732
  %v1735 = vmul.f32 %v1733, %v1733
  %v1736 = vmul.f32 %v1734, %v1734
  %v1737 = vsel %vm1722, %v1735, 0.0
  %v1738 = vsel %vm1722, %v1736, 0.0
  %v1739 = vadd.f32 %v1737, %v1738
  %v1740 = vrot.slane %v1739, 4
  %v1741 = vadd.f32 %v1739, %v1740
  %v1742 = vrot.slane %v1741, 2
  %v1743 = vadd.f32 %v1741, %v1742
  %v1744 = vrot.slane %v1743, 1
  %v1745 = vadd.f32 %v1743, %v1744
  %v1746 = vmul.f32 %v1745, 0.0625
  %v1747 = vadd.f32 %v1746, 1e-05
  %v1748 = vrsqrt.pop %v1747
  %v1749 = vmul.f32 %v1733, %v1748
  %v1750 = vmul.f32 %v1734, %v1748
  %v1751 = vld [vmem:[%s8] sm:$0x1]
  %v1753 = vlaneseq
  %v1754 = vshrl.u32 %v1753, 7
  %v1755 = vsub.s32 0, %v1754
  %v1756 = vrot.slane %v1751, %v1755
  %v1758 = vmul.f32 %v1749, %v1756
  %v1759 = vmul.f32 %v1750, %v1756
  %v1760 = vld [vmem:[%s9] sm:$0x1]
  %v1762 = vlaneseq
  %v1763 = vshrl.u32 %v1762, 7
  %v1764 = vsub.s32 0, %v1763
  %v1765 = vrot.slane %v1760, %v1764
  %v1767 = vadd.f32 %v1758, %v1765
  %v1768 = vadd.f32 %v1759, %v1765
  %v1769 = vld [vmem:[%s0] sm:$0xff]
  %v1770 = vld [vmem:[%s17] sm:$0xff]
  %v1771 = vld [vmem:[%s17 + $0x8] sm:$0xff]
  %v1772 = vld [vmem:[%s17 + $0x10] sm:$0xff]
  %v1773 = vld [vmem:[%s17 + $0x18] sm:$0xff]
  %v1774 = vld [vmem:[%s17 + $0x20] sm:$0xff]
  %v1775 = vld [vmem:[%s17 + $0x28] sm:$0xff]
  %v1776 = vld [vmem:[%s17 + $0x30] sm:$0xff]
  %v1777 = vld [vmem:[%s17 + $0x38] sm:$0xff]
  %v1778 = vld [vmem:[%s17 + $0x40] sm:$0xff]
  %v1779 = vld [vmem:[%s17 + $0x48] sm:$0xff]
  %v1780 = vld [vmem:[%s17 + $0x50] sm:$0xff]
  %v1781 = vld [vmem:[%s17 + $0x58] sm:$0xff]
  %v1782 = vld [vmem:[%s17 + $0x60] sm:$0xff]
  %v1783 = vld [vmem:[%s17 + $0x68] sm:$0xff]
  %v1784 = vld [vmem:[%s17 + $0x70] sm:$0xff]
  %v1785 = vld [vmem:[%s17 + $0x78] sm:$0xff]
  %v1786 = vld [vmem:[%s18] sm:$0x1]
  %v1788 = vlaneseq
  %v1789 = vshrl.u32 %v1788, 7
  %v1790 = vsub.s32 0, %v1789
  %v1791 = vrot.slane %v1786, %v1790
  %1793 = vmatprep.subr.mxu0 0.0
  %1794 = vmatpush1.msra.mxu0 %v1785
  %1795 = vmatprep.subr.mxu0 0.0
  %1796 = vmatpush1.msra.mxu0 %v1784
  %1797 = vmatprep.subr.mxu0 0.0
  %1798 = vmatpush1.msra.mxu0 %v1783
  %1799 = vmatprep.subr.mxu0 0.0
  %1800 = vmatpush1.msra.mxu0 %v1782
  %1801 = vmatprep.subr.mxu0 0.0
  %1802 = vmatpush1.msra.mxu0 %v1781
  %1803 = vmatprep.subr.mxu0 0.0
  %1804 = vmatpush1.msra.mxu0 %v1780
  %1805 = vmatprep.subr.mxu0 0.0
  %1806 = vmatpush1.msra.mxu0 %v1779
  %1807 = vmatprep.subr.mxu0 0.0
  %1808 = vmatpush1.msra.mxu0 %v1778
  %1809 = vmatprep.subr.mxu0 0.0
  %1810 = vmatpush1.msra.mxu0 %v1777
  %1811 = vmatprep.subr.mxu0 0.0
  %1812 = vmatpush1.msra.mxu0 %v1776
  %1813 = vmatprep.subr.mxu0 0.0
  %1814 = vmatpush1.msra.mxu0 %v1775
  %1815 = vmatprep.subr.mxu0 0.0
  %1816 = vmatpush1.msra.mxu0 %v1774
  %1817 = vmatprep.subr.mxu0 0.0
  %1818 = vmatpush1.msra.mxu0 %v1773
  %1819 = vmatprep.subr.mxu0 0.0
  %1820 = vmatpush1.msra.mxu0 %v1772
  %1821 = vmatprep.subr.mxu0 0.0
  %1822 = vmatpush1.msra.mxu0 %v1771
  %1823 = vmatprep.subr.mxu0 0.0
  %1824 = vmatpush1.msra.mxu0 %v1770
  %1825 = vmatprep.subr.mxu0 0.0
  %1826 = vmatpush2.msra.mxu0 0.0
  %1827 = vmatprep.subr.mxu0 0.0
  %1828 = vmatpush2.msra.mxu0 0.0
  %1829 = vmatprep.subr.mxu0 0.0
  %1830 = vmatpush2.msra.mxu0 0.0
  %1831 = vmatprep.subr.mxu0 0.0
  %1832 = vmatpush2.msra.mxu0 0.0
  %1833 = vmatprep.subr.mxu0 0.0
  %1834 = vmatpush2.msra.mxu0 0.0
  %1835 = vmatprep.subr.mxu0 0.0
  %1836 = vmatpush2.msra.mxu0 0.0
  %1837 = vmatprep.subr.mxu0 0.0
  %1838 = vmatpush2.msra.mxu0 0.0
  %1839 = vmatprep.subr.mxu0 0.0
  %1840 = vmatpush2.msra.mxu0 0.0
  %1841 = vmatprep.subr.mxu0 0.0
  %1842 = vmatpush2.msra.mxu0 0.0
  %1843 = vmatprep.subr.mxu0 0.0
  %1844 = vmatpush2.msra.mxu0 0.0
  %1845 = vmatprep.subr.mxu0 0.0
  %1846 = vmatpush2.msra.mxu0 0.0
  %1847 = vmatprep.subr.mxu0 0.0
  %1848 = vmatpush2.msra.mxu0 0.0
  %1849 = vmatprep.subr.mxu0 0.0
  %1850 = vmatpush2.msra.mxu0 0.0
  %1851 = vmatprep.subr.mxu0 0.0
  %1852 = vmatpush2.msra.mxu0 0.0
  %1853 = vmatprep.subr.mxu0 0.0
  %1854 = vmatpush2.msra.mxu0 0.0
  %1855 = vmatprep.subr.mxu0 0.0
  %1856 = vmatpush2.msra.mxu0 0.0
  %1857 = vmatprep.mubr.f32.mxu0 0.0
  %1858 = vmatmul.mubr.f32.gmra.mxu0 %v1769
  %v1859 = vpop.f32.mrf.mxu0
  %v1860 = vadd.f32 %v1791, %v1859
  %v1861 = vpop.f32.mrf.mxu0
  %1862 = vdwg.mxu0
  %v1863 = vmax.f32 %v1860, 0.0
  %v1865 = vsel %vm1477, %v1416, 0
  %v1868 = vsel %vm1477, %v1417, 0
  %1870 = vmatprep.subr.mxu0 0.0
  %1871 = vmatpush1.msra.mxu0 0.0
  %1872 = vmatprep.subr.mxu0 0.0
  %1873 = vmatpush1.msra.mxu0 0.0
  %1874 = vmatprep.subr.mxu0 0.0
  %1875 = vmatpush1.msra.mxu0 0.0
  %1876 = vmatprep.subr.mxu0 0.0
  %1877 = vmatpush1.msra.mxu0 0.0
  %1878 = vmatprep.subr.mxu0 0.0
  %1879 = vmatpush1.msra.mxu0 0.0
  %1880 = vmatprep.subr.mxu0 0.0
  %1881 = vmatpush1.msra.mxu0 0.0
  %1882 = vmatprep.subr.mxu0 0.0
  %1883 = vmatpush1.msra.mxu0 0.0
  %1884 = vmatprep.subr.mxu0 0.0
  %1885 = vmatpush1.msra.mxu0 0.0
  %1886 = vmatprep.subr.mxu0 0.0
  %1887 = vmatpush1.msra.mxu0 0.0
  %1888 = vmatprep.subr.mxu0 0.0
  %1889 = vmatpush1.msra.mxu0 0.0
  %1890 = vmatprep.subr.mxu0 0.0
  %1891 = vmatpush1.msra.mxu0 0.0
  %1892 = vmatprep.subr.mxu0 0.0
  %1893 = vmatpush1.msra.mxu0 0.0
  %1894 = vmatprep.subr.mxu0 0.0
  %1895 = vmatpush1.msra.mxu0 0.0
  %1896 = vmatprep.subr.mxu0 0.0
  %1897 = vmatpush1.msra.mxu0 0.0
  %1898 = vmatprep.subr.mxu0 0.0
  %1899 = vmatpush1.msra.mxu0 0.0
  %1900 = vmatprep.subr.mxu0 0.0
  %1901 = vmatpush1.msra.mxu0 %v1863
  %1902 = vmatprep.subr.mxu0 0.0
  %1903 = vmatpush2.msra.mxu0 0.0
  %1904 = vmatprep.subr.mxu0 0.0
  %1905 = vmatpush2.msra.mxu0 0.0
  %1906 = vmatprep.subr.mxu0 0.0
  %1907 = vmatpush2.msra.mxu0 0.0
  %1908 = vmatprep.subr.mxu0 0.0
  %1909 = vmatpush2.msra.mxu0 0.0
  %1910 = vmatprep.subr.mxu0 0.0
  %1911 = vmatpush2.msra.mxu0 0.0
  %1912 = vmatprep.subr.mxu0 0.0
  %1913 = vmatpush2.msra.mxu0 0.0
  %1914 = vmatprep.subr.mxu0 0.0
  %1915 = vmatpush2.msra.mxu0 0.0
  %1916 = vmatprep.subr.mxu0 0.0
  %1917 = vmatpush2.msra.mxu0 0.0
  %1918 = vmatprep.subr.mxu0 0.0
  %1919 = vmatpush2.msra.mxu0 0.0
  %1920 = vmatprep.subr.mxu0 0.0
  %1921 = vmatpush2.msra.mxu0 0.0
  %1922 = vmatprep.subr.mxu0 0.0
  %1923 = vmatpush2.msra.mxu0 0.0
  %1924 = vmatprep.subr.mxu0 0.0
  %1925 = vmatpush2.msra.mxu0 0.0
  %1926 = vmatprep.subr.mxu0 0.0
  %1927 = vmatpush2.msra.mxu0 0.0
  %1928 = vmatprep.subr.mxu0 0.0
  %1929 = vmatpush2.msra.mxu0 0.0
  %1930 = vmatprep.subr.mxu0 0.0
  %1931 = vmatpush2.msra.mxu0 0.0
  %1932 = vmatprep.subr.mxu0 0.0
  %1933 = vmatpush2.msra.mxu0 0.0
  %1934 = vmatprep.mubr.f32.mxu0 0.0
  %1935 = vmatmul.mubr.f32.gmra.mxu0 %v1865
  %v1936 = vpop.f32.mrf.mxu0
  %v1937 = vadd.f32 0.0, %v1936
  %v1938 = vpop.f32.mrf.mxu0
  %1939 = vmatprep.mubr.f32.mxu0 0.0
  %1940 = vmatmul.mubr.f32.gmra.mxu0 %v1868
  %v1941 = vpop.f32.mrf.mxu0
  %v1942 = vadd.f32 0.0, %v1941
  %v1943 = vpop.f32.mrf.mxu0
  %1944 = vdwg.mxu0
  %v1946 = vsel %vm1477, %v1430, 0
  %v1949 = vsel %vm1477, %v1431, 0
  %1951 = vmatprep.subr.mxu0 0.0
  %1952 = vmatpush1.msra.mxu0 0.0
  %1953 = vmatprep.subr.mxu0 0.0
  %1954 = vmatpush1.msra.mxu0 0.0
  %1955 = vmatprep.subr.mxu0 0.0
  %1956 = vmatpush1.msra.mxu0 0.0
  %1957 = vmatprep.subr.mxu0 0.0
  %1958 = vmatpush1.msra.mxu0 0.0
  %1959 = vmatprep.subr.mxu0 0.0
  %1960 = vmatpush1.msra.mxu0 0.0
  %1961 = vmatprep.subr.mxu0 0.0
  %1962 = vmatpush1.msra.mxu0 0.0
  %1963 = vmatprep.subr.mxu0 0.0
  %1964 = vmatpush1.msra.mxu0 0.0
  %1965 = vmatprep.subr.mxu0 0.0
  %1966 = vmatpush1.msra.mxu0 0.0
  %1967 = vmatprep.subr.mxu0 0.0
  %1968 = vmatpush1.msra.mxu0 0.0
  %1969 = vmatprep.subr.mxu0 0.0
  %1970 = vmatpush1.msra.mxu0 0.0
  %1971 = vmatprep.subr.mxu0 0.0
  %1972 = vmatpush1.msra.mxu0 0.0
  %1973 = vmatprep.subr.mxu0 0.0
  %1974 = vmatpush1.msra.mxu0 0.0
  %1975 = vmatprep.subr.mxu0 0.0
  %1976 = vmatpush1.msra.mxu0 0.0
  %1977 = vmatprep.subr.mxu0 0.0
  %1978 = vmatpush1.msra.mxu0 0.0
  %1979 = vmatprep.subr.mxu0 0.0
  %1980 = vmatpush1.msra.mxu0 0.0
  %1981 = vmatprep.subr.mxu0 0.0
  %1982 = vmatpush1.msra.mxu0 %v1863
  %1983 = vmatprep.subr.mxu0 0.0
  %1984 = vmatpush2.msra.mxu0 0.0
  %1985 = vmatprep.subr.mxu0 0.0
  %1986 = vmatpush2.msra.mxu0 0.0
  %1987 = vmatprep.subr.mxu0 0.0
  %1988 = vmatpush2.msra.mxu0 0.0
  %1989 = vmatprep.subr.mxu0 0.0
  %1990 = vmatpush2.msra.mxu0 0.0
  %1991 = vmatprep.subr.mxu0 0.0
  %1992 = vmatpush2.msra.mxu0 0.0
  %1993 = vmatprep.subr.mxu0 0.0
  %1994 = vmatpush2.msra.mxu0 0.0
  %1995 = vmatprep.subr.mxu0 0.0
  %1996 = vmatpush2.msra.mxu0 0.0
  %1997 = vmatprep.subr.mxu0 0.0
  %1998 = vmatpush2.msra.mxu0 0.0
  %1999 = vmatprep.subr.mxu0 0.0
  %2000 = vmatpush2.msra.mxu0 0.0
  %2001 = vmatprep.subr.mxu0 0.0
  %2002 = vmatpush2.msra.mxu0 0.0
  %2003 = vmatprep.subr.mxu0 0.0
  %2004 = vmatpush2.msra.mxu0 0.0
  %2005 = vmatprep.subr.mxu0 0.0
  %2006 = vmatpush2.msra.mxu0 0.0
  %2007 = vmatprep.subr.mxu0 0.0
  %2008 = vmatpush2.msra.mxu0 0.0
  %2009 = vmatprep.subr.mxu0 0.0
  %2010 = vmatpush2.msra.mxu0 0.0
  %2011 = vmatprep.subr.mxu0 0.0
  %2012 = vmatpush2.msra.mxu0 0.0
  %2013 = vmatprep.subr.mxu0 0.0
  %2014 = vmatpush2.msra.mxu0 0.0
  %2015 = vmatprep.mubr.f32.mxu0 0.0
  %2016 = vmatmul.mubr.f32.gmra.mxu0 %v1946
  %v2017 = vpop.f32.mrf.mxu0
  %v2018 = vadd.f32 0.0, %v2017
  %v2019 = vpop.f32.mrf.mxu0
  %2020 = vmatprep.mubr.f32.mxu0 0.0
  %2021 = vmatmul.mubr.f32.gmra.mxu0 %v1949
  %v2022 = vpop.f32.mrf.mxu0
  %v2023 = vadd.f32 0.0, %v2022
  %v2024 = vpop.f32.mrf.mxu0
  %2025 = vdwg.mxu0
  %v2026 = vld [vmem:[%s19] sm:$0xff]
  %v2027 = vld [vmem:[%s19 + $0x8] sm:$0xff]
  %v2028 = vld [vmem:[%s19 + $0x10] sm:$0xff]
  %v2029 = vld [vmem:[%s19 + $0x18] sm:$0xff]
  %v2030 = vld [vmem:[%s19 + $0x20] sm:$0xff]
  %v2031 = vld [vmem:[%s19 + $0x28] sm:$0xff]
  %v2032 = vld [vmem:[%s19 + $0x30] sm:$0xff]
  %v2033 = vld [vmem:[%s19 + $0x38] sm:$0xff]
  %v2034 = vld [vmem:[%s20] sm:$0xff]
  %v2035 = vld [vmem:[%s20 + $0x8] sm:$0xff]
  %v2036 = vld [vmem:[%s20 + $0x10] sm:$0xff]
  %v2037 = vld [vmem:[%s20 + $0x18] sm:$0xff]
  %v2038 = vld [vmem:[%s20 + $0x20] sm:$0xff]
  %v2039 = vld [vmem:[%s20 + $0x28] sm:$0xff]
  %v2040 = vld [vmem:[%s20 + $0x30] sm:$0xff]
  %v2041 = vld [vmem:[%s20 + $0x38] sm:$0xff]
  %v2043 = vsel %vm1722, %v2018, 0
  %v2046 = vsel %vm1722, %v2023, 0
  %2048 = vmatprep.subr.mxu0 0.0
  %2049 = vmatpush1.msra.mxu0 0.0
  %2050 = vmatprep.subr.mxu0 0.0
  %2051 = vmatpush1.msra.mxu0 0.0
  %2052 = vmatprep.subr.mxu0 0.0
  %2053 = vmatpush1.msra.mxu0 0.0
  %2054 = vmatprep.subr.mxu0 0.0
  %2055 = vmatpush1.msra.mxu0 0.0
  %2056 = vmatprep.subr.mxu0 0.0
  %2057 = vmatpush1.msra.mxu0 0.0
  %2058 = vmatprep.subr.mxu0 0.0
  %2059 = vmatpush1.msra.mxu0 0.0
  %2060 = vmatprep.subr.mxu0 0.0
  %2061 = vmatpush1.msra.mxu0 0.0
  %2062 = vmatprep.subr.mxu0 0.0
  %2063 = vmatpush1.msra.mxu0 0.0
  %2064 = vmatprep.subr.mxu0 0.0
  %2065 = vmatpush1.msra.mxu0 %v2041
  %2066 = vmatprep.subr.mxu0 0.0
  %2067 = vmatpush1.msra.mxu0 %v2040
  %2068 = vmatprep.subr.mxu0 0.0
  %2069 = vmatpush1.msra.mxu0 %v2039
  %2070 = vmatprep.subr.mxu0 0.0
  %2071 = vmatpush1.msra.mxu0 %v2038
  %2072 = vmatprep.subr.mxu0 0.0
  %2073 = vmatpush1.msra.mxu0 %v2037
  %2074 = vmatprep.subr.mxu0 0.0
  %2075 = vmatpush1.msra.mxu0 %v2036
  %2076 = vmatprep.subr.mxu0 0.0
  %2077 = vmatpush1.msra.mxu0 %v2035
  %2078 = vmatprep.subr.mxu0 0.0
  %2079 = vmatpush1.msra.mxu0 %v2034
  %2080 = vmatprep.subr.mxu0 0.0
  %2081 = vmatpush2.msra.mxu0 0.0
  %2082 = vmatprep.subr.mxu0 0.0
  %2083 = vmatpush2.msra.mxu0 0.0
  %2084 = vmatprep.subr.mxu0 0.0
  %2085 = vmatpush2.msra.mxu0 0.0
  %2086 = vmatprep.subr.mxu0 0.0
  %2087 = vmatpush2.msra.mxu0 0.0
  %2088 = vmatprep.subr.mxu0 0.0
  %2089 = vmatpush2.msra.mxu0 0.0
  %2090 = vmatprep.subr.mxu0 0.0
  %2091 = vmatpush2.msra.mxu0 0.0
  %2092 = vmatprep.subr.mxu0 0.0
  %2093 = vmatpush2.msra.mxu0 0.0
  %2094 = vmatprep.subr.mxu0 0.0
  %2095 = vmatpush2.msra.mxu0 0.0
  %2096 = vmatprep.subr.mxu0 0.0
  %2097 = vmatpush2.msra.mxu0 0.0
  %2098 = vmatprep.subr.mxu0 0.0
  %2099 = vmatpush2.msra.mxu0 0.0
  %2100 = vmatprep.subr.mxu0 0.0
  %2101 = vmatpush2.msra.mxu0 0.0
  %2102 = vmatprep.subr.mxu0 0.0
  %2103 = vmatpush2.msra.mxu0 0.0
  %2104 = vmatprep.subr.mxu0 0.0
  %2105 = vmatpush2.msra.mxu0 0.0
  %2106 = vmatprep.subr.mxu0 0.0
  %2107 = vmatpush2.msra.mxu0 0.0
  %2108 = vmatprep.subr.mxu0 0.0
  %2109 = vmatpush2.msra.mxu0 0.0
  %2110 = vmatprep.subr.mxu0 0.0
  %2111 = vmatpush2.msra.mxu0 0.0
  %2112 = vmatprep.mubr.f32.mxu0 0.0
  %2113 = vmatmul.mubr.f32.gmra.mxu0 %v2043
  %v2114 = vpop.f32.mrf.mxu0
  %v2115 = vadd.f32 0.0, %v2114
  %v2116 = vpop.f32.mrf.mxu0
  %2117 = vmatprep.mubr.f32.mxu0 0.0
  %2118 = vmatmul.mubr.f32.gmra.mxu0 %v2046
  %v2119 = vpop.f32.mrf.mxu0
  %v2120 = vadd.f32 0.0, %v2119
  %v2121 = vpop.f32.mrf.mxu0
  %2122 = vdwg.mxu0
  %v2124 = vsel %vm1722, %v1937, 0
  %v2127 = vsel %vm1722, %v1942, 0
  %2129 = vmatprep.subr.mxu0 0.0
  %2130 = vmatpush1.msra.mxu0 0.0
  %2131 = vmatprep.subr.mxu0 0.0
  %2132 = vmatpush1.msra.mxu0 0.0
  %2133 = vmatprep.subr.mxu0 0.0
  %2134 = vmatpush1.msra.mxu0 0.0
  %2135 = vmatprep.subr.mxu0 0.0
  %2136 = vmatpush1.msra.mxu0 0.0
  %2137 = vmatprep.subr.mxu0 0.0
  %2138 = vmatpush1.msra.mxu0 0.0
  %2139 = vmatprep.subr.mxu0 0.0
  %2140 = vmatpush1.msra.mxu0 0.0
  %2141 = vmatprep.subr.mxu0 0.0
  %2142 = vmatpush1.msra.mxu0 0.0
  %2143 = vmatprep.subr.mxu0 0.0
  %2144 = vmatpush1.msra.mxu0 0.0
  %2145 = vmatprep.subr.mxu0 0.0
  %2146 = vmatpush1.msra.mxu0 %v2033
  %2147 = vmatprep.subr.mxu0 0.0
  %2148 = vmatpush1.msra.mxu0 %v2032
  %2149 = vmatprep.subr.mxu0 0.0
  %2150 = vmatpush1.msra.mxu0 %v2031
  %2151 = vmatprep.subr.mxu0 0.0
  %2152 = vmatpush1.msra.mxu0 %v2030
  %2153 = vmatprep.subr.mxu0 0.0
  %2154 = vmatpush1.msra.mxu0 %v2029
  %2155 = vmatprep.subr.mxu0 0.0
  %2156 = vmatpush1.msra.mxu0 %v2028
  %2157 = vmatprep.subr.mxu0 0.0
  %2158 = vmatpush1.msra.mxu0 %v2027
  %2159 = vmatprep.subr.mxu0 0.0
  %2160 = vmatpush1.msra.mxu0 %v2026
  %2161 = vmatprep.subr.mxu0 0.0
  %2162 = vmatpush2.msra.mxu0 0.0
  %2163 = vmatprep.subr.mxu0 0.0
  %2164 = vmatpush2.msra.mxu0 0.0
  %2165 = vmatprep.subr.mxu0 0.0
  %2166 = vmatpush2.msra.mxu0 0.0
  %2167 = vmatprep.subr.mxu0 0.0
  %2168 = vmatpush2.msra.mxu0 0.0
  %2169 = vmatprep.subr.mxu0 0.0
  %2170 = vmatpush2.msra.mxu0 0.0
  %2171 = vmatprep.subr.mxu0 0.0
  %2172 = vmatpush2.msra.mxu0 0.0
  %2173 = vmatprep.subr.mxu0 0.0
  %2174 = vmatpush2.msra.mxu0 0.0
  %2175 = vmatprep.subr.mxu0 0.0
  %2176 = vmatpush2.msra.mxu0 0.0
  %2177 = vmatprep.subr.mxu0 0.0
  %2178 = vmatpush2.msra.mxu0 0.0
  %2179 = vmatprep.subr.mxu0 0.0
  %2180 = vmatpush2.msra.mxu0 0.0
  %2181 = vmatprep.subr.mxu0 0.0
  %2182 = vmatpush2.msra.mxu0 0.0
  %2183 = vmatprep.subr.mxu0 0.0
  %2184 = vmatpush2.msra.mxu0 0.0
  %2185 = vmatprep.subr.mxu0 0.0
  %2186 = vmatpush2.msra.mxu0 0.0
  %2187 = vmatprep.subr.mxu0 0.0
  %2188 = vmatpush2.msra.mxu0 0.0
  %2189 = vmatprep.subr.mxu0 0.0
  %2190 = vmatpush2.msra.mxu0 0.0
  %2191 = vmatprep.subr.mxu0 0.0
  %2192 = vmatpush2.msra.mxu0 0.0
  %2193 = vmatprep.mubr.f32.mxu0 0.0
  %2194 = vmatmul.mubr.f32.gmra.mxu0 %v2124
  %v2195 = vpop.f32.mrf.mxu0
  %v2196 = vadd.f32 %v2115, %v2195
  %v2197 = vpop.f32.mrf.mxu0
  %2198 = vmatprep.mubr.f32.mxu0 0.0
  %2199 = vmatmul.mubr.f32.gmra.mxu0 %v2127
  %v2200 = vpop.f32.mrf.mxu0
  %v2201 = vadd.f32 %v2120, %v2200
  %v2202 = vpop.f32.mrf.mxu0
  %2203 = vdwg.mxu0
  %v2204 = vld [vmem:[%s21] sm:$0xff]
  %v2205 = vld [vmem:[%s21 + $0x8] sm:$0xff]
  %v2206 = vld [vmem:[%s21 + $0x10] sm:$0xff]
  %v2207 = vld [vmem:[%s21 + $0x18] sm:$0xff]
  %v2208 = vld [vmem:[%s21 + $0x20] sm:$0xff]
  %v2209 = vld [vmem:[%s21 + $0x28] sm:$0xff]
  %v2210 = vld [vmem:[%s21 + $0x30] sm:$0xff]
  %v2211 = vld [vmem:[%s21 + $0x38] sm:$0xff]
  %v2213 = vsel %vm1722, %v1767, 0
  %v2216 = vsel %vm1722, %v1768, 0
  %2218 = vmatprep.subr.mxu0 0.0
  %2219 = vmatpush1.msra.mxu0 0.0
  %2220 = vmatprep.subr.mxu0 0.0
  %2221 = vmatpush1.msra.mxu0 0.0
  %2222 = vmatprep.subr.mxu0 0.0
  %2223 = vmatpush1.msra.mxu0 0.0
  %2224 = vmatprep.subr.mxu0 0.0
  %2225 = vmatpush1.msra.mxu0 0.0
  %2226 = vmatprep.subr.mxu0 0.0
  %2227 = vmatpush1.msra.mxu0 0.0
  %2228 = vmatprep.subr.mxu0 0.0
  %2229 = vmatpush1.msra.mxu0 0.0
  %2230 = vmatprep.subr.mxu0 0.0
  %2231 = vmatpush1.msra.mxu0 0.0
  %2232 = vmatprep.subr.mxu0 0.0
  %2233 = vmatpush1.msra.mxu0 0.0
  %2234 = vmatprep.subr.mxu0 0.0
  %2235 = vmatpush1.msra.mxu0 %v2211
  %2236 = vmatprep.subr.mxu0 0.0
  %2237 = vmatpush1.msra.mxu0 %v2210
  %2238 = vmatprep.subr.mxu0 0.0
  %2239 = vmatpush1.msra.mxu0 %v2209
  %2240 = vmatprep.subr.mxu0 0.0
  %2241 = vmatpush1.msra.mxu0 %v2208
  %2242 = vmatprep.subr.mxu0 0.0
  %2243 = vmatpush1.msra.mxu0 %v2207
  %2244 = vmatprep.subr.mxu0 0.0
  %2245 = vmatpush1.msra.mxu0 %v2206
  %2246 = vmatprep.subr.mxu0 0.0
  %2247 = vmatpush1.msra.mxu0 %v2205
  %2248 = vmatprep.subr.mxu0 0.0
  %2249 = vmatpush1.msra.mxu0 %v2204
  %2250 = vmatprep.subr.mxu0 0.0
  %2251 = vmatpush2.msra.mxu0 0.0
  %2252 = vmatprep.subr.mxu0 0.0
  %2253 = vmatpush2.msra.mxu0 0.0
  %2254 = vmatprep.subr.mxu0 0.0
  %2255 = vmatpush2.msra.mxu0 0.0
  %2256 = vmatprep.subr.mxu0 0.0
  %2257 = vmatpush2.msra.mxu0 0.0
  %2258 = vmatprep.subr.mxu0 0.0
  %2259 = vmatpush2.msra.mxu0 0.0
  %2260 = vmatprep.subr.mxu0 0.0
  %2261 = vmatpush2.msra.mxu0 0.0
  %2262 = vmatprep.subr.mxu0 0.0
  %2263 = vmatpush2.msra.mxu0 0.0
  %2264 = vmatprep.subr.mxu0 0.0
  %2265 = vmatpush2.msra.mxu0 0.0
  %2266 = vmatprep.subr.mxu0 0.0
  %2267 = vmatpush2.msra.mxu0 0.0
  %2268 = vmatprep.subr.mxu0 0.0
  %2269 = vmatpush2.msra.mxu0 0.0
  %2270 = vmatprep.subr.mxu0 0.0
  %2271 = vmatpush2.msra.mxu0 0.0
  %2272 = vmatprep.subr.mxu0 0.0
  %2273 = vmatpush2.msra.mxu0 0.0
  %2274 = vmatprep.subr.mxu0 0.0
  %2275 = vmatpush2.msra.mxu0 0.0
  %2276 = vmatprep.subr.mxu0 0.0
  %2277 = vmatpush2.msra.mxu0 0.0
  %2278 = vmatprep.subr.mxu0 0.0
  %2279 = vmatpush2.msra.mxu0 0.0
  %2280 = vmatprep.subr.mxu0 0.0
  %2281 = vmatpush2.msra.mxu0 0.0
  %2282 = vmatprep.mubr.f32.mxu0 0.0
  %2283 = vmatmul.mubr.f32.gmra.mxu0 %v2213
  %v2284 = vpop.f32.mrf.mxu0
  %v2285 = vadd.f32 0.0, %v2284
  %v2286 = vpop.f32.mrf.mxu0
  %2287 = vmatprep.mubr.f32.mxu0 0.0
  %2288 = vmatmul.mubr.f32.gmra.mxu0 %v2216
  %v2289 = vpop.f32.mrf.mxu0
  %v2290 = vadd.f32 0.0, %v2289
  %v2291 = vpop.f32.mrf.mxu0
  %2292 = vdwg.mxu0
  %v2293 = vadd.f32 %v2196, %v2285
  %v2294 = vadd.f32 %v2201, %v2290
  %v2295 = vld [vmem:[%s15] sm:$0xff]
  %v2296 = vld [vmem:[%s15 + $0x8] sm:$0xff]
  %v2297 = vld [vmem:[%s22] sm:$0x1]
  %2299 = vset.pattern.permute.xlu0 0
  %2300 = vperm.xlu0 %2299, %v2295
  %v2301 = vpop.permute.xlu0 %2300
  %2304 = vset.pattern.permute.xlu0 0
  %2305 = vperm.xlu0 %2304, %v2296
  %v2306 = vpop.permute.xlu0 %2305
  %v2309 = vlaneseq
  %v2310 = vshrl.u32 %v2309, 7
  %v2311 = vsub.s32 0, %v2310
  %v2312 = vrot.slane %v2297, %v2311
  %v2314 = vmul.f32 %v2301, %v2312
  %v2315 = vmul.f32 %v2306, %v2312
  %v2316 = vadd.f32 %v2293, %v2314
  %v2317 = vadd.f32 %v2294, %v2315
  %v2318 = vld [vmem:[%s16] sm:$0xff]
  %v2319 = vld [vmem:[%s16 + $0x8] sm:$0xff]
  %v2320 = vld [vmem:[%s23] sm:$0x1]
  %2322 = vset.pattern.permute.xlu0 0
  %2323 = vperm.xlu0 %2322, %v2318
  %v2324 = vpop.permute.xlu0 %2323
  %2327 = vset.pattern.permute.xlu0 0
  %2328 = vperm.xlu0 %2327, %v2319
  %v2329 = vpop.permute.xlu0 %2328
  %v2332 = vlaneseq
  %v2333 = vshrl.u32 %v2332, 7
  %v2334 = vsub.s32 0, %v2333
  %v2335 = vrot.slane %v2320, %v2334
  %v2337 = vmul.f32 %v2324, %v2335
  %v2338 = vmul.f32 %v2329, %v2335
  %v2339 = vadd.f32 %v2316, %v2337
  %v2340 = vadd.f32 %v2317, %v2338
  %v2341 = vld [vmem:[%s24] sm:$0x1]
  %v2343 = vlaneseq
  %v2344 = vshrl.u32 %v2343, 7
  %v2345 = vsub.s32 0, %v2344
  %v2346 = vrot.slane %v2341, %v2345
  %v2348 = vadd.f32 %v2339, %v2346
  %v2349 = vadd.f32 %v2340, %v2346
  %v2350 = vmax.f32 %v2348, 0.0
  %v2351 = vmax.f32 %v2349, 0.0
  %vm2352 = vcmask 130048
  %v2354 = vsel %vm2352, %v1439, 0
  %2356 = vmatprep.subr.mxu0 0.0
  %2357 = vmatpush1.msra.mxu0 0.0
  %2358 = vmatprep.subr.mxu0 0.0
  %2359 = vmatpush1.msra.mxu0 0.0
  %2360 = vmatprep.subr.mxu0 0.0
  %2361 = vmatpush1.msra.mxu0 0.0
  %2362 = vmatprep.subr.mxu0 0.0
  %2363 = vmatpush1.msra.mxu0 0.0
  %2364 = vmatprep.subr.mxu0 0.0
  %2365 = vmatpush1.msra.mxu0 0.0
  %2366 = vmatprep.subr.mxu0 0.0
  %2367 = vmatpush1.msra.mxu0 0.0
  %2368 = vmatprep.subr.mxu0 0.0
  %2369 = vmatpush1.msra.mxu0 0.0
  %2370 = vmatprep.subr.mxu0 0.0
  %2371 = vmatpush1.msra.mxu0 0.0
  %2372 = vmatprep.subr.mxu0 0.0
  %2373 = vmatpush1.msra.mxu0 0.0
  %2374 = vmatprep.subr.mxu0 0.0
  %2375 = vmatpush1.msra.mxu0 0.0
  %2376 = vmatprep.subr.mxu0 0.0
  %2377 = vmatpush1.msra.mxu0 0.0
  %2378 = vmatprep.subr.mxu0 0.0
  %2379 = vmatpush1.msra.mxu0 0.0
  %2380 = vmatprep.subr.mxu0 0.0
  %2381 = vmatpush1.msra.mxu0 0.0
  %2382 = vmatprep.subr.mxu0 0.0
  %2383 = vmatpush1.msra.mxu0 0.0
  %2384 = vmatprep.subr.mxu0 0.0
  %2385 = vmatpush1.msra.mxu0 %v2351
  %2386 = vmatprep.subr.mxu0 0.0
  %2387 = vmatpush1.msra.mxu0 %v2350
  %2388 = vmatprep.subr.mxu0 0.0
  %2389 = vmatpush2.msra.mxu0 0.0
  %2390 = vmatprep.subr.mxu0 0.0
  %2391 = vmatpush2.msra.mxu0 0.0
  %2392 = vmatprep.subr.mxu0 0.0
  %2393 = vmatpush2.msra.mxu0 0.0
  %2394 = vmatprep.subr.mxu0 0.0
  %2395 = vmatpush2.msra.mxu0 0.0
  %2396 = vmatprep.subr.mxu0 0.0
  %2397 = vmatpush2.msra.mxu0 0.0
  %2398 = vmatprep.subr.mxu0 0.0
  %2399 = vmatpush2.msra.mxu0 0.0
  %2400 = vmatprep.subr.mxu0 0.0
  %2401 = vmatpush2.msra.mxu0 0.0
  %2402 = vmatprep.subr.mxu0 0.0
  %2403 = vmatpush2.msra.mxu0 0.0
  %2404 = vmatprep.subr.mxu0 0.0
  %2405 = vmatpush2.msra.mxu0 0.0
  %2406 = vmatprep.subr.mxu0 0.0
  %2407 = vmatpush2.msra.mxu0 0.0
  %2408 = vmatprep.subr.mxu0 0.0
  %2409 = vmatpush2.msra.mxu0 0.0
  %2410 = vmatprep.subr.mxu0 0.0
  %2411 = vmatpush2.msra.mxu0 0.0
  %2412 = vmatprep.subr.mxu0 0.0
  %2413 = vmatpush2.msra.mxu0 0.0
  %2414 = vmatprep.subr.mxu0 0.0
  %2415 = vmatpush2.msra.mxu0 0.0
  %2416 = vmatprep.subr.mxu0 0.0
  %2417 = vmatpush2.msra.mxu0 0.0
  %2418 = vmatprep.subr.mxu0 0.0
  %2419 = vmatpush2.msra.mxu0 0.0
  %2420 = vmatprep.mubr.f32.mxu0 0.0
  %2421 = vmatmul.mubr.f32.gmra.mxu0 %v2354
  %v2422 = vpop.f32.mrf.mxu0
  %v2423 = vadd.f32 0.0, %v2422
  %v2424 = vpop.f32.mrf.mxu0
  %2425 = vdwg.mxu0
  %v2426 = vadd.f32 %v1863, %v2423
  %v2427 = vld [vmem:[%s25] sm:$0xff]
  %v2428 = vld [vmem:[%s25 + $0x8] sm:$0xff]
  %v2429 = vld [vmem:[%s25 + $0x10] sm:$0xff]
  %v2430 = vld [vmem:[%s25 + $0x18] sm:$0xff]
  %v2431 = vld [vmem:[%s25 + $0x20] sm:$0xff]
  %v2432 = vld [vmem:[%s25 + $0x28] sm:$0xff]
  %v2433 = vld [vmem:[%s25 + $0x30] sm:$0xff]
  %v2434 = vld [vmem:[%s25 + $0x38] sm:$0xff]
  %v2435 = vld [vmem:[%s26] sm:$0x1]
  %v2437 = vlaneseq
  %v2438 = vshrl.u32 %v2437, 7
  %v2439 = vsub.s32 0, %v2438
  %v2440 = vrot.slane %v2435, %v2439
  %v2443 = vsel %vm1722, %v2426, 0
  %2445 = vmatprep.subr.mxu0 0.0
  %2446 = vmatpush1.msra.mxu0 0.0
  %2447 = vmatprep.subr.mxu0 0.0
  %2448 = vmatpush1.msra.mxu0 0.0
  %2449 = vmatprep.subr.mxu0 0.0
  %2450 = vmatpush1.msra.mxu0 0.0
  %2451 = vmatprep.subr.mxu0 0.0
  %2452 = vmatpush1.msra.mxu0 0.0
  %2453 = vmatprep.subr.mxu0 0.0
  %2454 = vmatpush1.msra.mxu0 0.0
  %2455 = vmatprep.subr.mxu0 0.0
  %2456 = vmatpush1.msra.mxu0 0.0
  %2457 = vmatprep.subr.mxu0 0.0
  %2458 = vmatpush1.msra.mxu0 0.0
  %2459 = vmatprep.subr.mxu0 0.0
  %2460 = vmatpush1.msra.mxu0 0.0
  %2461 = vmatprep.subr.mxu0 0.0
  %2462 = vmatpush1.msra.mxu0 %v2434
  %2463 = vmatprep.subr.mxu0 0.0
  %2464 = vmatpush1.msra.mxu0 %v2433
  %2465 = vmatprep.subr.mxu0 0.0
  %2466 = vmatpush1.msra.mxu0 %v2432
  %2467 = vmatprep.subr.mxu0 0.0
  %2468 = vmatpush1.msra.mxu0 %v2431
  %2469 = vmatprep.subr.mxu0 0.0
  %2470 = vmatpush1.msra.mxu0 %v2430
  %2471 = vmatprep.subr.mxu0 0.0
  %2472 = vmatpush1.msra.mxu0 %v2429
  %2473 = vmatprep.subr.mxu0 0.0
  %2474 = vmatpush1.msra.mxu0 %v2428
  %2475 = vmatprep.subr.mxu0 0.0
  %2476 = vmatpush1.msra.mxu0 %v2427
  %2477 = vmatprep.subr.mxu0 0.0
  %2478 = vmatpush2.msra.mxu0 0.0
  %2479 = vmatprep.subr.mxu0 0.0
  %2480 = vmatpush2.msra.mxu0 0.0
  %2481 = vmatprep.subr.mxu0 0.0
  %2482 = vmatpush2.msra.mxu0 0.0
  %2483 = vmatprep.subr.mxu0 0.0
  %2484 = vmatpush2.msra.mxu0 0.0
  %2485 = vmatprep.subr.mxu0 0.0
  %2486 = vmatpush2.msra.mxu0 0.0
  %2487 = vmatprep.subr.mxu0 0.0
  %2488 = vmatpush2.msra.mxu0 0.0
  %2489 = vmatprep.subr.mxu0 0.0
  %2490 = vmatpush2.msra.mxu0 0.0
  %2491 = vmatprep.subr.mxu0 0.0
  %2492 = vmatpush2.msra.mxu0 0.0
  %2493 = vmatprep.subr.mxu0 0.0
  %2494 = vmatpush2.msra.mxu0 0.0
  %2495 = vmatprep.subr.mxu0 0.0
  %2496 = vmatpush2.msra.mxu0 0.0
  %2497 = vmatprep.subr.mxu0 0.0
  %2498 = vmatpush2.msra.mxu0 0.0
  %2499 = vmatprep.subr.mxu0 0.0
  %2500 = vmatpush2.msra.mxu0 0.0
  %2501 = vmatprep.subr.mxu0 0.0
  %2502 = vmatpush2.msra.mxu0 0.0
  %2503 = vmatprep.subr.mxu0 0.0
  %2504 = vmatpush2.msra.mxu0 0.0
  %2505 = vmatprep.subr.mxu0 0.0
  %2506 = vmatpush2.msra.mxu0 0.0
  %2507 = vmatprep.subr.mxu0 0.0
  %2508 = vmatpush2.msra.mxu0 0.0
  %2509 = vmatprep.mubr.f32.mxu0 0.0
  %2510 = vmatmul.mubr.f32.gmra.mxu0 %v2443
  %v2511 = vpop.f32.mrf.mxu0
  %v2512 = vadd.f32 %v2440, %v2511
  %v2513 = vpop.f32.mrf.mxu0
  %2514 = vdwg.mxu0
  %vm2515 = vcmask 48128
  %2516 = vst.msk [vmem:[%s27] sm:$0xff] %vm2515, %v2512
  // Predicated region
  $region110: #{my_model_forward.1} parent=0 // pred_check
    _
  $region111: #{my_model_forward.1} parent=0 // pred_check_branch
    %2518 = sbr.rel (0) target = $region113
  $region112: #{my_model_forward.1} parent=0 // pred_region
    _
  $region113: #{my_model_forward.1} parent=0 // pred_fallthru
    _
  // Predicated region
  $region114: #{my_model_forward.1} parent=0 // pred_check
    _
  $region115: #{my_model_forward.1} parent=0 // pred_check_branch
    %2520 = sbr.rel (0) target = $region117
  $region116: #{my_model_forward.1} parent=0 // pred_region
    _
  $region117: #{my_model_forward.1} parent=0 // pred_fallthru
    _

</llo_original>
